<compile_context>
chip_gen: v6e
topology: v6e:2x2x1
jax: 0.10.0
libtpu: 0.0.40
codegen_flags: <defaults>
</compile_context>

<pallas_src>
import math
import functools

import jax
import jax.numpy as jnp
from jax.experimental import pallas as pl
from jax.experimental.pallas import tpu as pltpu


def mha_kernel(x_ref, wqkv_ref, wo_ref, bqkv_ref, bo_ref, o_ref,
               *, num_heads, head_dim, batch_block):
    """Fused multi-head self-attention for `batch_block` batch elements."""
    H = num_heads
    D = num_heads * head_dim
    T = x_ref.shape[1]
    f32 = jnp.float32
    bf16 = jnp.bfloat16

    # Weights / biases loaded once per grid step (shared across batch_block).
    wqkv = wqkv_ref[...]        # (3D, D) bf16  == concat(Wq*scale, Wk, Wv).T
    wo_t = wo_ref[...]          # (D, D)  bf16  == Wo.T
    bqkv = bqkv_ref[...]        # (3D, 1) f32   (b_q already pre-scaled)
    bo_c = bo_ref[...]          # (D, 1)  f32

    for bb in range(batch_block):
        x = x_ref[bb]                                      # (T, D) f32
        x_t = jnp.transpose(x).astype(bf16)                # (D, T)

        # Fused QKV projection: qkv^T = W_qkv^T @ x^T + b_qkv  -> (3D, T) f32.
        qkv_t = jnp.dot(wqkv, x_t, preferred_element_type=f32) + bqkv

        # Head split: leading/sublane-dim reshapes only (lane dim T untouched).
        qk3 = qkv_t[0:2 * D, :].reshape(2 * H, head_dim, T)   # q heads then k heads
        v3 = qkv_t[2 * D:3 * D, :].reshape(H, head_dim, T)     # (H, hd, T)

        # One stacked transpose for q and k: (2H, hd, T) -> (2H, T, hd).
        qk = jnp.swapaxes(qk3, 1, 2)
        qh = qk[:H]                                         # (H, T, hd) f32 (pre-scaled)
        kh = qk[H:]                                         # (H, T, hd) f32

        # Scores: batched over heads, contracting the last (head_dim) axis.
        s = jnp.einsum("hqd,hkd->hqk",
                       qh.astype(bf16), kh.astype(bf16),
                       preferred_element_type=f32)          # (H, T, T) f32

        # Numerically-stable softmax in f32; the divide goes to the EUP.
        s = s - jnp.max(s, axis=-1, keepdims=True)
        e = jnp.exp(s)
        p = e * pl.reciprocal(jnp.sum(e, axis=-1, keepdims=True), approx=True)
        # TODO(synk): training-mode attention dropout (pltpu.prng_*) not
        # implemented; nn.Dropout is the identity in eval mode.

        # Attention output, still feature-major: (H, hd, T); contract over keys.
        o3 = jnp.einsum("hdk,hqk->hdq",
                        v3.astype(bf16), p.astype(bf16),
                        preferred_element_type=f32)

        attn_t = o3.reshape(D, T).astype(bf16)              # (D, T), head-major merge

        # Output projection: out^T = Wo^T @ attn^T + bo.
        out_t = jnp.dot(wo_t, attn_t, preferred_element_type=f32) + bo_c  # (D, T)

        # Single lane-dense (T, D) store.
        o_ref[bb] = jnp.transpose(out_t).astype(o_ref.dtype)


def multi_head_attention(x, params, *, num_heads, batch_block=1):
    B, T, D = x.shape
    head_dim = D // num_heads
    assert head_dim * num_heads == D, "dim must be divisible by num_heads"
    assert B % batch_block == 0

    f32 = jnp.float32
    bf16 = jnp.bfloat16
    scale = 1.0 / math.sqrt(head_dim)

    # Fold the attention scale into the q projection (exact: softmax input is
    # (x Wq + bq) * scale * K^T), fuse QKV, and pre-transpose — all outside the
    # kernel, fused/const-folded by XLA.
    w_qkv_t = jnp.concatenate(
        [params["wq"] * scale, params["wk"], params["wv"]],
        axis=1).T.astype(bf16)                                              # (3D, D)
    b_qkv = jnp.concatenate(
        [params["bq"] * scale, params["bk"], params["bv"]],
        axis=1).astype(f32).T                                               # (3D, 1)
    wo_t = params["wo"].T.astype(bf16)                                      # (D, D)
    bo_c = params["bo"].astype(f32).T                                       # (D, 1)

    kernel = functools.partial(mha_kernel, num_heads=num_heads,
                               head_dim=head_dim, batch_block=batch_block)

    H = num_heads
    flops = int(2 * B * T * D * 3 * D            # fused QKV projection
                + 4 * B * H * T * T * head_dim   # QK^T and PV
                + 2 * B * T * D * D)             # output projection
    transcendentals = int(B * H * T * T)         # exp in softmax
    bytes_accessed = int(4 * B * T * D * 2                 # x in + out (f32)
                         + 2 * (3 * D * D + D * D)         # bf16 weights
                         + 4 * (3 * D + D))                # f32 biases

    grid = (B // batch_block,)

    return pl.pallas_call(
        kernel,
        out_shape=jax.ShapeDtypeStruct((B, T, D), x.dtype),
        grid_spec=pltpu.PrefetchScalarGridSpec(
            num_scalar_prefetch=0,
            grid=grid,
            in_specs=[
                pl.BlockSpec((batch_block, T, D), lambda b: (b, 0, 0)),  # x
                pl.BlockSpec((3 * D, D), lambda b: (0, 0)),              # W_qkv^T
                pl.BlockSpec((D, D), lambda b: (0, 0)),                  # W_o^T
                pl.BlockSpec((3 * D, 1), lambda b: (0, 0)),              # b_qkv
                pl.BlockSpec((D, 1), lambda b: (0, 0)),                  # b_o
            ],
            out_specs=pl.BlockSpec((batch_block, T, D), lambda b: (b, 0, 0)),
        ),
        compiler_params=pltpu.CompilerParams(
            dimension_semantics=("parallel",),
            vmem_limit_bytes=48 * 1024 * 1024,
        ),
        cost_estimate=pl.CostEstimate(flops=flops,
                                      transcendentals=transcendentals,
                                      bytes_accessed=bytes_accessed),
    )(x, w_qkv_t, wo_t, b_qkv, bo_c)


def reference_mha(x, params, *, num_heads):
    """Pure-JAX f32 reference mirroring the PyTorch forward (eval mode)."""
    B, T, D = x.shape
    hd = D // num_heads
    q = x @ params["wq"] + params["bq"][0]
    k = x @ params["wk"] + params["bk"][0]
    v = x @ params["wv"] + params["bv"][0]
    q = q.reshape(B, T, num_heads, hd).transpose(0, 2, 1, 3)
    k = k.reshape(B, T, num_heads, hd).transpose(0, 2, 1, 3)
    v = v.reshape(B, T, num_heads, hd).transpose(0, 2, 1, 3)
    s = jnp.einsum("bhqd,bhkd->bhqk", q, k) / math.sqrt(hd)
    p = jax.nn.softmax(s, axis=-1)
    o = jnp.einsum("bhqk,bhkd->bhqd", p, v)
    o = o.transpose(0, 2, 1, 3).reshape(B, T, D)
    return o @ params["wo"] + params["bo"][0]


if __name__ == "__main__":
    # Small shapes consistent with the module: (batch, num_tokens, dim),
    # dim divisible by num_heads (module default num_heads=16).
    B, T, D, H = 2, 8, 128, 16

    key = jax.random.PRNGKey(0)
    keys = jax.random.split(key, 9)
    scale = 1.0 / math.sqrt(D)   # ~ nn.Linear default uniform bound magnitude
    params = {
        "wq": jax.random.uniform(keys[0], (D, D), jnp.float32, -scale, scale),
        "wk": jax.random.uniform(keys[1], (D, D), jnp.float32, -scale, scale),
        "wv": jax.random.uniform(keys[2], (D, D), jnp.float32, -scale, scale),
        "wo": jax.random.uniform(keys[3], (D, D), jnp.float32, -scale, scale),
        "bq": jax.random.uniform(keys[4], (1, D), jnp.float32, -scale, scale),
        "bk": jax.random.uniform(keys[5], (1, D), jnp.float32, -scale, scale),
        "bv": jax.random.uniform(keys[6], (1, D), jnp.float32, -scale, scale),
        "bo": jax.random.uniform(keys[7], (1, D), jnp.float32, -scale, scale),
    }
    x = jax.random.normal(keys[8], (B, T, D), jnp.float32)

    out = multi_head_attention(x, params, num_heads=H, batch_block=1)
    out = jax.block_until_ready(out)

    ref = reference_mha(x, params, num_heads=H)
    assert out.shape == (B, T, D)
    # bf16 matmul operands + approx reciprocal => ~1e-2-level error vs f32 ref.
    assert jnp.allclose(out, ref, atol=3e-2, rtol=3e-2), "mismatch vs reference"

    print("KERNEL_OK")
</pallas_src>

<mosaic_0001>
module attributes {stable_mosaic.version = 11 : i64} {
  func.func @mha_kernel(%arg0: i32, %arg1: memref<1x8x128xf32, #tpu.memory_space<vmem>>, %arg2: memref<384x128xbf16, #tpu.memory_space<vmem>>, %arg3: memref<128x128xbf16, #tpu.memory_space<vmem>>, %arg4: memref<384x1xf32, #tpu.memory_space<vmem>>, %arg5: memref<128x1xf32, #tpu.memory_space<vmem>>, %arg6: memref<1x8x128xf32, #tpu.memory_space<vmem>>) attributes {dimension_semantics = [#tpu.dimension_semantics<parallel>], iteration_bounds = array<i64: 2>, scalar_prefetch = 0 : i64, scratch_operands = 0 : i64, tpu.core_type = #tpu.core_type<tc>, window_params = [{transform_indices = @transform_0, window_bounds = array<i64: 1, 8, 128>}, {pipeline_mode = #tpu.pipeline_mode<synchronous>, transform_indices = @transform_1, window_bounds = array<i64: 384, 128>}, {pipeline_mode = #tpu.pipeline_mode<synchronous>, transform_indices = @transform_2, window_bounds = array<i64: 128, 128>}, {pipeline_mode = #tpu.pipeline_mode<synchronous>, transform_indices = @transform_3, window_bounds = array<i64: 384, 1>}, {pipeline_mode = #tpu.pipeline_mode<synchronous>, transform_indices = @transform_4, window_bounds = array<i64: 128, 1>}, {transform_indices = @transform_5, window_bounds = array<i64: 1, 8, 128>}]} {
    %c0 = arith.constant 0 : index
    %c0_0 = arith.constant 0 : index
    %0 = vector.load %arg2[%c0, %c0_0] : memref<384x128xbf16, #tpu.memory_space<vmem>>, vector<384x128xbf16>
    %c0_1 = arith.constant 0 : index
    %c0_2 = arith.constant 0 : index
    %1 = vector.load %arg3[%c0_1, %c0_2] : memref<128x128xbf16, #tpu.memory_space<vmem>>, vector<128x128xbf16>
    %c0_3 = arith.constant 0 : index
    %c0_4 = arith.constant 0 : index
    %2 = vector.load %arg4[%c0_3, %c0_4] : memref<384x1xf32, #tpu.memory_space<vmem>>, vector<384x1xf32>
    %c0_5 = arith.constant 0 : index
    %c0_6 = arith.constant 0 : index
    %3 = vector.load %arg5[%c0_5, %c0_6] : memref<128x1xf32, #tpu.memory_space<vmem>>, vector<128x1xf32>
    %c0_7 = arith.constant 0 : index
    %c0_8 = arith.constant 0 : index
    %c0_9 = arith.constant 0 : index
    %4 = vector.load %arg1[%c0_7, %c0_8, %c0_9] : memref<1x8x128xf32, #tpu.memory_space<vmem>>, vector<1x8x128xf32>
    %5 = vector.shape_cast %4 : vector<1x8x128xf32> to vector<8x128xf32>
    %6 = tpu.transpose %5, [1, 0] : vector<8x128xf32> -> vector<128x8xf32>
    %7 = arith.truncf %6 : vector<128x8xf32> to vector<128x8xbf16>
    %cst = arith.constant dense<0.000000e+00> : vector<384x8xf32>
    %8 = tpu.matmul %0, %7, %cst {dimension_numbers = #tpu.dot_dimension_numbers<[1], [0], [0], [1], [0, 0, 1, 1], [], []>} : vector<384x128xbf16>, vector<128x8xbf16>, vector<384x8xf32> -> vector<384x8xf32>
    %9 = vector.broadcast %2 : vector<384x1xf32> to vector<384x8xf32>
    %10 = arith.addf %8, %9 : vector<384x8xf32>
    %11 = vector.extract_strided_slice %10 {offsets = [0, 0], sizes = [256, 8], strides = [1, 1]} : vector<384x8xf32> to vector<256x8xf32>
    %12 = vector.shape_cast %11 : vector<256x8xf32> to vector<32x8x8xf32>
    %13 = vector.extract_strided_slice %10 {offsets = [256, 0], sizes = [128, 8], strides = [1, 1]} : vector<384x8xf32> to vector<128x8xf32>
    %14 = vector.shape_cast %13 : vector<128x8xf32> to vector<16x8x8xf32>
    %15 = tpu.transpose %12, [0, 2, 1] : vector<32x8x8xf32> -> vector<32x8x8xf32>
    %16 = vector.extract_strided_slice %15 {offsets = [0, 0, 0], sizes = [16, 8, 8], strides = [1, 1, 1]} : vector<32x8x8xf32> to vector<16x8x8xf32>
    %17 = vector.extract_strided_slice %15 {offsets = [16, 0, 0], sizes = [16, 8, 8], strides = [1, 1, 1]} : vector<32x8x8xf32> to vector<16x8x8xf32>
    %18 = arith.truncf %16 : vector<16x8x8xf32> to vector<16x8x8xbf16>
    %19 = arith.truncf %17 : vector<16x8x8xf32> to vector<16x8x8xbf16>
    "tpu.trace_start"() <{level = 10 : i32, message = "hqd,hkd->hqk"}> : () -> ()
    %cst_10 = arith.constant dense<0.000000e+00> : vector<16x8x8xf32>
    %20 = tpu.matmul %18, %19, %cst_10 {dimension_numbers = #tpu.dot_dimension_numbers<[2], [2], [1], [1], [0, 0, 0, 1, 1, 1], [0], [0]>} : vector<16x8x8xbf16>, vector<16x8x8xbf16>, vector<16x8x8xf32> -> vector<16x8x8xf32>
    "tpu.trace_stop"() : () -> ()
    %cst_11 = arith.constant dense<0xFF800000> : vector<16x8xf32>
    %21 = vector.multi_reduction <maximumf>, %20, %cst_11 [2] : vector<16x8x8xf32> to vector<16x8xf32>
    %22 = vector.shape_cast %21 : vector<16x8xf32> to vector<16x8x1xf32>
    %23 = vector.broadcast %22 : vector<16x8x1xf32> to vector<16x8x8xf32>
    %24 = arith.subf %20, %23 : vector<16x8x8xf32>
    %25 = math.exp %24 : vector<16x8x8xf32>
    %cst_12 = arith.constant dense<0.000000e+00> : vector<16x8xf32>
    %26 = vector.multi_reduction <add>, %25, %cst_12 [2] : vector<16x8x8xf32> to vector<16x8xf32>
    %27 = vector.shape_cast %26 : vector<16x8xf32> to vector<16x8x1xf32>
    %28 = tpu.reciprocal %27 {approx = true} : vector<16x8x1xf32> -> vector<16x8x1xf32>
    %29 = vector.broadcast %28 : vector<16x8x1xf32> to vector<16x8x8xf32>
    %30 = arith.mulf %25, %29 : vector<16x8x8xf32>
    %31 = arith.truncf %14 : vector<16x8x8xf32> to vector<16x8x8xbf16>
    %32 = arith.truncf %30 : vector<16x8x8xf32> to vector<16x8x8xbf16>
    "tpu.trace_start"() <{level = 10 : i32, message = "hdk,hqk->hdq"}> : () -> ()
    %cst_13 = arith.constant dense<0.000000e+00> : vector<16x8x8xf32>
    %33 = tpu.matmul %31, %32, %cst_13 {dimension_numbers = #tpu.dot_dimension_numbers<[2], [2], [1], [1], [0, 0, 0, 1, 1, 1], [0], [0]>} : vector<16x8x8xbf16>, vector<16x8x8xbf16>, vector<16x8x8xf32> -> vector<16x8x8xf32>
    "tpu.trace_stop"() : () -> ()
    %34 = vector.shape_cast %33 : vector<16x8x8xf32> to vector<128x8xf32>
    %35 = arith.truncf %34 : vector<128x8xf32> to vector<128x8xbf16>
    %cst_14 = arith.constant dense<0.000000e+00> : vector<128x8xf32>
    %36 = tpu.matmul %1, %35, %cst_14 {dimension_numbers = #tpu.dot_dimension_numbers<[1], [0], [0], [1], [0, 0, 1, 1], [], []>} : vector<128x128xbf16>, vector<128x8xbf16>, vector<128x8xf32> -> vector<128x8xf32>
    %37 = vector.broadcast %3 : vector<128x1xf32> to vector<128x8xf32>
    %38 = arith.addf %36, %37 : vector<128x8xf32>
    %39 = tpu.transpose %38, [1, 0] : vector<128x8xf32> -> vector<8x128xf32>
    %c0_15 = arith.constant 0 : index
    %c0_16 = arith.constant 0 : index
    %c0_17 = arith.constant 0 : index
    %40 = vector.load %arg6[%c0_15, %c0_16, %c0_17] : memref<1x8x128xf32, #tpu.memory_space<vmem>>, vector<1x8x128xf32>
    %41 = vector.shape_cast %40 : vector<1x8x128xf32> to vector<8x128xf32>
    %42 = vector.shape_cast %39 : vector<8x128xf32> to vector<1x8x128xf32>
    tpu.vector_store %arg6[%c0_15, %c0_16, %c0_17], %42 {strides = array<i32>} : memref<1x8x128xf32, #tpu.memory_space<vmem>>, vector<1x8x128xf32>,
    return
  }
  func.func @transform_0(%arg0: i32) -> (i32, i32, i32) {
    %c0_i32 = arith.constant 0 : i32
    %c0_i32_0 = arith.constant 0 : i32
    %c0_i32_1 = arith.constant 0 : i32
    return %arg0, %c0_i32, %c0_i32_0 : i32, i32, i32
  }
  func.func @transform_1(%arg0: i32) -> (i32, i32) {
    %c0_i32 = arith.constant 0 : i32
    %c0_i32_0 = arith.constant 0 : i32
    %c0_i32_1 = arith.constant 0 : i32
    return %c0_i32, %c0_i32_0 : i32, i32
  }
  func.func @transform_2(%arg0: i32) -> (i32, i32) {
    %c0_i32 = arith.constant 0 : i32
    %c0_i32_0 = arith.constant 0 : i32
    %c0_i32_1 = arith.constant 0 : i32
    return %c0_i32, %c0_i32_0 : i32, i32
  }
  func.func @transform_3(%arg0: i32) -> (i32, i32) {
    %c0_i32 = arith.constant 0 : i32
    %c0_i32_0 = arith.constant 0 : i32
    %c0_i32_1 = arith.constant 0 : i32
    return %c0_i32, %c0_i32_0 : i32, i32
  }
  func.func @transform_4(%arg0: i32) -> (i32, i32) {
    %c0_i32 = arith.constant 0 : i32
    %c0_i32_0 = arith.constant 0 : i32
    %c0_i32_1 = arith.constant 0 : i32
    return %c0_i32, %c0_i32_0 : i32, i32
  }
  func.func @transform_5(%arg0: i32) -> (i32, i32, i32) {
    %c0_i32 = arith.constant 0 : i32
    %c0_i32_0 = arith.constant 0 : i32
    %c0_i32_1 = arith.constant 0 : i32
    return %arg0, %c0_i32, %c0_i32_0 : i32, i32, i32
  }
}

</mosaic_0001>

<llo_original>
// kernel: tpu_custom_call.1
$region0: #{tpu_custom_call.1}
  #allocation0 [shape = 'u32[]', space=smem, size = 0x4, offset = 0x4, fixed_abs, tag = 'smem constant byte address 0x4 - core index']
  #allocation1 [shape = 'u32[144,128]{1,0:T(1,128)}', space=vmem, size = 0x12000, scoped, tag = 'internal scratch']
  %s0 = inlined_call_operand.vmem [shape: f32[2,8,128], index: 0, kind: input, shape index: {}]
  %s1 = inlined_call_operand.vmem [shape: bf16[384,128], index: 1, kind: input, shape index: {}]
  %s2 = inlined_call_operand.vmem [shape: bf16[128,128], index: 2, kind: input, shape index: {}]
  %s3 = inlined_call_operand.vmem [shape: f32[384,1], index: 3, kind: input, shape index: {}]
  %s4 = inlined_call_operand.vmem [shape: f32[128,1], index: 4, kind: input, shape index: {}]
  %s5 = inlined_call_operand.hbm [shape: f32[2,8,128], index: 5, kind: output, shape index: {}]
  %s6 = sld [smem:[#allocation0]]
  $region53: #{tpu_custom_call.1} parent=0
    _
  %s8 = ssub.s32 1, %s6
  %s9 = scalar_select 0, %s8, %s6
  $region1: #{tpu_custom_call.1} parent=0
    #allocation2 [shape = 'u8[8192]{0}', space=vmem, size = 0x2000, scoped, tag = 'output window, operand 0']
    #allocation3 [shape = 's32[2]{0}', space=sflag, size = 0x8, scoped, tag = 'scoped memory for tpu_custom_call.1']
    %10 = vsyncpa [#allocation3], 0
    %s11 = scalar_lea.sflag [#allocation3], 1
    %12 = vsyncpa %s11, 0
    loop: start=0, step=1, limit=4
    $region2: #{tpu_custom_call.1} parent=1 // loop_pre_header
      _
    $region3: #{tpu_custom_call.1} parent=1 // loop_header
      %s14 = sphi 0, %s18
      %p15 = scmp.ge.s32.totalorder %s14, 4
      %s24 = sphi 0, %s26
      %s27 = sphi 0, %s24
      %s28 = sphi 0, %s27
      %s44 = sphi 0, %s28
      %s48 = sphi 0, %s48
      %s50 = sphi 0, %s48
      %s51 = sphi 0, %s50
      %s65 = sphi 0, %s51
      %s69 = sphi 0, %s69
      %s71 = sphi 0, %s69
      %s72 = sphi 0, %s71
      %s86 = sphi 0, %s72
      %s90 = sphi 0, %s90
      %s92 = sphi 0, %s90
      %s93 = sphi 0, %s92
      %s107 = sphi 0, %s93
      %s111 = sphi 0, %s111
      %s113 = sphi 0, %s111
      %s114 = sphi 0, %s113
      %s128 = sphi 0, %s114
      %s134 = sphi 0, %s136
      %s137 = sphi 0, %s134
      %s138 = sphi 0, %s137
      %s154 = sphi 0, %s138
    $region4: #{tpu_custom_call.1} parent=1 // loop_header_branch
      %17 = sbr.rel (%p15) target = $region8
    $region5: #{tpu_custom_call.1} parent=1 // loop_body
      %s19 = ssub.s32 %s14, 1
      %s20 = ssub.s32 %s14, 2
      %s21 = sadd.s32 %s14, 1
      %s22 = ssub.s32 %s14, %s21
      %p23 = scmp.eq.s32.totalorder %s22, 0
      %s25 = sadd.s32 %s24, 1
      %s26 = scalar_select %p23, %s24, %s25
      %p29 = pneg %p23
      %p30 = scmp.eq.s32.totalorder %s14, 1
      %p31 = por %p29, %p30
      %p32 = scmp.ne.s32.totalorder %s24, %s27
      %p33 = scmp.eq.s32.totalorder %s14, 0
      %p34 = por %p32, %p33
      %p35 = scmp.ne.s32.totalorder %s24, %s27
      %p36 = scmp.eq.s32.totalorder %s19, 1
      %p37 = por %p35, %p36
      %p38 = scmp.ne.s32.totalorder %s27, %s28
      %p39 = scmp.eq.s32.totalorder %s19, 0
      %p40 = por %p38, %p39
      %p41 = scmp.ne.s32.totalorder %s27, %s28
      %p42 = scmp.eq.s32.totalorder %s20, 1
      %p43 = por %p41, %p42
      %p45 = scmp.ne.s32.totalorder %s28, %s44
      %p46 = scmp.eq.s32.totalorder %s20, 0
      %p47 = por %p45, %p46
      %s49 = sadd.s32 %s48, 1
      %p52 = scmp.eq.s32.totalorder %s14, 1
      %p53 = scmp.ne.s32.totalorder %s48, %s50
      %p54 = scmp.eq.s32.totalorder %s14, 0
      %p55 = por %p53, %p54
      %p56 = scmp.ne.s32.totalorder %s48, %s50
      %p57 = scmp.eq.s32.totalorder %s19, 1
      %p58 = por %p56, %p57
      %p59 = scmp.ne.s32.totalorder %s50, %s51
      %p60 = scmp.eq.s32.totalorder %s19, 0
      %p61 = por %p59, %p60
      %p62 = scmp.ne.s32.totalorder %s50, %s51
      %p63 = scmp.eq.s32.totalorder %s20, 1
      %p64 = por %p62, %p63
      %p66 = scmp.ne.s32.totalorder %s51, %s65
      %p67 = scmp.eq.s32.totalorder %s20, 0
      %p68 = por %p66, %p67
      %s70 = sadd.s32 %s69, 1
      %p73 = scmp.eq.s32.totalorder %s14, 1
      %p74 = scmp.ne.s32.totalorder %s69, %s71
      %p75 = scmp.eq.s32.totalorder %s14, 0
      %p76 = por %p74, %p75
      %p77 = scmp.ne.s32.totalorder %s69, %s71
      %p78 = scmp.eq.s32.totalorder %s19, 1
      %p79 = por %p77, %p78
      %p80 = scmp.ne.s32.totalorder %s71, %s72
      %p81 = scmp.eq.s32.totalorder %s19, 0
      %p82 = por %p80, %p81
      %p83 = scmp.ne.s32.totalorder %s71, %s72
      %p84 = scmp.eq.s32.totalorder %s20, 1
      %p85 = por %p83, %p84
      %p87 = scmp.ne.s32.totalorder %s72, %s86
      %p88 = scmp.eq.s32.totalorder %s20, 0
      %p89 = por %p87, %p88
      %s91 = sadd.s32 %s90, 1
      %p94 = scmp.eq.s32.totalorder %s14, 1
      %p95 = scmp.ne.s32.totalorder %s90, %s92
      %p96 = scmp.eq.s32.totalorder %s14, 0
      %p97 = por %p95, %p96
      %p98 = scmp.ne.s32.totalorder %s90, %s92
      %p99 = scmp.eq.s32.totalorder %s19, 1
      %p100 = por %p98, %p99
      %p101 = scmp.ne.s32.totalorder %s92, %s93
      %p102 = scmp.eq.s32.totalorder %s19, 0
      %p103 = por %p101, %p102
      %p104 = scmp.ne.s32.totalorder %s92, %s93
      %p105 = scmp.eq.s32.totalorder %s20, 1
      %p106 = por %p104, %p105
      %p108 = scmp.ne.s32.totalorder %s93, %s107
      %p109 = scmp.eq.s32.totalorder %s20, 0
      %p110 = por %p108, %p109
      %s112 = sadd.s32 %s111, 1
      %p115 = scmp.eq.s32.totalorder %s14, 1
      %p116 = scmp.ne.s32.totalorder %s111, %s113
      %p117 = scmp.eq.s32.totalorder %s14, 0
      %p118 = por %p116, %p117
      %p119 = scmp.ne.s32.totalorder %s111, %s113
      %p120 = scmp.eq.s32.totalorder %s19, 1
      %p121 = por %p119, %p120
      %p122 = scmp.ne.s32.totalorder %s113, %s114
      %p123 = scmp.eq.s32.totalorder %s19, 0
      %p124 = por %p122, %p123
      %p125 = scmp.ne.s32.totalorder %s113, %s114
      %p126 = scmp.eq.s32.totalorder %s20, 1
      %p127 = por %p125, %p126
      %p129 = scmp.ne.s32.totalorder %s114, %s128
      %p130 = scmp.eq.s32.totalorder %s20, 0
      %p131 = por %p129, %p130
      %s132 = ssub.s32 %s14, %s21
      %p133 = scmp.eq.s32.totalorder %s132, 0
      %s135 = sadd.s32 %s134, 1
      %s136 = scalar_select %p133, %s134, %s135
      %p139 = pneg %p133
      %p140 = scmp.eq.s32.totalorder %s14, 1
      %p141 = por %p139, %p140
      %p142 = scmp.ne.s32.totalorder %s134, %s137
      %p143 = scmp.eq.s32.totalorder %s14, 0
      %p144 = por %p142, %p143
      %p145 = scmp.ne.s32.totalorder %s134, %s137
      %p146 = scmp.eq.s32.totalorder %s19, 1
      %p147 = por %p145, %p146
      %p148 = scmp.ne.s32.totalorder %s137, %s138
      %p149 = scmp.eq.s32.totalorder %s19, 0
      %p150 = por %p148, %p149
      %p151 = scmp.ne.s32.totalorder %s137, %s138
      %p152 = scmp.eq.s32.totalorder %s20, 1
      %p153 = por %p151, %p152
      %p155 = scmp.ne.s32.totalorder %s138, %s154
      %p156 = scmp.eq.s32.totalorder %s20, 0
      %p157 = por %p155, %p156
      %p158 = scmp.le.s32.totalorder 1, %s14
      %p159 = scmp.lt.s32.totalorder %s14, 3
      %p160 = pnand %p158, %p159
      %p161 = pneg %p160
      // Predicated region
      $region9: #{tpu_custom_call.1} parent=5 // pred_check
        _
      $region10: #{tpu_custom_call.1} parent=5 // pred_check_branch
        %163 = sbr.rel (%p160) target = $region12
      $region11: #{tpu_custom_call.1} parent=5 // pred_region
        %s164 = ssub.s32 %s14, 1
        // Predicated region
        $region13: #{tpu_custom_call.1} parent=11 // pred_check
          %p165 = pneg %p61
        $region14: #{tpu_custom_call.1} parent=11 // pred_check_branch
          %167 = sbr.rel (%p165) target = $region16
        $region15: #{tpu_custom_call.1} parent=11 // pred_region
          _
        $region16: #{tpu_custom_call.1} parent=11 // pred_fallthru
          _
        // Predicated region
        $region17: #{tpu_custom_call.1} parent=11 // pred_check
          %p168 = pneg %p82
        $region18: #{tpu_custom_call.1} parent=11 // pred_check_branch
          %170 = sbr.rel (%p168) target = $region20
        $region19: #{tpu_custom_call.1} parent=11 // pred_region
          _
        $region20: #{tpu_custom_call.1} parent=11 // pred_fallthru
          _
        // Predicated region
        $region21: #{tpu_custom_call.1} parent=11 // pred_check
          %p171 = pneg %p103
        $region22: #{tpu_custom_call.1} parent=11 // pred_check_branch
          %173 = sbr.rel (%p171) target = $region24
        $region23: #{tpu_custom_call.1} parent=11 // pred_region
          _
        $region24: #{tpu_custom_call.1} parent=11 // pred_fallthru
          _
        // Predicated region
        $region25: #{tpu_custom_call.1} parent=11 // pred_check
          %p174 = pneg %p124
        $region26: #{tpu_custom_call.1} parent=11 // pred_check_branch
          %176 = sbr.rel (%p174) target = $region28
        $region27: #{tpu_custom_call.1} parent=11 // pred_region
          _
        $region28: #{tpu_custom_call.1} parent=11 // pred_fallthru
          _
      $region12: #{tpu_custom_call.1} parent=5 // pred_fallthru
        _
      %p177 = scmp.lt.s32.totalorder %s14, 2
      // Predicated region
      $region29: #{tpu_custom_call.1} parent=5 // pred_check
        %p178 = pneg %p177
      $region30: #{tpu_custom_call.1} parent=5 // pred_check_branch
        %180 = sbr.rel (%p178) target = $region32
      $region31: #{tpu_custom_call.1} parent=5 // pred_region
        // Predicated region
        $region33: #{tpu_custom_call.1} parent=31 // pred_check
          %p181 = pneg %p34
        $region34: #{tpu_custom_call.1} parent=31 // pred_check_branch
          %183 = sbr.rel (%p181) target = $region36
        $region35: #{tpu_custom_call.1} parent=31 // pred_region
          %p184 = scmp.lt.s32.totalorder %s14, 1
          %s185 = scalar_select %p184, %s14, 1
          %s186 = smul.addr %s185, 8
          %s187 = scalar_lea.vmem %s0, %s186
        $region36: #{tpu_custom_call.1} parent=31 // pred_fallthru
          _
      $region32: #{tpu_custom_call.1} parent=5 // pred_fallthru
        _
      %p188 = scmp.le.s32.totalorder 1, %s14
      %p189 = scmp.lt.s32.totalorder %s14, 3
      %p190 = pnand %p188, %p189
      %p191 = pneg %p190
      // Predicated region
      $region37: #{tpu_custom_call.1} parent=5 // pred_check
        _
      $region38: #{tpu_custom_call.1} parent=5 // pred_check_branch
        %193 = sbr.rel (%p190) target = $region40
      $region39: #{tpu_custom_call.1} parent=5 // pred_region
        %s194 = ssub.s32 %s14, 1
        %p195 = scmp.lt.s32.totalorder %s19, 1
        %s196 = scalar_select %p195, %s19, 1
        %s197 = smul.addr %s196, 8
        %s198 = scalar_lea.vmem %s0, %s197
        %p199 = pneg %p40
        %p200 = pneg %p37
        %p201 = pneg %p61
        %p202 = pneg %p58
        %p203 = pneg %p82
        %p204 = pneg %p79
        %p205 = pneg %p103
        %p206 = pneg %p100
        %p207 = pneg %p124
        %p208 = pneg %p121
        %p209 = pneg %p150
        %p210 = pneg %p147
        %s211 = sand.u32 %s137, 1
        %s212 = scalar_lea.sflag [#allocation3], %s211
        %s213 = sand.u32 %s137, 1
        %s214 = smul.addr %s213, 8
        %s215 = scalar_lea.vmem [#allocation2], %s214
        %p216 = scmp.lt.s32.totalorder %s19, 1
        %s217 = scalar_select %p216, %s19, 1
        %s218 = smul.addr %s217, 8
        %s219 = scalar_lea.vmem %s0, %s218
        %v221 = vld [vmem:[%s1] sm:$0xf]
        %v222 = vld [vmem:[%s1 + $0x4] sm:$0xf]
        %v223 = vld [vmem:[%s1 + $0x8] sm:$0xf]
        %v224 = vld [vmem:[%s1 + $0xc] sm:$0xf]
        %v225 = vld [vmem:[%s1 + $0x10] sm:$0xf]
        %v226 = vld [vmem:[%s1 + $0x14] sm:$0xf]
        %v227 = vld [vmem:[%s1 + $0x18] sm:$0xf]
        %v228 = vld [vmem:[%s1 + $0x1c] sm:$0xf]
        %v229 = vld [vmem:[%s1 + $0x20] sm:$0xf]
        %v230 = vld [vmem:[%s1 + $0x24] sm:$0xf]
        %v231 = vld [vmem:[%s1 + $0x28] sm:$0xf]
        %v232 = vld [vmem:[%s1 + $0x2c] sm:$0xf]
        %v233 = vld [vmem:[%s1 + $0x30] sm:$0xf]
        %v234 = vld [vmem:[%s1 + $0x34] sm:$0xf]
        %v235 = vld [vmem:[%s1 + $0x38] sm:$0xf]
        %v236 = vld [vmem:[%s1 + $0x3c] sm:$0xf]
        %v237 = vld [vmem:[%s1 + $0x40] sm:$0xf]
        %v238 = vld [vmem:[%s1 + $0x44] sm:$0xf]
        %v239 = vld [vmem:[%s1 + $0x48] sm:$0xf]
        %v240 = vld [vmem:[%s1 + $0x4c] sm:$0xf]
        %v241 = vld [vmem:[%s1 + $0x50] sm:$0xf]
        %v242 = vld [vmem:[%s1 + $0x54] sm:$0xf]
        %v243 = vld [vmem:[%s1 + $0x58] sm:$0xf]
        %v244 = vld [vmem:[%s1 + $0x5c] sm:$0xf]
        %v245 = vld [vmem:[%s1 + $0x60] sm:$0xf]
        %v246 = vld [vmem:[%s1 + $0x64] sm:$0xf]
        %v247 = vld [vmem:[%s1 + $0x68] sm:$0xf]
        %v248 = vld [vmem:[%s1 + $0x6c] sm:$0xf]
        %v249 = vld [vmem:[%s1 + $0x70] sm:$0xf]
        %v250 = vld [vmem:[%s1 + $0x74] sm:$0xf]
        %v251 = vld [vmem:[%s1 + $0x78] sm:$0xf]
        %v252 = vld [vmem:[%s1 + $0x7c] sm:$0xf]
        %v253 = vld [vmem:[%s1 + $0x80] sm:$0xf]
        %v254 = vld [vmem:[%s1 + $0x84] sm:$0xf]
        %v255 = vld [vmem:[%s1 + $0x88] sm:$0xf]
        %v256 = vld [vmem:[%s1 + $0x8c] sm:$0xf]
        %v257 = vld [vmem:[%s1 + $0x90] sm:$0xf]
        %v258 = vld [vmem:[%s1 + $0x94] sm:$0xf]
        %v259 = vld [vmem:[%s1 + $0x98] sm:$0xf]
        %v260 = vld [vmem:[%s1 + $0x9c] sm:$0xf]
        %v261 = vld [vmem:[%s1 + $0xa0] sm:$0xf]
        %v262 = vld [vmem:[%s1 + $0xa4] sm:$0xf]
        %v263 = vld [vmem:[%s1 + $0xa8] sm:$0xf]
        %v264 = vld [vmem:[%s1 + $0xac] sm:$0xf]
        %v265 = vld [vmem:[%s1 + $0xb0] sm:$0xf]
        %v266 = vld [vmem:[%s1 + $0xb4] sm:$0xf]
        %v267 = vld [vmem:[%s1 + $0xb8] sm:$0xf]
        %v268 = vld [vmem:[%s1 + $0xbc] sm:$0xf]
        %v269 = vld [vmem:[%s2] sm:$0xf]
        %v270 = vld [vmem:[%s2 + $0x4] sm:$0xf]
        %v271 = vld [vmem:[%s2 + $0x8] sm:$0xf]
        %v272 = vld [vmem:[%s2 + $0xc] sm:$0xf]
        %v273 = vld [vmem:[%s2 + $0x10] sm:$0xf]
        %v274 = vld [vmem:[%s2 + $0x14] sm:$0xf]
        %v275 = vld [vmem:[%s2 + $0x18] sm:$0xf]
        %v276 = vld [vmem:[%s2 + $0x1c] sm:$0xf]
        %v277 = vld [vmem:[%s2 + $0x20] sm:$0xf]
        %v278 = vld [vmem:[%s2 + $0x24] sm:$0xf]
        %v279 = vld [vmem:[%s2 + $0x28] sm:$0xf]
        %v280 = vld [vmem:[%s2 + $0x2c] sm:$0xf]
        %v281 = vld [vmem:[%s2 + $0x30] sm:$0xf]
        %v282 = vld [vmem:[%s2 + $0x34] sm:$0xf]
        %v283 = vld [vmem:[%s2 + $0x38] sm:$0xf]
        %v284 = vld [vmem:[%s2 + $0x3c] sm:$0xf]
        %v285 = vld [vmem:[%s3] sm:$0xff]
        %v286 = vld [vmem:[%s3 + $0x8] sm:$0xff]
        %v287 = vld [vmem:[%s3 + $0x10] sm:$0xff]
        %v288 = vld [vmem:[%s3 + $0x18] sm:$0xff]
        %v289 = vld [vmem:[%s3 + $0x20] sm:$0xff]
        %v290 = vld [vmem:[%s3 + $0x28] sm:$0xff]
        %v291 = vld [vmem:[%s3 + $0x30] sm:$0xff]
        %v292 = vld [vmem:[%s3 + $0x38] sm:$0xff]
        %v293 = vld [vmem:[%s3 + $0x40] sm:$0xff]
        %v294 = vld [vmem:[%s3 + $0x48] sm:$0xff]
        %v295 = vld [vmem:[%s3 + $0x50] sm:$0xff]
        %v296 = vld [vmem:[%s3 + $0x58] sm:$0xff]
        %v297 = vld [vmem:[%s3 + $0x60] sm:$0xff]
        %v298 = vld [vmem:[%s3 + $0x68] sm:$0xff]
        %v299 = vld [vmem:[%s3 + $0x70] sm:$0xff]
        %v300 = vld [vmem:[%s3 + $0x78] sm:$0xff]
        %v301 = vld [vmem:[%s3 + $0x80] sm:$0xff]
        %v302 = vld [vmem:[%s3 + $0x88] sm:$0xff]
        %v303 = vld [vmem:[%s3 + $0x90] sm:$0xff]
        %v304 = vld [vmem:[%s3 + $0x98] sm:$0xff]
        %v305 = vld [vmem:[%s3 + $0xa0] sm:$0xff]
        %v306 = vld [vmem:[%s3 + $0xa8] sm:$0xff]
        %v307 = vld [vmem:[%s3 + $0xb0] sm:$0xff]
        %v308 = vld [vmem:[%s3 + $0xb8] sm:$0xff]
        %v309 = vld [vmem:[%s3 + $0xc0] sm:$0xff]
        %v310 = vld [vmem:[%s3 + $0xc8] sm:$0xff]
        %v311 = vld [vmem:[%s3 + $0xd0] sm:$0xff]
        %v312 = vld [vmem:[%s3 + $0xd8] sm:$0xff]
        %v313 = vld [vmem:[%s3 + $0xe0] sm:$0xff]
        %v314 = vld [vmem:[%s3 + $0xe8] sm:$0xff]
        %v315 = vld [vmem:[%s3 + $0xf0] sm:$0xff]
        %v316 = vld [vmem:[%s3 + $0xf8] sm:$0xff]
        %v317 = vld [vmem:[%s3 + $0x100] sm:$0xff]
        %v318 = vld [vmem:[%s3 + $0x108] sm:$0xff]
        %v319 = vld [vmem:[%s3 + $0x110] sm:$0xff]
        %v320 = vld [vmem:[%s3 + $0x118] sm:$0xff]
        %v321 = vld [vmem:[%s3 + $0x120] sm:$0xff]
        %v322 = vld [vmem:[%s3 + $0x128] sm:$0xff]
        %v323 = vld [vmem:[%s3 + $0x130] sm:$0xff]
        %v324 = vld [vmem:[%s3 + $0x138] sm:$0xff]
        %v325 = vld [vmem:[%s3 + $0x140] sm:$0xff]
        %v326 = vld [vmem:[%s3 + $0x148] sm:$0xff]
        %v327 = vld [vmem:[%s3 + $0x150] sm:$0xff]
        %v328 = vld [vmem:[%s3 + $0x158] sm:$0xff]
        %v329 = vld [vmem:[%s3 + $0x160] sm:$0xff]
        %v330 = vld [vmem:[%s3 + $0x168] sm:$0xff]
        %v331 = vld [vmem:[%s3 + $0x170] sm:$0xff]
        %v332 = vld [vmem:[%s3 + $0x178] sm:$0xff]
        %v333 = vld [vmem:[%s4] sm:$0xff]
        %v334 = vld [vmem:[%s4 + $0x8] sm:$0xff]
        %v335 = vld [vmem:[%s4 + $0x10] sm:$0xff]
        %v336 = vld [vmem:[%s4 + $0x18] sm:$0xff]
        %v337 = vld [vmem:[%s4 + $0x20] sm:$0xff]
        %v338 = vld [vmem:[%s4 + $0x28] sm:$0xff]
        %v339 = vld [vmem:[%s4 + $0x30] sm:$0xff]
        %v340 = vld [vmem:[%s4 + $0x38] sm:$0xff]
        %v341 = vld [vmem:[%s4 + $0x40] sm:$0xff]
        %v342 = vld [vmem:[%s4 + $0x48] sm:$0xff]
        %v343 = vld [vmem:[%s4 + $0x50] sm:$0xff]
        %v344 = vld [vmem:[%s4 + $0x58] sm:$0xff]
        %v345 = vld [vmem:[%s4 + $0x60] sm:$0xff]
        %v346 = vld [vmem:[%s4 + $0x68] sm:$0xff]
        %v347 = vld [vmem:[%s4 + $0x70] sm:$0xff]
        %v348 = vld [vmem:[%s4 + $0x78] sm:$0xff]
        %v349 = vld [vmem:[%s219] sm:$0xff]
        %350 = vxpose.xlu0.b32.start [1/16] %v349, 128
        %351 = vxpose.xlu0.b32.cont [2/16] 0.0, 128
        %352 = vxpose.xlu0.b32.cont [3/16] 0.0, 128
        %353 = vxpose.xlu0.b32.cont [4/16] 0.0, 128
        %354 = vxpose.xlu0.b32.cont [5/16] 0.0, 128
        %355 = vxpose.xlu0.b32.cont [6/16] 0.0, 128
        %356 = vxpose.xlu0.b32.cont [7/16] 0.0, 128
        %357 = vxpose.xlu0.b32.cont [8/16] 0.0, 128
        %358 = vxpose.xlu0.b32.cont [9/16] 0.0, 128
        %359 = vxpose.xlu0.b32.cont [10/16] 0.0, 128
        %360 = vxpose.xlu0.b32.cont [11/16] 0.0, 128
        %361 = vxpose.xlu0.b32.cont [12/16] 0.0, 128
        %362 = vxpose.xlu0.b32.cont [13/16] 0.0, 128
        %363 = vxpose.xlu0.b32.cont [14/16] 0.0, 128
        %364 = vxpose.xlu0.b32.cont [15/16] 0.0, 128
        %365 = vxpose.xlu0.b32.end [16/16] 0.0, 128
        %v366 = vpop.trf.xlu0
        %v367 = vpop.trf.xlu0
        %v368 = vpop.trf.xlu0
        %v369 = vpop.trf.xlu0
        %v370 = vpop.trf.xlu0
        %v371 = vpop.trf.xlu0
        %v372 = vpop.trf.xlu0
        %v373 = vpop.trf.xlu0
        %v374 = vpop.trf.xlu0
        %v375 = vpop.trf.xlu0
        %v376 = vpop.trf.xlu0
        %v377 = vpop.trf.xlu0
        %v378 = vpop.trf.xlu0
        %v379 = vpop.trf.xlu0
        %v380 = vpop.trf.xlu0
        %v381 = vpop.trf.xlu0
        %v382 = vpack.c.bf16 %v367, %v366
        %v383 = vpack.c.bf16 %v369, %v368
        %v384 = vpack.c.bf16 %v371, %v370
        %v385 = vpack.c.bf16 %v373, %v372
        %v386 = vpack.c.bf16 %v375, %v374
        %v387 = vpack.c.bf16 %v377, %v376
        %v388 = vpack.c.bf16 %v379, %v378
        %v389 = vpack.c.bf16 %v381, %v380
        %391 = vset.pattern.permute.xlu0 0
        %392 = vperm.xlu0 %391, %v285
        %v393 = vpop.permute.xlu0 %392
        %396 = vset.pattern.permute.xlu0 0
        %397 = vperm.xlu0 %396, %v286
        %v398 = vpop.permute.xlu0 %397
        %401 = vset.pattern.permute.xlu0 0
        %402 = vperm.xlu0 %401, %v287
        %v403 = vpop.permute.xlu0 %402
        %406 = vset.pattern.permute.xlu0 0
        %407 = vperm.xlu0 %406, %v288
        %v408 = vpop.permute.xlu0 %407
        %411 = vset.pattern.permute.xlu0 0
        %412 = vperm.xlu0 %411, %v289
        %v413 = vpop.permute.xlu0 %412
        %416 = vset.pattern.permute.xlu0 0
        %417 = vperm.xlu0 %416, %v290
        %v418 = vpop.permute.xlu0 %417
        %421 = vset.pattern.permute.xlu0 0
        %422 = vperm.xlu0 %421, %v291
        %v423 = vpop.permute.xlu0 %422
        %426 = vset.pattern.permute.xlu0 0
        %427 = vperm.xlu0 %426, %v292
        %v428 = vpop.permute.xlu0 %427
        %431 = vset.pattern.permute.xlu0 0
        %432 = vperm.xlu0 %431, %v293
        %v433 = vpop.permute.xlu0 %432
        %436 = vset.pattern.permute.xlu0 0
        %437 = vperm.xlu0 %436, %v294
        %v438 = vpop.permute.xlu0 %437
        %441 = vset.pattern.permute.xlu0 0
        %442 = vperm.xlu0 %441, %v295
        %v443 = vpop.permute.xlu0 %442
        %446 = vset.pattern.permute.xlu0 0
        %447 = vperm.xlu0 %446, %v296
        %v448 = vpop.permute.xlu0 %447
        %451 = vset.pattern.permute.xlu0 0
        %452 = vperm.xlu0 %451, %v297
        %v453 = vpop.permute.xlu0 %452
        %456 = vset.pattern.permute.xlu0 0
        %457 = vperm.xlu0 %456, %v298
        %v458 = vpop.permute.xlu0 %457
        %461 = vset.pattern.permute.xlu0 0
        %462 = vperm.xlu0 %461, %v299
        %v463 = vpop.permute.xlu0 %462
        %466 = vset.pattern.permute.xlu0 0
        %467 = vperm.xlu0 %466, %v300
        %v468 = vpop.permute.xlu0 %467
        %471 = vset.pattern.permute.xlu0 0
        %472 = vperm.xlu0 %471, %v301
        %v473 = vpop.permute.xlu0 %472
        %476 = vset.pattern.permute.xlu0 0
        %477 = vperm.xlu0 %476, %v302
        %v478 = vpop.permute.xlu0 %477
        %481 = vset.pattern.permute.xlu0 0
        %482 = vperm.xlu0 %481, %v303
        %v483 = vpop.permute.xlu0 %482
        %486 = vset.pattern.permute.xlu0 0
        %487 = vperm.xlu0 %486, %v304
        %v488 = vpop.permute.xlu0 %487
        %491 = vset.pattern.permute.xlu0 0
        %492 = vperm.xlu0 %491, %v305
        %v493 = vpop.permute.xlu0 %492
        %496 = vset.pattern.permute.xlu0 0
        %497 = vperm.xlu0 %496, %v306
        %v498 = vpop.permute.xlu0 %497
        %501 = vset.pattern.permute.xlu0 0
        %502 = vperm.xlu0 %501, %v307
        %v503 = vpop.permute.xlu0 %502
        %506 = vset.pattern.permute.xlu0 0
        %507 = vperm.xlu0 %506, %v308
        %v508 = vpop.permute.xlu0 %507
        %511 = vset.pattern.permute.xlu0 0
        %512 = vperm.xlu0 %511, %v309
        %v513 = vpop.permute.xlu0 %512
        %516 = vset.pattern.permute.xlu0 0
        %517 = vperm.xlu0 %516, %v310
        %v518 = vpop.permute.xlu0 %517
        %521 = vset.pattern.permute.xlu0 0
        %522 = vperm.xlu0 %521, %v311
        %v523 = vpop.permute.xlu0 %522
        %526 = vset.pattern.permute.xlu0 0
        %527 = vperm.xlu0 %526, %v312
        %v528 = vpop.permute.xlu0 %527
        %531 = vset.pattern.permute.xlu0 0
        %532 = vperm.xlu0 %531, %v313
        %v533 = vpop.permute.xlu0 %532
        %536 = vset.pattern.permute.xlu0 0
        %537 = vperm.xlu0 %536, %v314
        %v538 = vpop.permute.xlu0 %537
        %541 = vset.pattern.permute.xlu0 0
        %542 = vperm.xlu0 %541, %v315
        %v543 = vpop.permute.xlu0 %542
        %546 = vset.pattern.permute.xlu0 0
        %547 = vperm.xlu0 %546, %v316
        %v548 = vpop.permute.xlu0 %547
        %551 = vset.pattern.permute.xlu0 0
        %552 = vperm.xlu0 %551, %v317
        %v553 = vpop.permute.xlu0 %552
        %556 = vset.pattern.permute.xlu0 0
        %557 = vperm.xlu0 %556, %v318
        %v558 = vpop.permute.xlu0 %557
        %561 = vset.pattern.permute.xlu0 0
        %562 = vperm.xlu0 %561, %v319
        %v563 = vpop.permute.xlu0 %562
        %566 = vset.pattern.permute.xlu0 0
        %567 = vperm.xlu0 %566, %v320
        %v568 = vpop.permute.xlu0 %567
        %571 = vset.pattern.permute.xlu0 0
        %572 = vperm.xlu0 %571, %v321
        %v573 = vpop.permute.xlu0 %572
        %576 = vset.pattern.permute.xlu0 0
        %577 = vperm.xlu0 %576, %v322
        %v578 = vpop.permute.xlu0 %577
        %581 = vset.pattern.permute.xlu0 0
        %582 = vperm.xlu0 %581, %v323
        %v583 = vpop.permute.xlu0 %582
        %586 = vset.pattern.permute.xlu0 0
        %587 = vperm.xlu0 %586, %v324
        %v588 = vpop.permute.xlu0 %587
        %591 = vset.pattern.permute.xlu0 0
        %592 = vperm.xlu0 %591, %v325
        %v593 = vpop.permute.xlu0 %592
        %596 = vset.pattern.permute.xlu0 0
        %597 = vperm.xlu0 %596, %v326
        %v598 = vpop.permute.xlu0 %597
        %601 = vset.pattern.permute.xlu0 0
        %602 = vperm.xlu0 %601, %v327
        %v603 = vpop.permute.xlu0 %602
        %606 = vset.pattern.permute.xlu0 0
        %607 = vperm.xlu0 %606, %v328
        %v608 = vpop.permute.xlu0 %607
        %611 = vset.pattern.permute.xlu0 0
        %612 = vperm.xlu0 %611, %v329
        %v613 = vpop.permute.xlu0 %612
        %616 = vset.pattern.permute.xlu0 0
        %617 = vperm.xlu0 %616, %v330
        %v618 = vpop.permute.xlu0 %617
        %621 = vset.pattern.permute.xlu0 0
        %622 = vperm.xlu0 %621, %v331
        %v623 = vpop.permute.xlu0 %622
        %626 = vset.pattern.permute.xlu0 0
        %627 = vperm.xlu0 %626, %v332
        %v628 = vpop.permute.xlu0 %627
        %v678 = vunpack.c.l.b16 %v221
        %v679 = vunpack.c.l.b16 %v222
        %v680 = vunpack.c.l.b16 %v223
        %v681 = vunpack.c.l.b16 %v224
        %v682 = vunpack.c.l.b16 %v225
        %v683 = vunpack.c.l.b16 %v226
        %v684 = vunpack.c.l.b16 %v227
        %v685 = vunpack.c.l.b16 %v228
        %v686 = vunpack.c.l.b16 %v229
        %v687 = vunpack.c.l.b16 %v230
        %v688 = vunpack.c.l.b16 %v231
        %v689 = vunpack.c.l.b16 %v232
        %v690 = vunpack.c.l.b16 %v233
        %v691 = vunpack.c.l.b16 %v234
        %v692 = vunpack.c.l.b16 %v235
        %v693 = vunpack.c.l.b16 %v236
        %v694 = vunpack.c.l.b16 %v237
        %v695 = vunpack.c.l.b16 %v238
        %v696 = vunpack.c.l.b16 %v239
        %v697 = vunpack.c.l.b16 %v240
        %v698 = vunpack.c.l.b16 %v241
        %v699 = vunpack.c.l.b16 %v242
        %v700 = vunpack.c.l.b16 %v243
        %v701 = vunpack.c.l.b16 %v244
        %v702 = vunpack.c.l.b16 %v245
        %v703 = vunpack.c.l.b16 %v246
        %v704 = vunpack.c.l.b16 %v247
        %v705 = vunpack.c.l.b16 %v248
        %v706 = vunpack.c.l.b16 %v249
        %v707 = vunpack.c.l.b16 %v250
        %v708 = vunpack.c.l.b16 %v251
        %v709 = vunpack.c.l.b16 %v252
        %v710 = vunpack.c.l.b16 %v253
        %v711 = vunpack.c.l.b16 %v254
        %v712 = vunpack.c.l.b16 %v255
        %v713 = vunpack.c.l.b16 %v256
        %v714 = vunpack.c.l.b16 %v257
        %v715 = vunpack.c.l.b16 %v258
        %v716 = vunpack.c.l.b16 %v259
        %v717 = vunpack.c.l.b16 %v260
        %v718 = vunpack.c.l.b16 %v261
        %v719 = vunpack.c.l.b16 %v262
        %v720 = vunpack.c.l.b16 %v263
        %v721 = vunpack.c.l.b16 %v264
        %v722 = vunpack.c.l.b16 %v265
        %v723 = vunpack.c.l.b16 %v266
        %v724 = vunpack.c.l.b16 %v267
        %v725 = vunpack.c.l.b16 %v268
        %v726 = vpack.c.b16 %v679, %v678
        %v727 = vpack.c.b16 %v681, %v680
        %v728 = vpack.c.b16 %v683, %v682
        %v729 = vpack.c.b16 %v685, %v684
        %v730 = vpack.c.b16 %v687, %v686
        %v731 = vpack.c.b16 %v689, %v688
        %v732 = vpack.c.b16 %v691, %v690
        %v733 = vpack.c.b16 %v693, %v692
        %v734 = vpack.c.b16 %v695, %v694
        %v735 = vpack.c.b16 %v697, %v696
        %v736 = vpack.c.b16 %v699, %v698
        %v737 = vpack.c.b16 %v701, %v700
        %v738 = vpack.c.b16 %v703, %v702
        %v739 = vpack.c.b16 %v705, %v704
        %v740 = vpack.c.b16 %v707, %v706
        %v741 = vpack.c.b16 %v709, %v708
        %v742 = vpack.c.b16 %v711, %v710
        %v743 = vpack.c.b16 %v713, %v712
        %v744 = vpack.c.b16 %v715, %v714
        %v745 = vpack.c.b16 %v717, %v716
        %v746 = vpack.c.b16 %v719, %v718
        %v747 = vpack.c.b16 %v721, %v720
        %v748 = vpack.c.b16 %v723, %v722
        %v749 = vpack.c.b16 %v725, %v724
        %774 = vmatprep.subr.bf16.mxu0 0
        %775 = vmatpush1.bf16.msra.mxu0 %v389
        %776 = vmatprep.subr.bf16.mxu0 0
        %777 = vmatpush1.bf16.msra.mxu0 %v388
        %778 = vmatprep.subr.bf16.mxu0 0
        %779 = vmatpush1.bf16.msra.mxu0 %v387
        %780 = vmatprep.subr.bf16.mxu0 0
        %781 = vmatpush1.bf16.msra.mxu0 %v386
        %782 = vmatprep.subr.bf16.mxu0 0
        %783 = vmatpush1.bf16.msra.mxu0 %v385
        %784 = vmatprep.subr.bf16.mxu0 0
        %785 = vmatpush1.bf16.msra.mxu0 %v384
        %786 = vmatprep.subr.bf16.mxu0 0
        %787 = vmatpush1.bf16.msra.mxu0 %v383
        %788 = vmatprep.subr.bf16.mxu0 0
        %789 = vmatpush1.bf16.msra.mxu0 %v382
        %790 = vmatprep.subr.bf16.mxu0 0
        %791 = vmatpush2.bf16.msra.mxu0 0
        %792 = vmatprep.subr.bf16.mxu0 0
        %793 = vmatpush2.bf16.msra.mxu0 0
        %794 = vmatprep.subr.bf16.mxu0 0
        %795 = vmatpush2.bf16.msra.mxu0 0
        %796 = vmatprep.subr.bf16.mxu0 0
        %797 = vmatpush2.bf16.msra.mxu0 0
        %798 = vmatprep.subr.bf16.mxu0 0
        %799 = vmatpush2.bf16.msra.mxu0 0
        %800 = vmatprep.subr.bf16.mxu0 0
        %801 = vmatpush2.bf16.msra.mxu0 0
        %802 = vmatprep.subr.bf16.mxu0 0
        %803 = vmatpush2.bf16.msra.mxu0 0
        %804 = vmatprep.subr.bf16.mxu0 0
        %805 = vmatpush2.bf16.msra.mxu0 0
        %806 = vmatprep.mubr.bf16.mxu0 0
        %807 = vmatmul.mubr.bf16.gmra.mxu0 %v726
        %v808 = vpop.f32.mrf.mxu0
        %v809 = vadd.f32 %v393, %v808
        %v810 = vpop.f32.mrf.mxu0
        %v811 = vpop.f32.mrf.mxu0
        %v812 = vadd.f32 %v398, %v811
        %v813 = vpop.f32.mrf.mxu0
        %814 = vmatprep.mubr.bf16.mxu0 0
        %815 = vmatmul.mubr.bf16.gmra.mxu0 %v727
        %v816 = vpop.f32.mrf.mxu0
        %v817 = vadd.f32 %v403, %v816
        %v818 = vpop.f32.mrf.mxu0
        %v819 = vpop.f32.mrf.mxu0
        %v820 = vadd.f32 %v408, %v819
        %v821 = vpop.f32.mrf.mxu0
        %822 = vmatprep.mubr.bf16.mxu0 0
        %823 = vmatmul.mubr.bf16.gmra.mxu0 %v728
        %v824 = vpop.f32.mrf.mxu0
        %v825 = vadd.f32 %v413, %v824
        %v826 = vpop.f32.mrf.mxu0
        %v827 = vpop.f32.mrf.mxu0
        %v828 = vadd.f32 %v418, %v827
        %v829 = vpop.f32.mrf.mxu0
        %830 = vmatprep.mubr.bf16.mxu0 0
        %831 = vmatmul.mubr.bf16.gmra.mxu0 %v729
        %v832 = vpop.f32.mrf.mxu0
        %v833 = vadd.f32 %v423, %v832
        %v834 = vpop.f32.mrf.mxu0
        %v835 = vpop.f32.mrf.mxu0
        %v836 = vadd.f32 %v428, %v835
        %v837 = vpop.f32.mrf.mxu0
        %838 = vmatprep.mubr.bf16.mxu0 0
        %839 = vmatmul.mubr.bf16.gmra.mxu0 %v730
        %v840 = vpop.f32.mrf.mxu0
        %v841 = vadd.f32 %v433, %v840
        %v842 = vpop.f32.mrf.mxu0
        %v843 = vpop.f32.mrf.mxu0
        %v844 = vadd.f32 %v438, %v843
        %v845 = vpop.f32.mrf.mxu0
        %846 = vmatprep.mubr.bf16.mxu0 0
        %847 = vmatmul.mubr.bf16.gmra.mxu0 %v731
        %v848 = vpop.f32.mrf.mxu0
        %v849 = vadd.f32 %v443, %v848
        %v850 = vpop.f32.mrf.mxu0
        %v851 = vpop.f32.mrf.mxu0
        %v852 = vadd.f32 %v448, %v851
        %v853 = vpop.f32.mrf.mxu0
        %854 = vmatprep.mubr.bf16.mxu0 0
        %855 = vmatmul.mubr.bf16.gmra.mxu0 %v732
        %v856 = vpop.f32.mrf.mxu0
        %v857 = vadd.f32 %v453, %v856
        %v858 = vpop.f32.mrf.mxu0
        %v859 = vpop.f32.mrf.mxu0
        %v860 = vadd.f32 %v458, %v859
        %v861 = vpop.f32.mrf.mxu0
        %862 = vmatprep.mubr.bf16.mxu0 0
        %863 = vmatmul.mubr.bf16.gmra.mxu0 %v733
        %v864 = vpop.f32.mrf.mxu0
        %v865 = vadd.f32 %v463, %v864
        %v866 = vpop.f32.mrf.mxu0
        %v867 = vpop.f32.mrf.mxu0
        %v868 = vadd.f32 %v468, %v867
        %v869 = vpop.f32.mrf.mxu0
        %870 = vmatprep.mubr.bf16.mxu0 0
        %871 = vmatmul.mubr.bf16.gmra.mxu0 %v734
        %v872 = vpop.f32.mrf.mxu0
        %v873 = vadd.f32 %v473, %v872
        %v874 = vpop.f32.mrf.mxu0
        %v875 = vpop.f32.mrf.mxu0
        %v876 = vadd.f32 %v478, %v875
        %v877 = vpop.f32.mrf.mxu0
        %878 = vmatprep.mubr.bf16.mxu0 0
        %879 = vmatmul.mubr.bf16.gmra.mxu0 %v735
        %v880 = vpop.f32.mrf.mxu0
        %v881 = vadd.f32 %v483, %v880
        %v882 = vpop.f32.mrf.mxu0
        %v883 = vpop.f32.mrf.mxu0
        %v884 = vadd.f32 %v488, %v883
        %v885 = vpop.f32.mrf.mxu0
        %886 = vmatprep.mubr.bf16.mxu0 0
        %887 = vmatmul.mubr.bf16.gmra.mxu0 %v736
        %v888 = vpop.f32.mrf.mxu0
        %v889 = vadd.f32 %v493, %v888
        %v890 = vpop.f32.mrf.mxu0
        %v891 = vpop.f32.mrf.mxu0
        %v892 = vadd.f32 %v498, %v891
        %v893 = vpop.f32.mrf.mxu0
        %894 = vmatprep.mubr.bf16.mxu0 0
        %895 = vmatmul.mubr.bf16.gmra.mxu0 %v737
        %v896 = vpop.f32.mrf.mxu0
        %v897 = vadd.f32 %v503, %v896
        %v898 = vpop.f32.mrf.mxu0
        %v899 = vpop.f32.mrf.mxu0
        %v900 = vadd.f32 %v508, %v899
        %v901 = vpop.f32.mrf.mxu0
        %902 = vmatprep.mubr.bf16.mxu0 0
        %903 = vmatmul.mubr.bf16.gmra.mxu0 %v738
        %v904 = vpop.f32.mrf.mxu0
        %v905 = vadd.f32 %v513, %v904
        %v906 = vpop.f32.mrf.mxu0
        %v907 = vpop.f32.mrf.mxu0
        %v908 = vadd.f32 %v518, %v907
        %v909 = vpop.f32.mrf.mxu0
        %910 = vmatprep.mubr.bf16.mxu0 0
        %911 = vmatmul.mubr.bf16.gmra.mxu0 %v739
        %v912 = vpop.f32.mrf.mxu0
        %v913 = vadd.f32 %v523, %v912
        %v914 = vpop.f32.mrf.mxu0
        %v915 = vpop.f32.mrf.mxu0
        %v916 = vadd.f32 %v528, %v915
        %v917 = vpop.f32.mrf.mxu0
        %918 = vmatprep.mubr.bf16.mxu0 0
        %919 = vmatmul.mubr.bf16.gmra.mxu0 %v740
        %v920 = vpop.f32.mrf.mxu0
        %v921 = vadd.f32 %v533, %v920
        %v922 = vpop.f32.mrf.mxu0
        %v923 = vpop.f32.mrf.mxu0
        %v924 = vadd.f32 %v538, %v923
        %v925 = vpop.f32.mrf.mxu0
        %926 = vmatprep.mubr.bf16.mxu0 0
        %927 = vmatmul.mubr.bf16.gmra.mxu0 %v741
        %v928 = vpop.f32.mrf.mxu0
        %v929 = vadd.f32 %v543, %v928
        %v930 = vpop.f32.mrf.mxu0
        %v931 = vpop.f32.mrf.mxu0
        %v932 = vadd.f32 %v548, %v931
        %v933 = vpop.f32.mrf.mxu0
        %934 = vmatprep.mubr.bf16.mxu0 0
        %935 = vmatmul.mubr.bf16.gmra.mxu0 %v742
        %v936 = vpop.f32.mrf.mxu0
        %v937 = vadd.f32 %v553, %v936
        %v938 = vpop.f32.mrf.mxu0
        %v939 = vpop.f32.mrf.mxu0
        %v940 = vadd.f32 %v558, %v939
        %v941 = vpop.f32.mrf.mxu0
        %942 = vmatprep.mubr.bf16.mxu0 0
        %943 = vmatmul.mubr.bf16.gmra.mxu0 %v743
        %v944 = vpop.f32.mrf.mxu0
        %v945 = vadd.f32 %v563, %v944
        %v946 = vpop.f32.mrf.mxu0
        %v947 = vpop.f32.mrf.mxu0
        %v948 = vadd.f32 %v568, %v947
        %v949 = vpop.f32.mrf.mxu0
        %950 = vmatprep.mubr.bf16.mxu0 0
        %951 = vmatmul.mubr.bf16.gmra.mxu0 %v744
        %v952 = vpop.f32.mrf.mxu0
        %v953 = vadd.f32 %v573, %v952
        %v954 = vpop.f32.mrf.mxu0
        %v955 = vpop.f32.mrf.mxu0
        %v956 = vadd.f32 %v578, %v955
        %v957 = vpop.f32.mrf.mxu0
        %958 = vmatprep.mubr.bf16.mxu0 0
        %959 = vmatmul.mubr.bf16.gmra.mxu0 %v745
        %v960 = vpop.f32.mrf.mxu0
        %v961 = vadd.f32 %v583, %v960
        %v962 = vpop.f32.mrf.mxu0
        %v963 = vpop.f32.mrf.mxu0
        %v964 = vadd.f32 %v588, %v963
        %v965 = vpop.f32.mrf.mxu0
        %966 = vmatprep.mubr.bf16.mxu0 0
        %967 = vmatmul.mubr.bf16.gmra.mxu0 %v746
        %v968 = vpop.f32.mrf.mxu0
        %v969 = vadd.f32 %v593, %v968
        %v970 = vpop.f32.mrf.mxu0
        %v971 = vpop.f32.mrf.mxu0
        %v972 = vadd.f32 %v598, %v971
        %v973 = vpop.f32.mrf.mxu0
        %974 = vmatprep.mubr.bf16.mxu0 0
        %975 = vmatmul.mubr.bf16.gmra.mxu0 %v747
        %v976 = vpop.f32.mrf.mxu0
        %v977 = vadd.f32 %v603, %v976
        %v978 = vpop.f32.mrf.mxu0
        %v979 = vpop.f32.mrf.mxu0
        %v980 = vadd.f32 %v608, %v979
        %v981 = vpop.f32.mrf.mxu0
        %982 = vmatprep.mubr.bf16.mxu0 0
        %983 = vmatmul.mubr.bf16.gmra.mxu0 %v748
        %v984 = vpop.f32.mrf.mxu0
        %v985 = vadd.f32 %v613, %v984
        %v986 = vpop.f32.mrf.mxu0
        %v987 = vpop.f32.mrf.mxu0
        %v988 = vadd.f32 %v618, %v987
        %v989 = vpop.f32.mrf.mxu0
        %990 = vmatprep.mubr.bf16.mxu0 0
        %991 = vmatmul.mubr.bf16.gmra.mxu0 %v749
        %v992 = vpop.f32.mrf.mxu0
        %v993 = vadd.f32 %v623, %v992
        %v994 = vpop.f32.mrf.mxu0
        %v995 = vpop.f32.mrf.mxu0
        %v996 = vadd.f32 %v628, %v995
        %v997 = vpop.f32.mrf.mxu0
        %998 = vdwg.mxu0
        %999 = vxpose.xlu0.b32.start [1/16] %v809, 128
        %1000 = vxpose.xlu0.b32.cont [2/16] 0.0, 128
        %1001 = vxpose.xlu0.b32.cont [3/16] 0.0, 128
        %1002 = vxpose.xlu0.b32.cont [4/16] 0.0, 128
        %1003 = vxpose.xlu0.b32.cont [5/16] 0.0, 128
        %1004 = vxpose.xlu0.b32.cont [6/16] 0.0, 128
        %1005 = vxpose.xlu0.b32.cont [7/16] 0.0, 128
        %1006 = vxpose.xlu0.b32.cont [8/16] 0.0, 128
        %1007 = vxpose.xlu0.b32.cont [9/16] 0.0, 128
        %1008 = vxpose.xlu0.b32.cont [10/16] 0.0, 128
        %1009 = vxpose.xlu0.b32.cont [11/16] 0.0, 128
        %1010 = vxpose.xlu0.b32.cont [12/16] 0.0, 128
        %1011 = vxpose.xlu0.b32.cont [13/16] 0.0, 128
        %1012 = vxpose.xlu0.b32.cont [14/16] 0.0, 128
        %1013 = vxpose.xlu0.b32.cont [15/16] 0.0, 128
        %1014 = vxpose.xlu0.b32.end [16/16] 0.0, 128
        %v1015 = vpop.trf.xlu0
        %v1016 = vpop.trf.xlu0
        %v1017 = vpop.trf.xlu0
        %v1018 = vpop.trf.xlu0
        %v1019 = vpop.trf.xlu0
        %v1020 = vpop.trf.xlu0
        %v1021 = vpop.trf.xlu0
        %v1022 = vpop.trf.xlu0
        %v1023 = vpop.trf.xlu0
        %v1024 = vpop.trf.xlu0
        %v1025 = vpop.trf.xlu0
        %v1026 = vpop.trf.xlu0
        %v1027 = vpop.trf.xlu0
        %v1028 = vpop.trf.xlu0
        %v1029 = vpop.trf.xlu0
        %v1030 = vpop.trf.xlu0
        %1031 = vxpose.xlu0.b32.start [1/16] %v812, 128
        %1032 = vxpose.xlu0.b32.cont [2/16] 0.0, 128
        %1033 = vxpose.xlu0.b32.cont [3/16] 0.0, 128
        %1034 = vxpose.xlu0.b32.cont [4/16] 0.0, 128
        %1035 = vxpose.xlu0.b32.cont [5/16] 0.0, 128
        %1036 = vxpose.xlu0.b32.cont [6/16] 0.0, 128
        %1037 = vxpose.xlu0.b32.cont [7/16] 0.0, 128
        %1038 = vxpose.xlu0.b32.cont [8/16] 0.0, 128
        %1039 = vxpose.xlu0.b32.cont [9/16] 0.0, 128
        %1040 = vxpose.xlu0.b32.cont [10/16] 0.0, 128
        %1041 = vxpose.xlu0.b32.cont [11/16] 0.0, 128
        %1042 = vxpose.xlu0.b32.cont [12/16] 0.0, 128
        %1043 = vxpose.xlu0.b32.cont [13/16] 0.0, 128
        %1044 = vxpose.xlu0.b32.cont [14/16] 0.0, 128
        %1045 = vxpose.xlu0.b32.cont [15/16] 0.0, 128
        %1046 = vxpose.xlu0.b32.end [16/16] 0.0, 128
        %v1047 = vpop.trf.xlu0
        %v1048 = vpop.trf.xlu0
        %v1049 = vpop.trf.xlu0
        %v1050 = vpop.trf.xlu0
        %v1051 = vpop.trf.xlu0
        %v1052 = vpop.trf.xlu0
        %v1053 = vpop.trf.xlu0
        %v1054 = vpop.trf.xlu0
        %v1055 = vpop.trf.xlu0
        %v1056 = vpop.trf.xlu0
        %v1057 = vpop.trf.xlu0
        %v1058 = vpop.trf.xlu0
        %v1059 = vpop.trf.xlu0
        %v1060 = vpop.trf.xlu0
        %v1061 = vpop.trf.xlu0
        %v1062 = vpop.trf.xlu0
        %1063 = vxpose.xlu0.b32.start [1/16] %v817, 128
        %1064 = vxpose.xlu0.b32.cont [2/16] 0.0, 128
        %1065 = vxpose.xlu0.b32.cont [3/16] 0.0, 128
        %1066 = vxpose.xlu0.b32.cont [4/16] 0.0, 128
        %1067 = vxpose.xlu0.b32.cont [5/16] 0.0, 128
        %1068 = vxpose.xlu0.b32.cont [6/16] 0.0, 128
        %1069 = vxpose.xlu0.b32.cont [7/16] 0.0, 128
        %1070 = vxpose.xlu0.b32.cont [8/16] 0.0, 128
        %1071 = vxpose.xlu0.b32.cont [9/16] 0.0, 128
        %1072 = vxpose.xlu0.b32.cont [10/16] 0.0, 128
        %1073 = vxpose.xlu0.b32.cont [11/16] 0.0, 128
        %1074 = vxpose.xlu0.b32.cont [12/16] 0.0, 128
        %1075 = vxpose.xlu0.b32.cont [13/16] 0.0, 128
        %1076 = vxpose.xlu0.b32.cont [14/16] 0.0, 128
        %1077 = vxpose.xlu0.b32.cont [15/16] 0.0, 128
        %1078 = vxpose.xlu0.b32.end [16/16] 0.0, 128
        %v1079 = vpop.trf.xlu0
        %v1080 = vpop.trf.xlu0
        %v1081 = vpop.trf.xlu0
        %v1082 = vpop.trf.xlu0
        %v1083 = vpop.trf.xlu0
        %v1084 = vpop.trf.xlu0
        %v1085 = vpop.trf.xlu0
        %v1086 = vpop.trf.xlu0
        %v1087 = vpop.trf.xlu0
        %v1088 = vpop.trf.xlu0
        %v1089 = vpop.trf.xlu0
        %v1090 = vpop.trf.xlu0
        %v1091 = vpop.trf.xlu0
        %v1092 = vpop.trf.xlu0
        %v1093 = vpop.trf.xlu0
        %v1094 = vpop.trf.xlu0
        %1095 = vxpose.xlu0.b32.start [1/16] %v820, 128
        %1096 = vxpose.xlu0.b32.cont [2/16] 0.0, 128
        %1097 = vxpose.xlu0.b32.cont [3/16] 0.0, 128
        %1098 = vxpose.xlu0.b32.cont [4/16] 0.0, 128
        %1099 = vxpose.xlu0.b32.cont [5/16] 0.0, 128
        %1100 = vxpose.xlu0.b32.cont [6/16] 0.0, 128
        %1101 = vxpose.xlu0.b32.cont [7/16] 0.0, 128
        %1102 = vxpose.xlu0.b32.cont [8/16] 0.0, 128
        %1103 = vxpose.xlu0.b32.cont [9/16] 0.0, 128
        %1104 = vxpose.xlu0.b32.cont [10/16] 0.0, 128
        %1105 = vxpose.xlu0.b32.cont [11/16] 0.0, 128
        %1106 = vxpose.xlu0.b32.cont [12/16] 0.0, 128
        %1107 = vxpose.xlu0.b32.cont [13/16] 0.0, 128
        %1108 = vxpose.xlu0.b32.cont [14/16] 0.0, 128
        %1109 = vxpose.xlu0.b32.cont [15/16] 0.0, 128
        %1110 = vxpose.xlu0.b32.end [16/16] 0.0, 128
        %v1111 = vpop.trf.xlu0
        %v1112 = vpop.trf.xlu0
        %v1113 = vpop.trf.xlu0
        %v1114 = vpop.trf.xlu0
        %v1115 = vpop.trf.xlu0
        %v1116 = vpop.trf.xlu0
        %v1117 = vpop.trf.xlu0
        %v1118 = vpop.trf.xlu0
        %v1119 = vpop.trf.xlu0
        %v1120 = vpop.trf.xlu0
        %v1121 = vpop.trf.xlu0
        %v1122 = vpop.trf.xlu0
        %v1123 = vpop.trf.xlu0
        %v1124 = vpop.trf.xlu0
        %v1125 = vpop.trf.xlu0
        %v1126 = vpop.trf.xlu0
        %1127 = vxpose.xlu0.b32.start [1/16] %v825, 128
        %1128 = vxpose.xlu0.b32.cont [2/16] 0.0, 128
        %1129 = vxpose.xlu0.b32.cont [3/16] 0.0, 128
        %1130 = vxpose.xlu0.b32.cont [4/16] 0.0, 128
        %1131 = vxpose.xlu0.b32.cont [5/16] 0.0, 128
        %1132 = vxpose.xlu0.b32.cont [6/16] 0.0, 128
        %1133 = vxpose.xlu0.b32.cont [7/16] 0.0, 128
        %1134 = vxpose.xlu0.b32.cont [8/16] 0.0, 128
        %1135 = vxpose.xlu0.b32.cont [9/16] 0.0, 128
        %1136 = vxpose.xlu0.b32.cont [10/16] 0.0, 128
        %1137 = vxpose.xlu0.b32.cont [11/16] 0.0, 128
        %1138 = vxpose.xlu0.b32.cont [12/16] 0.0, 128
        %1139 = vxpose.xlu0.b32.cont [13/16] 0.0, 128
        %1140 = vxpose.xlu0.b32.cont [14/16] 0.0, 128
        %1141 = vxpose.xlu0.b32.cont [15/16] 0.0, 128
        %1142 = vxpose.xlu0.b32.end [16/16] 0.0, 128
        %v1143 = vpop.trf.xlu0
        %v1144 = vpop.trf.xlu0
        %v1145 = vpop.trf.xlu0
        %v1146 = vpop.trf.xlu0
        %v1147 = vpop.trf.xlu0
        %v1148 = vpop.trf.xlu0
        %v1149 = vpop.trf.xlu0
        %v1150 = vpop.trf.xlu0
        %v1151 = vpop.trf.xlu0
        %v1152 = vpop.trf.xlu0
        %v1153 = vpop.trf.xlu0
        %v1154 = vpop.trf.xlu0
        %v1155 = vpop.trf.xlu0
        %v1156 = vpop.trf.xlu0
        %v1157 = vpop.trf.xlu0
        %v1158 = vpop.trf.xlu0
        %1159 = vxpose.xlu0.b32.start [1/16] %v828, 128
        %1160 = vxpose.xlu0.b32.cont [2/16] 0.0, 128
        %1161 = vxpose.xlu0.b32.cont [3/16] 0.0, 128
        %1162 = vxpose.xlu0.b32.cont [4/16] 0.0, 128
        %1163 = vxpose.xlu0.b32.cont [5/16] 0.0, 128
        %1164 = vxpose.xlu0.b32.cont [6/16] 0.0, 128
        %1165 = vxpose.xlu0.b32.cont [7/16] 0.0, 128
        %1166 = vxpose.xlu0.b32.cont [8/16] 0.0, 128
        %1167 = vxpose.xlu0.b32.cont [9/16] 0.0, 128
        %1168 = vxpose.xlu0.b32.cont [10/16] 0.0, 128
        %1169 = vxpose.xlu0.b32.cont [11/16] 0.0, 128
        %1170 = vxpose.xlu0.b32.cont [12/16] 0.0, 128
        %1171 = vxpose.xlu0.b32.cont [13/16] 0.0, 128
        %1172 = vxpose.xlu0.b32.cont [14/16] 0.0, 128
        %1173 = vxpose.xlu0.b32.cont [15/16] 0.0, 128
        %1174 = vxpose.xlu0.b32.end [16/16] 0.0, 128
        %v1175 = vpop.trf.xlu0
        %v1176 = vpop.trf.xlu0
        %v1177 = vpop.trf.xlu0
        %v1178 = vpop.trf.xlu0
        %v1179 = vpop.trf.xlu0
        %v1180 = vpop.trf.xlu0
        %v1181 = vpop.trf.xlu0
        %v1182 = vpop.trf.xlu0
        %v1183 = vpop.trf.xlu0
        %v1184 = vpop.trf.xlu0
        %v1185 = vpop.trf.xlu0
        %v1186 = vpop.trf.xlu0
        %v1187 = vpop.trf.xlu0
        %v1188 = vpop.trf.xlu0
        %v1189 = vpop.trf.xlu0
        %v1190 = vpop.trf.xlu0
        %1191 = vxpose.xlu0.b32.start [1/16] %v833, 128
        %1192 = vxpose.xlu0.b32.cont [2/16] 0.0, 128
        %1193 = vxpose.xlu0.b32.cont [3/16] 0.0, 128
        %1194 = vxpose.xlu0.b32.cont [4/16] 0.0, 128
        %1195 = vxpose.xlu0.b32.cont [5/16] 0.0, 128
        %1196 = vxpose.xlu0.b32.cont [6/16] 0.0, 128
        %1197 = vxpose.xlu0.b32.cont [7/16] 0.0, 128
        %1198 = vxpose.xlu0.b32.cont [8/16] 0.0, 128
        %1199 = vxpose.xlu0.b32.cont [9/16] 0.0, 128
        %1200 = vxpose.xlu0.b32.cont [10/16] 0.0, 128
        %1201 = vxpose.xlu0.b32.cont [11/16] 0.0, 128
        %1202 = vxpose.xlu0.b32.cont [12/16] 0.0, 128
        %1203 = vxpose.xlu0.b32.cont [13/16] 0.0, 128
        %1204 = vxpose.xlu0.b32.cont [14/16] 0.0, 128
        %1205 = vxpose.xlu0.b32.cont [15/16] 0.0, 128
        %1206 = vxpose.xlu0.b32.end [16/16] 0.0, 128
        %v1207 = vpop.trf.xlu0
        %v1208 = vpop.trf.xlu0
        %v1209 = vpop.trf.xlu0
        %v1210 = vpop.trf.xlu0
        %v1211 = vpop.trf.xlu0
        %v1212 = vpop.trf.xlu0
        %v1213 = vpop.trf.xlu0
        %v1214 = vpop.trf.xlu0
        %v1215 = vpop.trf.xlu0
        %v1216 = vpop.trf.xlu0
        %v1217 = vpop.trf.xlu0
        %v1218 = vpop.trf.xlu0
        %v1219 = vpop.trf.xlu0
        %v1220 = vpop.trf.xlu0
        %v1221 = vpop.trf.xlu0
        %v1222 = vpop.trf.xlu0
        %1223 = vxpose.xlu0.b32.start [1/16] %v836, 128
        %1224 = vxpose.xlu0.b32.cont [2/16] 0.0, 128
        %1225 = vxpose.xlu0.b32.cont [3/16] 0.0, 128
        %1226 = vxpose.xlu0.b32.cont [4/16] 0.0, 128
        %1227 = vxpose.xlu0.b32.cont [5/16] 0.0, 128
        %1228 = vxpose.xlu0.b32.cont [6/16] 0.0, 128
        %1229 = vxpose.xlu0.b32.cont [7/16] 0.0, 128
        %1230 = vxpose.xlu0.b32.cont [8/16] 0.0, 128
        %1231 = vxpose.xlu0.b32.cont [9/16] 0.0, 128
        %1232 = vxpose.xlu0.b32.cont [10/16] 0.0, 128
        %1233 = vxpose.xlu0.b32.cont [11/16] 0.0, 128
        %1234 = vxpose.xlu0.b32.cont [12/16] 0.0, 128
        %1235 = vxpose.xlu0.b32.cont [13/16] 0.0, 128
        %1236 = vxpose.xlu0.b32.cont [14/16] 0.0, 128
        %1237 = vxpose.xlu0.b32.cont [15/16] 0.0, 128
        %1238 = vxpose.xlu0.b32.end [16/16] 0.0, 128
        %v1239 = vpop.trf.xlu0
        %v1240 = vpop.trf.xlu0
        %v1241 = vpop.trf.xlu0
        %v1242 = vpop.trf.xlu0
        %v1243 = vpop.trf.xlu0
        %v1244 = vpop.trf.xlu0
        %v1245 = vpop.trf.xlu0
        %v1246 = vpop.trf.xlu0
        %v1247 = vpop.trf.xlu0
        %v1248 = vpop.trf.xlu0
        %v1249 = vpop.trf.xlu0
        %v1250 = vpop.trf.xlu0
        %v1251 = vpop.trf.xlu0
        %v1252 = vpop.trf.xlu0
        %v1253 = vpop.trf.xlu0
        %v1254 = vpop.trf.xlu0
        %1255 = vxpose.xlu0.b32.start [1/16] %v841, 128
        %1256 = vxpose.xlu0.b32.cont [2/16] 0.0, 128
        %1257 = vxpose.xlu0.b32.cont [3/16] 0.0, 128
        %1258 = vxpose.xlu0.b32.cont [4/16] 0.0, 128
        %1259 = vxpose.xlu0.b32.cont [5/16] 0.0, 128
        %1260 = vxpose.xlu0.b32.cont [6/16] 0.0, 128
        %1261 = vxpose.xlu0.b32.cont [7/16] 0.0, 128
        %1262 = vxpose.xlu0.b32.cont [8/16] 0.0, 128
        %1263 = vxpose.xlu0.b32.cont [9/16] 0.0, 128
        %1264 = vxpose.xlu0.b32.cont [10/16] 0.0, 128
        %1265 = vxpose.xlu0.b32.cont [11/16] 0.0, 128
        %1266 = vxpose.xlu0.b32.cont [12/16] 0.0, 128
        %1267 = vxpose.xlu0.b32.cont [13/16] 0.0, 128
        %1268 = vxpose.xlu0.b32.cont [14/16] 0.0, 128
        %1269 = vxpose.xlu0.b32.cont [15/16] 0.0, 128
        %1270 = vxpose.xlu0.b32.end [16/16] 0.0, 128
        %v1271 = vpop.trf.xlu0
        %v1272 = vpop.trf.xlu0
        %v1273 = vpop.trf.xlu0
        %v1274 = vpop.trf.xlu0
        %v1275 = vpop.trf.xlu0
        %v1276 = vpop.trf.xlu0
        %v1277 = vpop.trf.xlu0
        %v1278 = vpop.trf.xlu0
        %v1279 = vpop.trf.xlu0
        %v1280 = vpop.trf.xlu0
        %v1281 = vpop.trf.xlu0
        %v1282 = vpop.trf.xlu0
        %v1283 = vpop.trf.xlu0
        %v1284 = vpop.trf.xlu0
        %v1285 = vpop.trf.xlu0
        %v1286 = vpop.trf.xlu0
        %1287 = vxpose.xlu0.b32.start [1/16] %v844, 128
        %1288 = vxpose.xlu0.b32.cont [2/16] 0.0, 128
        %1289 = vxpose.xlu0.b32.cont [3/16] 0.0, 128
        %1290 = vxpose.xlu0.b32.cont [4/16] 0.0, 128
        %1291 = vxpose.xlu0.b32.cont [5/16] 0.0, 128
        %1292 = vxpose.xlu0.b32.cont [6/16] 0.0, 128
        %1293 = vxpose.xlu0.b32.cont [7/16] 0.0, 128
        %1294 = vxpose.xlu0.b32.cont [8/16] 0.0, 128
        %1295 = vxpose.xlu0.b32.cont [9/16] 0.0, 128
        %1296 = vxpose.xlu0.b32.cont [10/16] 0.0, 128
        %1297 = vxpose.xlu0.b32.cont [11/16] 0.0, 128
        %1298 = vxpose.xlu0.b32.cont [12/16] 0.0, 128
        %1299 = vxpose.xlu0.b32.cont [13/16] 0.0, 128
        %1300 = vxpose.xlu0.b32.cont [14/16] 0.0, 128
        %1301 = vxpose.xlu0.b32.cont [15/16] 0.0, 128
        %1302 = vxpose.xlu0.b32.end [16/16] 0.0, 128
        %v1303 = vpop.trf.xlu0
        %v1304 = vpop.trf.xlu0
        %v1305 = vpop.trf.xlu0
        %v1306 = vpop.trf.xlu0
        %v1307 = vpop.trf.xlu0
        %v1308 = vpop.trf.xlu0
        %v1309 = vpop.trf.xlu0
        %v1310 = vpop.trf.xlu0
        %v1311 = vpop.trf.xlu0
        %v1312 = vpop.trf.xlu0
        %v1313 = vpop.trf.xlu0
        %v1314 = vpop.trf.xlu0
        %v1315 = vpop.trf.xlu0
        %v1316 = vpop.trf.xlu0
        %v1317 = vpop.trf.xlu0
        %v1318 = vpop.trf.xlu0
        %1319 = vxpose.xlu0.b32.start [1/16] %v849, 128
        %1320 = vxpose.xlu0.b32.cont [2/16] 0.0, 128
        %1321 = vxpose.xlu0.b32.cont [3/16] 0.0, 128
        %1322 = vxpose.xlu0.b32.cont [4/16] 0.0, 128
        %1323 = vxpose.xlu0.b32.cont [5/16] 0.0, 128
        %1324 = vxpose.xlu0.b32.cont [6/16] 0.0, 128
        %1325 = vxpose.xlu0.b32.cont [7/16] 0.0, 128
        %1326 = vxpose.xlu0.b32.cont [8/16] 0.0, 128
        %1327 = vxpose.xlu0.b32.cont [9/16] 0.0, 128
        %1328 = vxpose.xlu0.b32.cont [10/16] 0.0, 128
        %1329 = vxpose.xlu0.b32.cont [11/16] 0.0, 128
        %1330 = vxpose.xlu0.b32.cont [12/16] 0.0, 128
        %1331 = vxpose.xlu0.b32.cont [13/16] 0.0, 128
        %1332 = vxpose.xlu0.b32.cont [14/16] 0.0, 128
        %1333 = vxpose.xlu0.b32.cont [15/16] 0.0, 128
        %1334 = vxpose.xlu0.b32.end [16/16] 0.0, 128
        %v1335 = vpop.trf.xlu0
        %v1336 = vpop.trf.xlu0
        %v1337 = vpop.trf.xlu0
        %v1338 = vpop.trf.xlu0
        %v1339 = vpop.trf.xlu0
        %v1340 = vpop.trf.xlu0
        %v1341 = vpop.trf.xlu0
        %v1342 = vpop.trf.xlu0
        %v1343 = vpop.trf.xlu0
        %v1344 = vpop.trf.xlu0
        %v1345 = vpop.trf.xlu0
        %v1346 = vpop.trf.xlu0
        %v1347 = vpop.trf.xlu0
        %v1348 = vpop.trf.xlu0
        %v1349 = vpop.trf.xlu0
        %v1350 = vpop.trf.xlu0
        %1351 = vxpose.xlu0.b32.start [1/16] %v852, 128
        %1352 = vxpose.xlu0.b32.cont [2/16] 0.0, 128
        %1353 = vxpose.xlu0.b32.cont [3/16] 0.0, 128
        %1354 = vxpose.xlu0.b32.cont [4/16] 0.0, 128
        %1355 = vxpose.xlu0.b32.cont [5/16] 0.0, 128
        %1356 = vxpose.xlu0.b32.cont [6/16] 0.0, 128
        %1357 = vxpose.xlu0.b32.cont [7/16] 0.0, 128
        %1358 = vxpose.xlu0.b32.cont [8/16] 0.0, 128
        %1359 = vxpose.xlu0.b32.cont [9/16] 0.0, 128
        %1360 = vxpose.xlu0.b32.cont [10/16] 0.0, 128
        %1361 = vxpose.xlu0.b32.cont [11/16] 0.0, 128
        %1362 = vxpose.xlu0.b32.cont [12/16] 0.0, 128
        %1363 = vxpose.xlu0.b32.cont [13/16] 0.0, 128
        %1364 = vxpose.xlu0.b32.cont [14/16] 0.0, 128
        %1365 = vxpose.xlu0.b32.cont [15/16] 0.0, 128
        %1366 = vxpose.xlu0.b32.end [16/16] 0.0, 128
        %v1367 = vpop.trf.xlu0
        %v1368 = vpop.trf.xlu0
        %v1369 = vpop.trf.xlu0
        %v1370 = vpop.trf.xlu0
        %v1371 = vpop.trf.xlu0
        %v1372 = vpop.trf.xlu0
        %v1373 = vpop.trf.xlu0
        %v1374 = vpop.trf.xlu0
        %v1375 = vpop.trf.xlu0
        %v1376 = vpop.trf.xlu0
        %v1377 = vpop.trf.xlu0
        %v1378 = vpop.trf.xlu0
        %v1379 = vpop.trf.xlu0
        %v1380 = vpop.trf.xlu0
        %v1381 = vpop.trf.xlu0
        %v1382 = vpop.trf.xlu0
        %1383 = vxpose.xlu0.b32.start [1/16] %v857, 128
        %1384 = vxpose.xlu0.b32.cont [2/16] 0.0, 128
        %1385 = vxpose.xlu0.b32.cont [3/16] 0.0, 128
        %1386 = vxpose.xlu0.b32.cont [4/16] 0.0, 128
        %1387 = vxpose.xlu0.b32.cont [5/16] 0.0, 128
        %1388 = vxpose.xlu0.b32.cont [6/16] 0.0, 128
        %1389 = vxpose.xlu0.b32.cont [7/16] 0.0, 128
        %1390 = vxpose.xlu0.b32.cont [8/16] 0.0, 128
        %1391 = vxpose.xlu0.b32.cont [9/16] 0.0, 128
        %1392 = vxpose.xlu0.b32.cont [10/16] 0.0, 128
        %1393 = vxpose.xlu0.b32.cont [11/16] 0.0, 128
        %1394 = vxpose.xlu0.b32.cont [12/16] 0.0, 128
        %1395 = vxpose.xlu0.b32.cont [13/16] 0.0, 128
        %1396 = vxpose.xlu0.b32.cont [14/16] 0.0, 128
        %1397 = vxpose.xlu0.b32.cont [15/16] 0.0, 128
        %1398 = vxpose.xlu0.b32.end [16/16] 0.0, 128
        %v1399 = vpop.trf.xlu0
        %v1400 = vpop.trf.xlu0
        %v1401 = vpop.trf.xlu0
        %v1402 = vpop.trf.xlu0
        %v1403 = vpop.trf.xlu0
        %v1404 = vpop.trf.xlu0
        %v1405 = vpop.trf.xlu0
        %v1406 = vpop.trf.xlu0
        %v1407 = vpop.trf.xlu0
        %v1408 = vpop.trf.xlu0
        %v1409 = vpop.trf.xlu0
        %v1410 = vpop.trf.xlu0
        %v1411 = vpop.trf.xlu0
        %v1412 = vpop.trf.xlu0
        %v1413 = vpop.trf.xlu0
        %v1414 = vpop.trf.xlu0
        %1415 = vxpose.xlu0.b32.start [1/16] %v860, 128
        %1416 = vxpose.xlu0.b32.cont [2/16] 0.0, 128
        %1417 = vxpose.xlu0.b32.cont [3/16] 0.0, 128
        %1418 = vxpose.xlu0.b32.cont [4/16] 0.0, 128
        %1419 = vxpose.xlu0.b32.cont [5/16] 0.0, 128
        %1420 = vxpose.xlu0.b32.cont [6/16] 0.0, 128
        %1421 = vxpose.xlu0.b32.cont [7/16] 0.0, 128
        %1422 = vxpose.xlu0.b32.cont [8/16] 0.0, 128
        %1423 = vxpose.xlu0.b32.cont [9/16] 0.0, 128
        %1424 = vxpose.xlu0.b32.cont [10/16] 0.0, 128
        %1425 = vxpose.xlu0.b32.cont [11/16] 0.0, 128
        %1426 = vxpose.xlu0.b32.cont [12/16] 0.0, 128
        %1427 = vxpose.xlu0.b32.cont [13/16] 0.0, 128
        %1428 = vxpose.xlu0.b32.cont [14/16] 0.0, 128
        %1429 = vxpose.xlu0.b32.cont [15/16] 0.0, 128
        %1430 = vxpose.xlu0.b32.end [16/16] 0.0, 128
        %v1431 = vpop.trf.xlu0
        %v1432 = vpop.trf.xlu0
        %v1433 = vpop.trf.xlu0
        %v1434 = vpop.trf.xlu0
        %v1435 = vpop.trf.xlu0
        %v1436 = vpop.trf.xlu0
        %v1437 = vpop.trf.xlu0
        %v1438 = vpop.trf.xlu0
        %v1439 = vpop.trf.xlu0
        %v1440 = vpop.trf.xlu0
        %v1441 = vpop.trf.xlu0
        %v1442 = vpop.trf.xlu0
        %v1443 = vpop.trf.xlu0
        %v1444 = vpop.trf.xlu0
        %v1445 = vpop.trf.xlu0
        %v1446 = vpop.trf.xlu0
        %1447 = vxpose.xlu0.b32.start [1/16] %v865, 128
        %1448 = vxpose.xlu0.b32.cont [2/16] 0.0, 128
        %1449 = vxpose.xlu0.b32.cont [3/16] 0.0, 128
        %1450 = vxpose.xlu0.b32.cont [4/16] 0.0, 128
        %1451 = vxpose.xlu0.b32.cont [5/16] 0.0, 128
        %1452 = vxpose.xlu0.b32.cont [6/16] 0.0, 128
        %1453 = vxpose.xlu0.b32.cont [7/16] 0.0, 128
        %1454 = vxpose.xlu0.b32.cont [8/16] 0.0, 128
        %1455 = vxpose.xlu0.b32.cont [9/16] 0.0, 128
        %1456 = vxpose.xlu0.b32.cont [10/16] 0.0, 128
        %1457 = vxpose.xlu0.b32.cont [11/16] 0.0, 128
        %1458 = vxpose.xlu0.b32.cont [12/16] 0.0, 128
        %1459 = vxpose.xlu0.b32.cont [13/16] 0.0, 128
        %1460 = vxpose.xlu0.b32.cont [14/16] 0.0, 128
        %1461 = vxpose.xlu0.b32.cont [15/16] 0.0, 128
        %1462 = vxpose.xlu0.b32.end [16/16] 0.0, 128
        %v1463 = vpop.trf.xlu0
        %v1464 = vpop.trf.xlu0
        %v1465 = vpop.trf.xlu0
        %v1466 = vpop.trf.xlu0
        %v1467 = vpop.trf.xlu0
        %v1468 = vpop.trf.xlu0
        %v1469 = vpop.trf.xlu0
        %v1470 = vpop.trf.xlu0
        %v1471 = vpop.trf.xlu0
        %v1472 = vpop.trf.xlu0
        %v1473 = vpop.trf.xlu0
        %v1474 = vpop.trf.xlu0
        %v1475 = vpop.trf.xlu0
        %v1476 = vpop.trf.xlu0
        %v1477 = vpop.trf.xlu0
        %v1478 = vpop.trf.xlu0
        %1479 = vxpose.xlu0.b32.start [1/16] %v868, 128
        %1480 = vxpose.xlu0.b32.cont [2/16] 0.0, 128
        %1481 = vxpose.xlu0.b32.cont [3/16] 0.0, 128
        %1482 = vxpose.xlu0.b32.cont [4/16] 0.0, 128
        %1483 = vxpose.xlu0.b32.cont [5/16] 0.0, 128
        %1484 = vxpose.xlu0.b32.cont [6/16] 0.0, 128
        %1485 = vxpose.xlu0.b32.cont [7/16] 0.0, 128
        %1486 = vxpose.xlu0.b32.cont [8/16] 0.0, 128
        %1487 = vxpose.xlu0.b32.cont [9/16] 0.0, 128
        %1488 = vxpose.xlu0.b32.cont [10/16] 0.0, 128
        %1489 = vxpose.xlu0.b32.cont [11/16] 0.0, 128
        %1490 = vxpose.xlu0.b32.cont [12/16] 0.0, 128
        %1491 = vxpose.xlu0.b32.cont [13/16] 0.0, 128
        %1492 = vxpose.xlu0.b32.cont [14/16] 0.0, 128
        %1493 = vxpose.xlu0.b32.cont [15/16] 0.0, 128
        %1494 = vxpose.xlu0.b32.end [16/16] 0.0, 128
        %v1495 = vpop.trf.xlu0
        %v1496 = vpop.trf.xlu0
        %v1497 = vpop.trf.xlu0
        %v1498 = vpop.trf.xlu0
        %v1499 = vpop.trf.xlu0
        %v1500 = vpop.trf.xlu0
        %v1501 = vpop.trf.xlu0
        %v1502 = vpop.trf.xlu0
        %v1503 = vpop.trf.xlu0
        %v1504 = vpop.trf.xlu0
        %v1505 = vpop.trf.xlu0
        %v1506 = vpop.trf.xlu0
        %v1507 = vpop.trf.xlu0
        %v1508 = vpop.trf.xlu0
        %v1509 = vpop.trf.xlu0
        %v1510 = vpop.trf.xlu0
        %1511 = vxpose.xlu0.b32.start [1/16] %v873, 128
        %1512 = vxpose.xlu0.b32.cont [2/16] 0.0, 128
        %1513 = vxpose.xlu0.b32.cont [3/16] 0.0, 128
        %1514 = vxpose.xlu0.b32.cont [4/16] 0.0, 128
        %1515 = vxpose.xlu0.b32.cont [5/16] 0.0, 128
        %1516 = vxpose.xlu0.b32.cont [6/16] 0.0, 128
        %1517 = vxpose.xlu0.b32.cont [7/16] 0.0, 128
        %1518 = vxpose.xlu0.b32.cont [8/16] 0.0, 128
        %1519 = vxpose.xlu0.b32.cont [9/16] 0.0, 128
        %1520 = vxpose.xlu0.b32.cont [10/16] 0.0, 128
        %1521 = vxpose.xlu0.b32.cont [11/16] 0.0, 128
        %1522 = vxpose.xlu0.b32.cont [12/16] 0.0, 128
        %1523 = vxpose.xlu0.b32.cont [13/16] 0.0, 128
        %1524 = vxpose.xlu0.b32.cont [14/16] 0.0, 128
        %1525 = vxpose.xlu0.b32.cont [15/16] 0.0, 128
        %1526 = vxpose.xlu0.b32.end [16/16] 0.0, 128
        %v1527 = vpop.trf.xlu0
        %v1528 = vpop.trf.xlu0
        %v1529 = vpop.trf.xlu0
        %v1530 = vpop.trf.xlu0
        %v1531 = vpop.trf.xlu0
        %v1532 = vpop.trf.xlu0
        %v1533 = vpop.trf.xlu0
        %v1534 = vpop.trf.xlu0
        %v1535 = vpop.trf.xlu0
        %v1536 = vpop.trf.xlu0
        %v1537 = vpop.trf.xlu0
        %v1538 = vpop.trf.xlu0
        %v1539 = vpop.trf.xlu0
        %v1540 = vpop.trf.xlu0
        %v1541 = vpop.trf.xlu0
        %v1542 = vpop.trf.xlu0
        %1543 = vxpose.xlu0.b32.start [1/16] %v876, 128
        %1544 = vxpose.xlu0.b32.cont [2/16] 0.0, 128
        %1545 = vxpose.xlu0.b32.cont [3/16] 0.0, 128
        %1546 = vxpose.xlu0.b32.cont [4/16] 0.0, 128
        %1547 = vxpose.xlu0.b32.cont [5/16] 0.0, 128
        %1548 = vxpose.xlu0.b32.cont [6/16] 0.0, 128
        %1549 = vxpose.xlu0.b32.cont [7/16] 0.0, 128
        %1550 = vxpose.xlu0.b32.cont [8/16] 0.0, 128
        %1551 = vxpose.xlu0.b32.cont [9/16] 0.0, 128
        %1552 = vxpose.xlu0.b32.cont [10/16] 0.0, 128
        %1553 = vxpose.xlu0.b32.cont [11/16] 0.0, 128
        %1554 = vxpose.xlu0.b32.cont [12/16] 0.0, 128
        %1555 = vxpose.xlu0.b32.cont [13/16] 0.0, 128
        %1556 = vxpose.xlu0.b32.cont [14/16] 0.0, 128
        %1557 = vxpose.xlu0.b32.cont [15/16] 0.0, 128
        %1558 = vxpose.xlu0.b32.end [16/16] 0.0, 128
        %v1559 = vpop.trf.xlu0
        %v1560 = vpop.trf.xlu0
        %v1561 = vpop.trf.xlu0
        %v1562 = vpop.trf.xlu0
        %v1563 = vpop.trf.xlu0
        %v1564 = vpop.trf.xlu0
        %v1565 = vpop.trf.xlu0
        %v1566 = vpop.trf.xlu0
        %v1567 = vpop.trf.xlu0
        %v1568 = vpop.trf.xlu0
        %v1569 = vpop.trf.xlu0
        %v1570 = vpop.trf.xlu0
        %v1571 = vpop.trf.xlu0
        %v1572 = vpop.trf.xlu0
        %v1573 = vpop.trf.xlu0
        %v1574 = vpop.trf.xlu0
        %1575 = vxpose.xlu0.b32.start [1/16] %v881, 128
        %1576 = vxpose.xlu0.b32.cont [2/16] 0.0, 128
        %1577 = vxpose.xlu0.b32.cont [3/16] 0.0, 128
        %1578 = vxpose.xlu0.b32.cont [4/16] 0.0, 128
        %1579 = vxpose.xlu0.b32.cont [5/16] 0.0, 128
        %1580 = vxpose.xlu0.b32.cont [6/16] 0.0, 128
        %1581 = vxpose.xlu0.b32.cont [7/16] 0.0, 128
        %1582 = vxpose.xlu0.b32.cont [8/16] 0.0, 128
        %1583 = vxpose.xlu0.b32.cont [9/16] 0.0, 128
        %1584 = vxpose.xlu0.b32.cont [10/16] 0.0, 128
        %1585 = vxpose.xlu0.b32.cont [11/16] 0.0, 128
        %1586 = vxpose.xlu0.b32.cont [12/16] 0.0, 128
        %1587 = vxpose.xlu0.b32.cont [13/16] 0.0, 128
        %1588 = vxpose.xlu0.b32.cont [14/16] 0.0, 128
        %1589 = vxpose.xlu0.b32.cont [15/16] 0.0, 128
        %1590 = vxpose.xlu0.b32.end [16/16] 0.0, 128
        %v1591 = vpop.trf.xlu0
        %v1592 = vpop.trf.xlu0
        %v1593 = vpop.trf.xlu0
        %v1594 = vpop.trf.xlu0
        %v1595 = vpop.trf.xlu0
        %v1596 = vpop.trf.xlu0
        %v1597 = vpop.trf.xlu0
        %v1598 = vpop.trf.xlu0
        %v1599 = vpop.trf.xlu0
        %v1600 = vpop.trf.xlu0
        %v1601 = vpop.trf.xlu0
        %v1602 = vpop.trf.xlu0
        %v1603 = vpop.trf.xlu0
        %v1604 = vpop.trf.xlu0
        %v1605 = vpop.trf.xlu0
        %v1606 = vpop.trf.xlu0
        %1607 = vxpose.xlu0.b32.start [1/16] %v884, 128
        %1608 = vxpose.xlu0.b32.cont [2/16] 0.0, 128
        %1609 = vxpose.xlu0.b32.cont [3/16] 0.0, 128
        %1610 = vxpose.xlu0.b32.cont [4/16] 0.0, 128
        %1611 = vxpose.xlu0.b32.cont [5/16] 0.0, 128
        %1612 = vxpose.xlu0.b32.cont [6/16] 0.0, 128
        %1613 = vxpose.xlu0.b32.cont [7/16] 0.0, 128
        %1614 = vxpose.xlu0.b32.cont [8/16] 0.0, 128
        %1615 = vxpose.xlu0.b32.cont [9/16] 0.0, 128
        %1616 = vxpose.xlu0.b32.cont [10/16] 0.0, 128
        %1617 = vxpose.xlu0.b32.cont [11/16] 0.0, 128
        %1618 = vxpose.xlu0.b32.cont [12/16] 0.0, 128
        %1619 = vxpose.xlu0.b32.cont [13/16] 0.0, 128
        %1620 = vxpose.xlu0.b32.cont [14/16] 0.0, 128
        %1621 = vxpose.xlu0.b32.cont [15/16] 0.0, 128
        %1622 = vxpose.xlu0.b32.end [16/16] 0.0, 128
        %v1623 = vpop.trf.xlu0
        %v1624 = vpop.trf.xlu0
        %v1625 = vpop.trf.xlu0
        %v1626 = vpop.trf.xlu0
        %v1627 = vpop.trf.xlu0
        %v1628 = vpop.trf.xlu0
        %v1629 = vpop.trf.xlu0
        %v1630 = vpop.trf.xlu0
        %v1631 = vpop.trf.xlu0
        %v1632 = vpop.trf.xlu0
        %v1633 = vpop.trf.xlu0
        %v1634 = vpop.trf.xlu0
        %v1635 = vpop.trf.xlu0
        %v1636 = vpop.trf.xlu0
        %v1637 = vpop.trf.xlu0
        %v1638 = vpop.trf.xlu0
        %1639 = vxpose.xlu0.b32.start [1/16] %v889, 128
        %1640 = vxpose.xlu0.b32.cont [2/16] 0.0, 128
        %1641 = vxpose.xlu0.b32.cont [3/16] 0.0, 128
        %1642 = vxpose.xlu0.b32.cont [4/16] 0.0, 128
        %1643 = vxpose.xlu0.b32.cont [5/16] 0.0, 128
        %1644 = vxpose.xlu0.b32.cont [6/16] 0.0, 128
        %1645 = vxpose.xlu0.b32.cont [7/16] 0.0, 128
        %1646 = vxpose.xlu0.b32.cont [8/16] 0.0, 128
        %1647 = vxpose.xlu0.b32.cont [9/16] 0.0, 128
        %1648 = vxpose.xlu0.b32.cont [10/16] 0.0, 128
        %1649 = vxpose.xlu0.b32.cont [11/16] 0.0, 128
        %1650 = vxpose.xlu0.b32.cont [12/16] 0.0, 128
        %1651 = vxpose.xlu0.b32.cont [13/16] 0.0, 128
        %1652 = vxpose.xlu0.b32.cont [14/16] 0.0, 128
        %1653 = vxpose.xlu0.b32.cont [15/16] 0.0, 128
        %1654 = vxpose.xlu0.b32.end [16/16] 0.0, 128
        %v1655 = vpop.trf.xlu0
        %v1656 = vpop.trf.xlu0
        %v1657 = vpop.trf.xlu0
        %v1658 = vpop.trf.xlu0
        %v1659 = vpop.trf.xlu0
        %v1660 = vpop.trf.xlu0
        %v1661 = vpop.trf.xlu0
        %v1662 = vpop.trf.xlu0
        %v1663 = vpop.trf.xlu0
        %v1664 = vpop.trf.xlu0
        %v1665 = vpop.trf.xlu0
        %v1666 = vpop.trf.xlu0
        %v1667 = vpop.trf.xlu0
        %v1668 = vpop.trf.xlu0
        %v1669 = vpop.trf.xlu0
        %v1670 = vpop.trf.xlu0
        %1671 = vxpose.xlu0.b32.start [1/16] %v892, 128
        %1672 = vxpose.xlu0.b32.cont [2/16] 0.0, 128
        %1673 = vxpose.xlu0.b32.cont [3/16] 0.0, 128
        %1674 = vxpose.xlu0.b32.cont [4/16] 0.0, 128
        %1675 = vxpose.xlu0.b32.cont [5/16] 0.0, 128
        %1676 = vxpose.xlu0.b32.cont [6/16] 0.0, 128
        %1677 = vxpose.xlu0.b32.cont [7/16] 0.0, 128
        %1678 = vxpose.xlu0.b32.cont [8/16] 0.0, 128
        %1679 = vxpose.xlu0.b32.cont [9/16] 0.0, 128
        %1680 = vxpose.xlu0.b32.cont [10/16] 0.0, 128
        %1681 = vxpose.xlu0.b32.cont [11/16] 0.0, 128
        %1682 = vxpose.xlu0.b32.cont [12/16] 0.0, 128
        %1683 = vxpose.xlu0.b32.cont [13/16] 0.0, 128
        %1684 = vxpose.xlu0.b32.cont [14/16] 0.0, 128
        %1685 = vxpose.xlu0.b32.cont [15/16] 0.0, 128
        %1686 = vxpose.xlu0.b32.end [16/16] 0.0, 128
        %v1687 = vpop.trf.xlu0
        %v1688 = vpop.trf.xlu0
        %v1689 = vpop.trf.xlu0
        %v1690 = vpop.trf.xlu0
        %v1691 = vpop.trf.xlu0
        %v1692 = vpop.trf.xlu0
        %v1693 = vpop.trf.xlu0
        %v1694 = vpop.trf.xlu0
        %v1695 = vpop.trf.xlu0
        %v1696 = vpop.trf.xlu0
        %v1697 = vpop.trf.xlu0
        %v1698 = vpop.trf.xlu0
        %v1699 = vpop.trf.xlu0
        %v1700 = vpop.trf.xlu0
        %v1701 = vpop.trf.xlu0
        %v1702 = vpop.trf.xlu0
        %1703 = vxpose.xlu0.b32.start [1/16] %v897, 128
        %1704 = vxpose.xlu0.b32.cont [2/16] 0.0, 128
        %1705 = vxpose.xlu0.b32.cont [3/16] 0.0, 128
        %1706 = vxpose.xlu0.b32.cont [4/16] 0.0, 128
        %1707 = vxpose.xlu0.b32.cont [5/16] 0.0, 128
        %1708 = vxpose.xlu0.b32.cont [6/16] 0.0, 128
        %1709 = vxpose.xlu0.b32.cont [7/16] 0.0, 128
        %1710 = vxpose.xlu0.b32.cont [8/16] 0.0, 128
        %1711 = vxpose.xlu0.b32.cont [9/16] 0.0, 128
        %1712 = vxpose.xlu0.b32.cont [10/16] 0.0, 128
        %1713 = vxpose.xlu0.b32.cont [11/16] 0.0, 128
        %1714 = vxpose.xlu0.b32.cont [12/16] 0.0, 128
        %1715 = vxpose.xlu0.b32.cont [13/16] 0.0, 128
        %1716 = vxpose.xlu0.b32.cont [14/16] 0.0, 128
        %1717 = vxpose.xlu0.b32.cont [15/16] 0.0, 128
        %1718 = vxpose.xlu0.b32.end [16/16] 0.0, 128
        %v1719 = vpop.trf.xlu0
        %v1720 = vpop.trf.xlu0
        %v1721 = vpop.trf.xlu0
        %v1722 = vpop.trf.xlu0
        %v1723 = vpop.trf.xlu0
        %v1724 = vpop.trf.xlu0
        %v1725 = vpop.trf.xlu0
        %v1726 = vpop.trf.xlu0
        %v1727 = vpop.trf.xlu0
        %v1728 = vpop.trf.xlu0
        %v1729 = vpop.trf.xlu0
        %v1730 = vpop.trf.xlu0
        %v1731 = vpop.trf.xlu0
        %v1732 = vpop.trf.xlu0
        %v1733 = vpop.trf.xlu0
        %v1734 = vpop.trf.xlu0
        %1735 = vxpose.xlu0.b32.start [1/16] %v900, 128
        %1736 = vxpose.xlu0.b32.cont [2/16] 0.0, 128
        %1737 = vxpose.xlu0.b32.cont [3/16] 0.0, 128
        %1738 = vxpose.xlu0.b32.cont [4/16] 0.0, 128
        %1739 = vxpose.xlu0.b32.cont [5/16] 0.0, 128
        %1740 = vxpose.xlu0.b32.cont [6/16] 0.0, 128
        %1741 = vxpose.xlu0.b32.cont [7/16] 0.0, 128
        %1742 = vxpose.xlu0.b32.cont [8/16] 0.0, 128
        %1743 = vxpose.xlu0.b32.cont [9/16] 0.0, 128
        %1744 = vxpose.xlu0.b32.cont [10/16] 0.0, 128
        %1745 = vxpose.xlu0.b32.cont [11/16] 0.0, 128
        %1746 = vxpose.xlu0.b32.cont [12/16] 0.0, 128
        %1747 = vxpose.xlu0.b32.cont [13/16] 0.0, 128
        %1748 = vxpose.xlu0.b32.cont [14/16] 0.0, 128
        %1749 = vxpose.xlu0.b32.cont [15/16] 0.0, 128
        %1750 = vxpose.xlu0.b32.end [16/16] 0.0, 128
        %v1751 = vpop.trf.xlu0
        %v1752 = vpop.trf.xlu0
        %v1753 = vpop.trf.xlu0
        %v1754 = vpop.trf.xlu0
        %v1755 = vpop.trf.xlu0
        %v1756 = vpop.trf.xlu0
        %v1757 = vpop.trf.xlu0
        %v1758 = vpop.trf.xlu0
        %v1759 = vpop.trf.xlu0
        %v1760 = vpop.trf.xlu0
        %v1761 = vpop.trf.xlu0
        %v1762 = vpop.trf.xlu0
        %v1763 = vpop.trf.xlu0
        %v1764 = vpop.trf.xlu0
        %v1765 = vpop.trf.xlu0
        %v1766 = vpop.trf.xlu0
        %1767 = vxpose.xlu0.b32.start [1/16] %v905, 128
        %1768 = vxpose.xlu0.b32.cont [2/16] 0.0, 128
        %1769 = vxpose.xlu0.b32.cont [3/16] 0.0, 128
        %1770 = vxpose.xlu0.b32.cont [4/16] 0.0, 128
        %1771 = vxpose.xlu0.b32.cont [5/16] 0.0, 128
        %1772 = vxpose.xlu0.b32.cont [6/16] 0.0, 128
        %1773 = vxpose.xlu0.b32.cont [7/16] 0.0, 128
        %1774 = vxpose.xlu0.b32.cont [8/16] 0.0, 128
        %1775 = vxpose.xlu0.b32.cont [9/16] 0.0, 128
        %1776 = vxpose.xlu0.b32.cont [10/16] 0.0, 128
        %1777 = vxpose.xlu0.b32.cont [11/16] 0.0, 128
        %1778 = vxpose.xlu0.b32.cont [12/16] 0.0, 128
        %1779 = vxpose.xlu0.b32.cont [13/16] 0.0, 128
        %1780 = vxpose.xlu0.b32.cont [14/16] 0.0, 128
        %1781 = vxpose.xlu0.b32.cont [15/16] 0.0, 128
        %1782 = vxpose.xlu0.b32.end [16/16] 0.0, 128
        %v1783 = vpop.trf.xlu0
        %v1784 = vpop.trf.xlu0
        %v1785 = vpop.trf.xlu0
        %v1786 = vpop.trf.xlu0
        %v1787 = vpop.trf.xlu0
        %v1788 = vpop.trf.xlu0
        %v1789 = vpop.trf.xlu0
        %v1790 = vpop.trf.xlu0
        %v1791 = vpop.trf.xlu0
        %v1792 = vpop.trf.xlu0
        %v1793 = vpop.trf.xlu0
        %v1794 = vpop.trf.xlu0
        %v1795 = vpop.trf.xlu0
        %v1796 = vpop.trf.xlu0
        %v1797 = vpop.trf.xlu0
        %v1798 = vpop.trf.xlu0
        %1799 = vxpose.xlu0.b32.start [1/16] %v908, 128
        %1800 = vxpose.xlu0.b32.cont [2/16] 0.0, 128
        %1801 = vxpose.xlu0.b32.cont [3/16] 0.0, 128
        %1802 = vxpose.xlu0.b32.cont [4/16] 0.0, 128
        %1803 = vxpose.xlu0.b32.cont [5/16] 0.0, 128
        %1804 = vxpose.xlu0.b32.cont [6/16] 0.0, 128
        %1805 = vxpose.xlu0.b32.cont [7/16] 0.0, 128
        %1806 = vxpose.xlu0.b32.cont [8/16] 0.0, 128
        %1807 = vxpose.xlu0.b32.cont [9/16] 0.0, 128
        %1808 = vxpose.xlu0.b32.cont [10/16] 0.0, 128
        %1809 = vxpose.xlu0.b32.cont [11/16] 0.0, 128
        %1810 = vxpose.xlu0.b32.cont [12/16] 0.0, 128
        %1811 = vxpose.xlu0.b32.cont [13/16] 0.0, 128
        %1812 = vxpose.xlu0.b32.cont [14/16] 0.0, 128
        %1813 = vxpose.xlu0.b32.cont [15/16] 0.0, 128
        %1814 = vxpose.xlu0.b32.end [16/16] 0.0, 128
        %v1815 = vpop.trf.xlu0
        %v1816 = vpop.trf.xlu0
        %v1817 = vpop.trf.xlu0
        %v1818 = vpop.trf.xlu0
        %v1819 = vpop.trf.xlu0
        %v1820 = vpop.trf.xlu0
        %v1821 = vpop.trf.xlu0
        %v1822 = vpop.trf.xlu0
        %v1823 = vpop.trf.xlu0
        %v1824 = vpop.trf.xlu0
        %v1825 = vpop.trf.xlu0
        %v1826 = vpop.trf.xlu0
        %v1827 = vpop.trf.xlu0
        %v1828 = vpop.trf.xlu0
        %v1829 = vpop.trf.xlu0
        %v1830 = vpop.trf.xlu0
        %1831 = vxpose.xlu0.b32.start [1/16] %v913, 128
        %1832 = vxpose.xlu0.b32.cont [2/16] 0.0, 128
        %1833 = vxpose.xlu0.b32.cont [3/16] 0.0, 128
        %1834 = vxpose.xlu0.b32.cont [4/16] 0.0, 128
        %1835 = vxpose.xlu0.b32.cont [5/16] 0.0, 128
        %1836 = vxpose.xlu0.b32.cont [6/16] 0.0, 128
        %1837 = vxpose.xlu0.b32.cont [7/16] 0.0, 128
        %1838 = vxpose.xlu0.b32.cont [8/16] 0.0, 128
        %1839 = vxpose.xlu0.b32.cont [9/16] 0.0, 128
        %1840 = vxpose.xlu0.b32.cont [10/16] 0.0, 128
        %1841 = vxpose.xlu0.b32.cont [11/16] 0.0, 128
        %1842 = vxpose.xlu0.b32.cont [12/16] 0.0, 128
        %1843 = vxpose.xlu0.b32.cont [13/16] 0.0, 128
        %1844 = vxpose.xlu0.b32.cont [14/16] 0.0, 128
        %1845 = vxpose.xlu0.b32.cont [15/16] 0.0, 128
        %1846 = vxpose.xlu0.b32.end [16/16] 0.0, 128
        %v1847 = vpop.trf.xlu0
        %v1848 = vpop.trf.xlu0
        %v1849 = vpop.trf.xlu0
        %v1850 = vpop.trf.xlu0
        %v1851 = vpop.trf.xlu0
        %v1852 = vpop.trf.xlu0
        %v1853 = vpop.trf.xlu0
        %v1854 = vpop.trf.xlu0
        %v1855 = vpop.trf.xlu0
        %v1856 = vpop.trf.xlu0
        %v1857 = vpop.trf.xlu0
        %v1858 = vpop.trf.xlu0
        %v1859 = vpop.trf.xlu0
        %v1860 = vpop.trf.xlu0
        %v1861 = vpop.trf.xlu0
        %v1862 = vpop.trf.xlu0
        %1863 = vxpose.xlu0.b32.start [1/16] %v916, 128
        %1864 = vxpose.xlu0.b32.cont [2/16] 0.0, 128
        %1865 = vxpose.xlu0.b32.cont [3/16] 0.0, 128
        %1866 = vxpose.xlu0.b32.cont [4/16] 0.0, 128
        %1867 = vxpose.xlu0.b32.cont [5/16] 0.0, 128
        %1868 = vxpose.xlu0.b32.cont [6/16] 0.0, 128
        %1869 = vxpose.xlu0.b32.cont [7/16] 0.0, 128
        %1870 = vxpose.xlu0.b32.cont [8/16] 0.0, 128
        %1871 = vxpose.xlu0.b32.cont [9/16] 0.0, 128
        %1872 = vxpose.xlu0.b32.cont [10/16] 0.0, 128
        %1873 = vxpose.xlu0.b32.cont [11/16] 0.0, 128
        %1874 = vxpose.xlu0.b32.cont [12/16] 0.0, 128
        %1875 = vxpose.xlu0.b32.cont [13/16] 0.0, 128
        %1876 = vxpose.xlu0.b32.cont [14/16] 0.0, 128
        %1877 = vxpose.xlu0.b32.cont [15/16] 0.0, 128
        %1878 = vxpose.xlu0.b32.end [16/16] 0.0, 128
        %v1879 = vpop.trf.xlu0
        %v1880 = vpop.trf.xlu0
        %v1881 = vpop.trf.xlu0
        %v1882 = vpop.trf.xlu0
        %v1883 = vpop.trf.xlu0
        %v1884 = vpop.trf.xlu0
        %v1885 = vpop.trf.xlu0
        %v1886 = vpop.trf.xlu0
        %v1887 = vpop.trf.xlu0
        %v1888 = vpop.trf.xlu0
        %v1889 = vpop.trf.xlu0
        %v1890 = vpop.trf.xlu0
        %v1891 = vpop.trf.xlu0
        %v1892 = vpop.trf.xlu0
        %v1893 = vpop.trf.xlu0
        %v1894 = vpop.trf.xlu0
        %1895 = vxpose.xlu0.b32.start [1/16] %v921, 128
        %1896 = vxpose.xlu0.b32.cont [2/16] 0.0, 128
        %1897 = vxpose.xlu0.b32.cont [3/16] 0.0, 128
        %1898 = vxpose.xlu0.b32.cont [4/16] 0.0, 128
        %1899 = vxpose.xlu0.b32.cont [5/16] 0.0, 128
        %1900 = vxpose.xlu0.b32.cont [6/16] 0.0, 128
        %1901 = vxpose.xlu0.b32.cont [7/16] 0.0, 128
        %1902 = vxpose.xlu0.b32.cont [8/16] 0.0, 128
        %1903 = vxpose.xlu0.b32.cont [9/16] 0.0, 128
        %1904 = vxpose.xlu0.b32.cont [10/16] 0.0, 128
        %1905 = vxpose.xlu0.b32.cont [11/16] 0.0, 128
        %1906 = vxpose.xlu0.b32.cont [12/16] 0.0, 128
        %1907 = vxpose.xlu0.b32.cont [13/16] 0.0, 128
        %1908 = vxpose.xlu0.b32.cont [14/16] 0.0, 128
        %1909 = vxpose.xlu0.b32.cont [15/16] 0.0, 128
        %1910 = vxpose.xlu0.b32.end [16/16] 0.0, 128
        %v1911 = vpop.trf.xlu0
        %v1912 = vpop.trf.xlu0
        %v1913 = vpop.trf.xlu0
        %v1914 = vpop.trf.xlu0
        %v1915 = vpop.trf.xlu0
        %v1916 = vpop.trf.xlu0
        %v1917 = vpop.trf.xlu0
        %v1918 = vpop.trf.xlu0
        %v1919 = vpop.trf.xlu0
        %v1920 = vpop.trf.xlu0
        %v1921 = vpop.trf.xlu0
        %v1922 = vpop.trf.xlu0
        %v1923 = vpop.trf.xlu0
        %v1924 = vpop.trf.xlu0
        %v1925 = vpop.trf.xlu0
        %v1926 = vpop.trf.xlu0
        %1927 = vxpose.xlu0.b32.start [1/16] %v924, 128
        %1928 = vxpose.xlu0.b32.cont [2/16] 0.0, 128
        %1929 = vxpose.xlu0.b32.cont [3/16] 0.0, 128
        %1930 = vxpose.xlu0.b32.cont [4/16] 0.0, 128
        %1931 = vxpose.xlu0.b32.cont [5/16] 0.0, 128
        %1932 = vxpose.xlu0.b32.cont [6/16] 0.0, 128
        %1933 = vxpose.xlu0.b32.cont [7/16] 0.0, 128
        %1934 = vxpose.xlu0.b32.cont [8/16] 0.0, 128
        %1935 = vxpose.xlu0.b32.cont [9/16] 0.0, 128
        %1936 = vxpose.xlu0.b32.cont [10/16] 0.0, 128
        %1937 = vxpose.xlu0.b32.cont [11/16] 0.0, 128
        %1938 = vxpose.xlu0.b32.cont [12/16] 0.0, 128
        %1939 = vxpose.xlu0.b32.cont [13/16] 0.0, 128
        %1940 = vxpose.xlu0.b32.cont [14/16] 0.0, 128
        %1941 = vxpose.xlu0.b32.cont [15/16] 0.0, 128
        %1942 = vxpose.xlu0.b32.end [16/16] 0.0, 128
        %v1943 = vpop.trf.xlu0
        %v1944 = vpop.trf.xlu0
        %v1945 = vpop.trf.xlu0
        %v1946 = vpop.trf.xlu0
        %v1947 = vpop.trf.xlu0
        %v1948 = vpop.trf.xlu0
        %v1949 = vpop.trf.xlu0
        %v1950 = vpop.trf.xlu0
        %v1951 = vpop.trf.xlu0
        %v1952 = vpop.trf.xlu0
        %v1953 = vpop.trf.xlu0
        %v1954 = vpop.trf.xlu0
        %v1955 = vpop.trf.xlu0
        %v1956 = vpop.trf.xlu0
        %v1957 = vpop.trf.xlu0
        %v1958 = vpop.trf.xlu0
        %1959 = vxpose.xlu0.b32.start [1/16] %v929, 128
        %1960 = vxpose.xlu0.b32.cont [2/16] 0.0, 128
        %1961 = vxpose.xlu0.b32.cont [3/16] 0.0, 128
        %1962 = vxpose.xlu0.b32.cont [4/16] 0.0, 128
        %1963 = vxpose.xlu0.b32.cont [5/16] 0.0, 128
        %1964 = vxpose.xlu0.b32.cont [6/16] 0.0, 128
        %1965 = vxpose.xlu0.b32.cont [7/16] 0.0, 128
        %1966 = vxpose.xlu0.b32.cont [8/16] 0.0, 128
        %1967 = vxpose.xlu0.b32.cont [9/16] 0.0, 128
        %1968 = vxpose.xlu0.b32.cont [10/16] 0.0, 128
        %1969 = vxpose.xlu0.b32.cont [11/16] 0.0, 128
        %1970 = vxpose.xlu0.b32.cont [12/16] 0.0, 128
        %1971 = vxpose.xlu0.b32.cont [13/16] 0.0, 128
        %1972 = vxpose.xlu0.b32.cont [14/16] 0.0, 128
        %1973 = vxpose.xlu0.b32.cont [15/16] 0.0, 128
        %1974 = vxpose.xlu0.b32.end [16/16] 0.0, 128
        %v1975 = vpop.trf.xlu0
        %v1976 = vpop.trf.xlu0
        %v1977 = vpop.trf.xlu0
        %v1978 = vpop.trf.xlu0
        %v1979 = vpop.trf.xlu0
        %v1980 = vpop.trf.xlu0
        %v1981 = vpop.trf.xlu0
        %v1982 = vpop.trf.xlu0
        %v1983 = vpop.trf.xlu0
        %v1984 = vpop.trf.xlu0
        %v1985 = vpop.trf.xlu0
        %v1986 = vpop.trf.xlu0
        %v1987 = vpop.trf.xlu0
        %v1988 = vpop.trf.xlu0
        %v1989 = vpop.trf.xlu0
        %v1990 = vpop.trf.xlu0
        %1991 = vxpose.xlu0.b32.start [1/16] %v932, 128
        %1992 = vxpose.xlu0.b32.cont [2/16] 0.0, 128
        %1993 = vxpose.xlu0.b32.cont [3/16] 0.0, 128
        %1994 = vxpose.xlu0.b32.cont [4/16] 0.0, 128
        %1995 = vxpose.xlu0.b32.cont [5/16] 0.0, 128
        %1996 = vxpose.xlu0.b32.cont [6/16] 0.0, 128
        %1997 = vxpose.xlu0.b32.cont [7/16] 0.0, 128
        %1998 = vxpose.xlu0.b32.cont [8/16] 0.0, 128
        %1999 = vxpose.xlu0.b32.cont [9/16] 0.0, 128
        %2000 = vxpose.xlu0.b32.cont [10/16] 0.0, 128
        %2001 = vxpose.xlu0.b32.cont [11/16] 0.0, 128
        %2002 = vxpose.xlu0.b32.cont [12/16] 0.0, 128
        %2003 = vxpose.xlu0.b32.cont [13/16] 0.0, 128
        %2004 = vxpose.xlu0.b32.cont [14/16] 0.0, 128
        %2005 = vxpose.xlu0.b32.cont [15/16] 0.0, 128
        %2006 = vxpose.xlu0.b32.end [16/16] 0.0, 128
        %v2007 = vpop.trf.xlu0
        %v2008 = vpop.trf.xlu0
        %v2009 = vpop.trf.xlu0
        %v2010 = vpop.trf.xlu0
        %v2011 = vpop.trf.xlu0
        %v2012 = vpop.trf.xlu0
        %v2013 = vpop.trf.xlu0
        %v2014 = vpop.trf.xlu0
        %v2015 = vpop.trf.xlu0
        %v2016 = vpop.trf.xlu0
        %v2017 = vpop.trf.xlu0
        %v2018 = vpop.trf.xlu0
        %v2019 = vpop.trf.xlu0
        %v2020 = vpop.trf.xlu0
        %v2021 = vpop.trf.xlu0
        %v2022 = vpop.trf.xlu0
        %v2023 = vpack.c.bf16 %v1015, %v1015
        %v2024 = vpack.c.bf16 %v1047, %v1047
        %v2025 = vpack.c.bf16 %v1079, %v1079
        %v2026 = vpack.c.bf16 %v1111, %v1111
        %v2027 = vpack.c.bf16 %v1143, %v1143
        %v2028 = vpack.c.bf16 %v1175, %v1175
        %v2029 = vpack.c.bf16 %v1207, %v1207
        %v2030 = vpack.c.bf16 %v1239, %v1239
        %v2031 = vpack.c.bf16 %v1271, %v1271
        %v2032 = vpack.c.bf16 %v1303, %v1303
        %v2033 = vpack.c.bf16 %v1335, %v1335
        %v2034 = vpack.c.bf16 %v1367, %v1367
        %v2035 = vpack.c.bf16 %v1399, %v1399
        %v2036 = vpack.c.bf16 %v1431, %v1431
        %v2037 = vpack.c.bf16 %v1463, %v1463
        %v2038 = vpack.c.bf16 %v1495, %v1495
        %v2039 = vpack.c.bf16 %v1527, %v1527
        %v2040 = vpack.c.bf16 %v1559, %v1559
        %v2041 = vpack.c.bf16 %v1591, %v1591
        %v2042 = vpack.c.bf16 %v1623, %v1623
        %v2043 = vpack.c.bf16 %v1655, %v1655
        %v2044 = vpack.c.bf16 %v1687, %v1687
        %v2045 = vpack.c.bf16 %v1719, %v1719
        %v2046 = vpack.c.bf16 %v1751, %v1751
        %v2047 = vpack.c.bf16 %v1783, %v1783
        %v2048 = vpack.c.bf16 %v1815, %v1815
        %v2049 = vpack.c.bf16 %v1847, %v1847
        %v2050 = vpack.c.bf16 %v1879, %v1879
        %v2051 = vpack.c.bf16 %v1911, %v1911
        %v2052 = vpack.c.bf16 %v1943, %v1943
        %v2053 = vpack.c.bf16 %v1975, %v1975
        %v2054 = vpack.c.bf16 %v2007, %v2007
        %vm2055 = vcmask 64512
        %v2057 = vsel %vm2055, %v2023, 0
        %v2060 = vsel %vm2055, %v2039, 0
        %2062 = vmatprep.subr.bf16.mxu0 0
        %2063 = vmatpush1.bf16.xpose.msra.mxu0 0
        %2064 = vmatprep.subr.bf16.mxu0 0
        %2065 = vmatpush1.bf16.xpose.msra.mxu0 0
        %2066 = vmatprep.subr.bf16.mxu0 0
        %2067 = vmatpush1.bf16.xpose.msra.mxu0 0
        %2068 = vmatprep.subr.bf16.mxu0 0
        %2069 = vmatpush1.bf16.xpose.msra.mxu0 0
        %2070 = vmatprep.subr.bf16.mxu0 0
        %2071 = vmatpush1.bf16.xpose.msra.mxu0 0
        %2072 = vmatprep.subr.bf16.mxu0 0
        %2073 = vmatpush1.bf16.xpose.msra.mxu0 0
        %2074 = vmatprep.subr.bf16.mxu0 0
        %2075 = vmatpush1.bf16.xpose.msra.mxu0 0
        %2076 = vmatprep.subr.bf16.mxu0 0
        %2077 = vmatpush1.bf16.xpose.msra.mxu0 %v2060
        %2078 = vmatprep.subr.bf16.mxu0 0
        %2079 = vmatpush2.bf16.xpose.msra.mxu0 0
        %2080 = vmatprep.subr.bf16.mxu0 0
        %2081 = vmatpush2.bf16.xpose.msra.mxu0 0
        %2082 = vmatprep.subr.bf16.mxu0 0
        %2083 = vmatpush2.bf16.xpose.msra.mxu0 0
        %2084 = vmatprep.subr.bf16.mxu0 0
        %2085 = vmatpush2.bf16.xpose.msra.mxu0 0
        %2086 = vmatprep.subr.bf16.mxu0 0
        %2087 = vmatpush2.bf16.xpose.msra.mxu0 0
        %2088 = vmatprep.subr.bf16.mxu0 0
        %2089 = vmatpush2.bf16.xpose.msra.mxu0 0
        %2090 = vmatprep.subr.bf16.mxu0 0
        %2091 = vmatpush2.bf16.xpose.msra.mxu0 0
        %2092 = vmatprep.subr.bf16.mxu0 0
        %2093 = vmatpush2.bf16.xpose.msra.mxu0 0
        %2094 = vmatprep.mubr.bf16.mxu0 0
        %2095 = vmatmul.mubr.bf16.gmra.mxu0 %v2057
        %v2096 = vpop.f32.mrf.mxu0
        %v2097 = vadd.f32 0.0, %v2096
        %v2098 = vpop.f32.mrf.mxu0
        %v2099 = vpop.f32.mrf.mxu0
        %v2100 = vpop.f32.mrf.mxu0
        %2101 = vdwg.mxu0
        %v2103 = vsel %vm2055, %v2024, 0
        %v2106 = vsel %vm2055, %v2040, 0
        %2108 = vmatprep.subr.bf16.mxu0 0
        %2109 = vmatpush1.bf16.xpose.msra.mxu0 0
        %2110 = vmatprep.subr.bf16.mxu0 0
        %2111 = vmatpush1.bf16.xpose.msra.mxu0 0
        %2112 = vmatprep.subr.bf16.mxu0 0
        %2113 = vmatpush1.bf16.xpose.msra.mxu0 0
        %2114 = vmatprep.subr.bf16.mxu0 0
        %2115 = vmatpush1.bf16.xpose.msra.mxu0 0
        %2116 = vmatprep.subr.bf16.mxu0 0
        %2117 = vmatpush1.bf16.xpose.msra.mxu0 0
        %2118 = vmatprep.subr.bf16.mxu0 0
        %2119 = vmatpush1.bf16.xpose.msra.mxu0 0
        %2120 = vmatprep.subr.bf16.mxu0 0
        %2121 = vmatpush1.bf16.xpose.msra.mxu0 0
        %2122 = vmatprep.subr.bf16.mxu0 0
        %2123 = vmatpush1.bf16.xpose.msra.mxu0 %v2106
        %2124 = vmatprep.subr.bf16.mxu0 0
        %2125 = vmatpush2.bf16.xpose.msra.mxu0 0
        %2126 = vmatprep.subr.bf16.mxu0 0
        %2127 = vmatpush2.bf16.xpose.msra.mxu0 0
        %2128 = vmatprep.subr.bf16.mxu0 0
        %2129 = vmatpush2.bf16.xpose.msra.mxu0 0
        %2130 = vmatprep.subr.bf16.mxu0 0
        %2131 = vmatpush2.bf16.xpose.msra.mxu0 0
        %2132 = vmatprep.subr.bf16.mxu0 0
        %2133 = vmatpush2.bf16.xpose.msra.mxu0 0
        %2134 = vmatprep.subr.bf16.mxu0 0
        %2135 = vmatpush2.bf16.xpose.msra.mxu0 0
        %2136 = vmatprep.subr.bf16.mxu0 0
        %2137 = vmatpush2.bf16.xpose.msra.mxu0 0
        %2138 = vmatprep.subr.bf16.mxu0 0
        %2139 = vmatpush2.bf16.xpose.msra.mxu0 0
        %2140 = vmatprep.mubr.bf16.mxu0 0
        %2141 = vmatmul.mubr.bf16.gmra.mxu0 %v2103
        %v2142 = vpop.f32.mrf.mxu0
        %v2143 = vadd.f32 0.0, %v2142
        %v2144 = vpop.f32.mrf.mxu0
        %v2145 = vpop.f32.mrf.mxu0
        %v2146 = vpop.f32.mrf.mxu0
        %2147 = vdwg.mxu0
        %v2149 = vsel %vm2055, %v2025, 0
        %v2152 = vsel %vm2055, %v2041, 0
        %2154 = vmatprep.subr.bf16.mxu0 0
        %2155 = vmatpush1.bf16.xpose.msra.mxu0 0
        %2156 = vmatprep.subr.bf16.mxu0 0
        %2157 = vmatpush1.bf16.xpose.msra.mxu0 0
        %2158 = vmatprep.subr.bf16.mxu0 0
        %2159 = vmatpush1.bf16.xpose.msra.mxu0 0
        %2160 = vmatprep.subr.bf16.mxu0 0
        %2161 = vmatpush1.bf16.xpose.msra.mxu0 0
        %2162 = vmatprep.subr.bf16.mxu0 0
        %2163 = vmatpush1.bf16.xpose.msra.mxu0 0
        %2164 = vmatprep.subr.bf16.mxu0 0
        %2165 = vmatpush1.bf16.xpose.msra.mxu0 0
        %2166 = vmatprep.subr.bf16.mxu0 0
        %2167 = vmatpush1.bf16.xpose.msra.mxu0 0
        %2168 = vmatprep.subr.bf16.mxu0 0
        %2169 = vmatpush1.bf16.xpose.msra.mxu0 %v2152
        %2170 = vmatprep.subr.bf16.mxu0 0
        %2171 = vmatpush2.bf16.xpose.msra.mxu0 0
        %2172 = vmatprep.subr.bf16.mxu0 0
        %2173 = vmatpush2.bf16.xpose.msra.mxu0 0
        %2174 = vmatprep.subr.bf16.mxu0 0
        %2175 = vmatpush2.bf16.xpose.msra.mxu0 0
        %2176 = vmatprep.subr.bf16.mxu0 0
        %2177 = vmatpush2.bf16.xpose.msra.mxu0 0
        %2178 = vmatprep.subr.bf16.mxu0 0
        %2179 = vmatpush2.bf16.xpose.msra.mxu0 0
        %2180 = vmatprep.subr.bf16.mxu0 0
        %2181 = vmatpush2.bf16.xpose.msra.mxu0 0
        %2182 = vmatprep.subr.bf16.mxu0 0
        %2183 = vmatpush2.bf16.xpose.msra.mxu0 0
        %2184 = vmatprep.subr.bf16.mxu0 0
        %2185 = vmatpush2.bf16.xpose.msra.mxu0 0
        %2186 = vmatprep.mubr.bf16.mxu0 0
        %2187 = vmatmul.mubr.bf16.gmra.mxu0 %v2149
        %v2188 = vpop.f32.mrf.mxu0
        %v2189 = vadd.f32 0.0, %v2188
        %v2190 = vpop.f32.mrf.mxu0
        %v2191 = vpop.f32.mrf.mxu0
        %v2192 = vpop.f32.mrf.mxu0
        %2193 = vdwg.mxu0
        %v2195 = vsel %vm2055, %v2026, 0
        %v2198 = vsel %vm2055, %v2042, 0
        %2200 = vmatprep.subr.bf16.mxu0 0
        %2201 = vmatpush1.bf16.xpose.msra.mxu0 0
        %2202 = vmatprep.subr.bf16.mxu0 0
        %2203 = vmatpush1.bf16.xpose.msra.mxu0 0
        %2204 = vmatprep.subr.bf16.mxu0 0
        %2205 = vmatpush1.bf16.xpose.msra.mxu0 0
        %2206 = vmatprep.subr.bf16.mxu0 0
        %2207 = vmatpush1.bf16.xpose.msra.mxu0 0
        %2208 = vmatprep.subr.bf16.mxu0 0
        %2209 = vmatpush1.bf16.xpose.msra.mxu0 0
        %2210 = vmatprep.subr.bf16.mxu0 0
        %2211 = vmatpush1.bf16.xpose.msra.mxu0 0
        %2212 = vmatprep.subr.bf16.mxu0 0
        %2213 = vmatpush1.bf16.xpose.msra.mxu0 0
        %2214 = vmatprep.subr.bf16.mxu0 0
        %2215 = vmatpush1.bf16.xpose.msra.mxu0 %v2198
        %2216 = vmatprep.subr.bf16.mxu0 0
        %2217 = vmatpush2.bf16.xpose.msra.mxu0 0
        %2218 = vmatprep.subr.bf16.mxu0 0
        %2219 = vmatpush2.bf16.xpose.msra.mxu0 0
        %2220 = vmatprep.subr.bf16.mxu0 0
        %2221 = vmatpush2.bf16.xpose.msra.mxu0 0
        %2222 = vmatprep.subr.bf16.mxu0 0
        %2223 = vmatpush2.bf16.xpose.msra.mxu0 0
        %2224 = vmatprep.subr.bf16.mxu0 0
        %2225 = vmatpush2.bf16.xpose.msra.mxu0 0
        %2226 = vmatprep.subr.bf16.mxu0 0
        %2227 = vmatpush2.bf16.xpose.msra.mxu0 0
        %2228 = vmatprep.subr.bf16.mxu0 0
        %2229 = vmatpush2.bf16.xpose.msra.mxu0 0
        %2230 = vmatprep.subr.bf16.mxu0 0
        %2231 = vmatpush2.bf16.xpose.msra.mxu0 0
        %2232 = vmatprep.mubr.bf16.mxu0 0
        %2233 = vmatmul.mubr.bf16.gmra.mxu0 %v2195
        %v2234 = vpop.f32.mrf.mxu0
        %v2235 = vadd.f32 0.0, %v2234
        %v2236 = vpop.f32.mrf.mxu0
        %v2237 = vpop.f32.mrf.mxu0
        %v2238 = vpop.f32.mrf.mxu0
        %2239 = vdwg.mxu0
        %v2241 = vsel %vm2055, %v2027, 0
        %v2244 = vsel %vm2055, %v2043, 0
        %2246 = vmatprep.subr.bf16.mxu0 0
        %2247 = vmatpush1.bf16.xpose.msra.mxu0 0
        %2248 = vmatprep.subr.bf16.mxu0 0
        %2249 = vmatpush1.bf16.xpose.msra.mxu0 0
        %2250 = vmatprep.subr.bf16.mxu0 0
        %2251 = vmatpush1.bf16.xpose.msra.mxu0 0
        %2252 = vmatprep.subr.bf16.mxu0 0
        %2253 = vmatpush1.bf16.xpose.msra.mxu0 0
        %2254 = vmatprep.subr.bf16.mxu0 0
        %2255 = vmatpush1.bf16.xpose.msra.mxu0 0
        %2256 = vmatprep.subr.bf16.mxu0 0
        %2257 = vmatpush1.bf16.xpose.msra.mxu0 0
        %2258 = vmatprep.subr.bf16.mxu0 0
        %2259 = vmatpush1.bf16.xpose.msra.mxu0 0
        %2260 = vmatprep.subr.bf16.mxu0 0
        %2261 = vmatpush1.bf16.xpose.msra.mxu0 %v2244
        %2262 = vmatprep.subr.bf16.mxu0 0
        %2263 = vmatpush2.bf16.xpose.msra.mxu0 0
        %2264 = vmatprep.subr.bf16.mxu0 0
        %2265 = vmatpush2.bf16.xpose.msra.mxu0 0
        %2266 = vmatprep.subr.bf16.mxu0 0
        %2267 = vmatpush2.bf16.xpose.msra.mxu0 0
        %2268 = vmatprep.subr.bf16.mxu0 0
        %2269 = vmatpush2.bf16.xpose.msra.mxu0 0
        %2270 = vmatprep.subr.bf16.mxu0 0
        %2271 = vmatpush2.bf16.xpose.msra.mxu0 0
        %2272 = vmatprep.subr.bf16.mxu0 0
        %2273 = vmatpush2.bf16.xpose.msra.mxu0 0
        %2274 = vmatprep.subr.bf16.mxu0 0
        %2275 = vmatpush2.bf16.xpose.msra.mxu0 0
        %2276 = vmatprep.subr.bf16.mxu0 0
        %2277 = vmatpush2.bf16.xpose.msra.mxu0 0
        %2278 = vmatprep.mubr.bf16.mxu0 0
        %2279 = vmatmul.mubr.bf16.gmra.mxu0 %v2241
        %v2280 = vpop.f32.mrf.mxu0
        %v2281 = vadd.f32 0.0, %v2280
        %v2282 = vpop.f32.mrf.mxu0
        %v2283 = vpop.f32.mrf.mxu0
        %v2284 = vpop.f32.mrf.mxu0
        %2285 = vdwg.mxu0
        %v2287 = vsel %vm2055, %v2028, 0
        %v2290 = vsel %vm2055, %v2044, 0
        %2292 = vmatprep.subr.bf16.mxu0 0
        %2293 = vmatpush1.bf16.xpose.msra.mxu0 0
        %2294 = vmatprep.subr.bf16.mxu0 0
        %2295 = vmatpush1.bf16.xpose.msra.mxu0 0
        %2296 = vmatprep.subr.bf16.mxu0 0
        %2297 = vmatpush1.bf16.xpose.msra.mxu0 0
        %2298 = vmatprep.subr.bf16.mxu0 0
        %2299 = vmatpush1.bf16.xpose.msra.mxu0 0
        %2300 = vmatprep.subr.bf16.mxu0 0
        %2301 = vmatpush1.bf16.xpose.msra.mxu0 0
        %2302 = vmatprep.subr.bf16.mxu0 0
        %2303 = vmatpush1.bf16.xpose.msra.mxu0 0
        %2304 = vmatprep.subr.bf16.mxu0 0
        %2305 = vmatpush1.bf16.xpose.msra.mxu0 0
        %2306 = vmatprep.subr.bf16.mxu0 0
        %2307 = vmatpush1.bf16.xpose.msra.mxu0 %v2290
        %2308 = vmatprep.subr.bf16.mxu0 0
        %2309 = vmatpush2.bf16.xpose.msra.mxu0 0
        %2310 = vmatprep.subr.bf16.mxu0 0
        %2311 = vmatpush2.bf16.xpose.msra.mxu0 0
        %2312 = vmatprep.subr.bf16.mxu0 0
        %2313 = vmatpush2.bf16.xpose.msra.mxu0 0
        %2314 = vmatprep.subr.bf16.mxu0 0
        %2315 = vmatpush2.bf16.xpose.msra.mxu0 0
        %2316 = vmatprep.subr.bf16.mxu0 0
        %2317 = vmatpush2.bf16.xpose.msra.mxu0 0
        %2318 = vmatprep.subr.bf16.mxu0 0
        %2319 = vmatpush2.bf16.xpose.msra.mxu0 0
        %2320 = vmatprep.subr.bf16.mxu0 0
        %2321 = vmatpush2.bf16.xpose.msra.mxu0 0
        %2322 = vmatprep.subr.bf16.mxu0 0
        %2323 = vmatpush2.bf16.xpose.msra.mxu0 0
        %2324 = vmatprep.mubr.bf16.mxu0 0
        %2325 = vmatmul.mubr.bf16.gmra.mxu0 %v2287
        %v2326 = vpop.f32.mrf.mxu0
        %v2327 = vadd.f32 0.0, %v2326
        %v2328 = vpop.f32.mrf.mxu0
        %v2329 = vpop.f32.mrf.mxu0
        %v2330 = vpop.f32.mrf.mxu0
        %2331 = vdwg.mxu0
        %v2333 = vsel %vm2055, %v2029, 0
        %v2336 = vsel %vm2055, %v2045, 0
        %2338 = vmatprep.subr.bf16.mxu0 0
        %2339 = vmatpush1.bf16.xpose.msra.mxu0 0
        %2340 = vmatprep.subr.bf16.mxu0 0
        %2341 = vmatpush1.bf16.xpose.msra.mxu0 0
        %2342 = vmatprep.subr.bf16.mxu0 0
        %2343 = vmatpush1.bf16.xpose.msra.mxu0 0
        %2344 = vmatprep.subr.bf16.mxu0 0
        %2345 = vmatpush1.bf16.xpose.msra.mxu0 0
        %2346 = vmatprep.subr.bf16.mxu0 0
        %2347 = vmatpush1.bf16.xpose.msra.mxu0 0
        %2348 = vmatprep.subr.bf16.mxu0 0
        %2349 = vmatpush1.bf16.xpose.msra.mxu0 0
        %2350 = vmatprep.subr.bf16.mxu0 0
        %2351 = vmatpush1.bf16.xpose.msra.mxu0 0
        %2352 = vmatprep.subr.bf16.mxu0 0
        %2353 = vmatpush1.bf16.xpose.msra.mxu0 %v2336
        %2354 = vmatprep.subr.bf16.mxu0 0
        %2355 = vmatpush2.bf16.xpose.msra.mxu0 0
        %2356 = vmatprep.subr.bf16.mxu0 0
        %2357 = vmatpush2.bf16.xpose.msra.mxu0 0
        %2358 = vmatprep.subr.bf16.mxu0 0
        %2359 = vmatpush2.bf16.xpose.msra.mxu0 0
        %2360 = vmatprep.subr.bf16.mxu0 0
        %2361 = vmatpush2.bf16.xpose.msra.mxu0 0
        %2362 = vmatprep.subr.bf16.mxu0 0
        %2363 = vmatpush2.bf16.xpose.msra.mxu0 0
        %2364 = vmatprep.subr.bf16.mxu0 0
        %2365 = vmatpush2.bf16.xpose.msra.mxu0 0
        %2366 = vmatprep.subr.bf16.mxu0 0
        %2367 = vmatpush2.bf16.xpose.msra.mxu0 0
        %2368 = vmatprep.subr.bf16.mxu0 0
        %2369 = vmatpush2.bf16.xpose.msra.mxu0 0
        %2370 = vmatprep.mubr.bf16.mxu0 0
        %2371 = vmatmul.mubr.bf16.gmra.mxu0 %v2333
        %v2372 = vpop.f32.mrf.mxu0
        %v2373 = vadd.f32 0.0, %v2372
        %v2374 = vpop.f32.mrf.mxu0
        %v2375 = vpop.f32.mrf.mxu0
        %v2376 = vpop.f32.mrf.mxu0
        %2377 = vdwg.mxu0
        %v2379 = vsel %vm2055, %v2030, 0
        %v2382 = vsel %vm2055, %v2046, 0
        %2384 = vmatprep.subr.bf16.mxu0 0
        %2385 = vmatpush1.bf16.xpose.msra.mxu0 0
        %2386 = vmatprep.subr.bf16.mxu0 0
        %2387 = vmatpush1.bf16.xpose.msra.mxu0 0
        %2388 = vmatprep.subr.bf16.mxu0 0
        %2389 = vmatpush1.bf16.xpose.msra.mxu0 0
        %2390 = vmatprep.subr.bf16.mxu0 0
        %2391 = vmatpush1.bf16.xpose.msra.mxu0 0
        %2392 = vmatprep.subr.bf16.mxu0 0
        %2393 = vmatpush1.bf16.xpose.msra.mxu0 0
        %2394 = vmatprep.subr.bf16.mxu0 0
        %2395 = vmatpush1.bf16.xpose.msra.mxu0 0
        %2396 = vmatprep.subr.bf16.mxu0 0
        %2397 = vmatpush1.bf16.xpose.msra.mxu0 0
        %2398 = vmatprep.subr.bf16.mxu0 0
        %2399 = vmatpush1.bf16.xpose.msra.mxu0 %v2382
        %2400 = vmatprep.subr.bf16.mxu0 0
        %2401 = vmatpush2.bf16.xpose.msra.mxu0 0
        %2402 = vmatprep.subr.bf16.mxu0 0
        %2403 = vmatpush2.bf16.xpose.msra.mxu0 0
        %2404 = vmatprep.subr.bf16.mxu0 0
        %2405 = vmatpush2.bf16.xpose.msra.mxu0 0
        %2406 = vmatprep.subr.bf16.mxu0 0
        %2407 = vmatpush2.bf16.xpose.msra.mxu0 0
        %2408 = vmatprep.subr.bf16.mxu0 0
        %2409 = vmatpush2.bf16.xpose.msra.mxu0 0
        %2410 = vmatprep.subr.bf16.mxu0 0
        %2411 = vmatpush2.bf16.xpose.msra.mxu0 0
        %2412 = vmatprep.subr.bf16.mxu0 0
        %2413 = vmatpush2.bf16.xpose.msra.mxu0 0
        %2414 = vmatprep.subr.bf16.mxu0 0
        %2415 = vmatpush2.bf16.xpose.msra.mxu0 0
        %2416 = vmatprep.mubr.bf16.mxu0 0
        %2417 = vmatmul.mubr.bf16.gmra.mxu0 %v2379
        %v2418 = vpop.f32.mrf.mxu0
        %v2419 = vadd.f32 0.0, %v2418
        %v2420 = vpop.f32.mrf.mxu0
        %v2421 = vpop.f32.mrf.mxu0
        %v2422 = vpop.f32.mrf.mxu0
        %2423 = vdwg.mxu0
        %v2425 = vsel %vm2055, %v2031, 0
        %v2428 = vsel %vm2055, %v2047, 0
        %2430 = vmatprep.subr.bf16.mxu0 0
        %2431 = vmatpush1.bf16.xpose.msra.mxu0 0
        %2432 = vmatprep.subr.bf16.mxu0 0
        %2433 = vmatpush1.bf16.xpose.msra.mxu0 0
        %2434 = vmatprep.subr.bf16.mxu0 0
        %2435 = vmatpush1.bf16.xpose.msra.mxu0 0
        %2436 = vmatprep.subr.bf16.mxu0 0
        %2437 = vmatpush1.bf16.xpose.msra.mxu0 0
        %2438 = vmatprep.subr.bf16.mxu0 0
        %2439 = vmatpush1.bf16.xpose.msra.mxu0 0
        %2440 = vmatprep.subr.bf16.mxu0 0
        %2441 = vmatpush1.bf16.xpose.msra.mxu0 0
        %2442 = vmatprep.subr.bf16.mxu0 0
        %2443 = vmatpush1.bf16.xpose.msra.mxu0 0
        %2444 = vmatprep.subr.bf16.mxu0 0
        %2445 = vmatpush1.bf16.xpose.msra.mxu0 %v2428
        %2446 = vmatprep.subr.bf16.mxu0 0
        %2447 = vmatpush2.bf16.xpose.msra.mxu0 0
        %2448 = vmatprep.subr.bf16.mxu0 0
        %2449 = vmatpush2.bf16.xpose.msra.mxu0 0
        %2450 = vmatprep.subr.bf16.mxu0 0
        %2451 = vmatpush2.bf16.xpose.msra.mxu0 0
        %2452 = vmatprep.subr.bf16.mxu0 0
        %2453 = vmatpush2.bf16.xpose.msra.mxu0 0
        %2454 = vmatprep.subr.bf16.mxu0 0
        %2455 = vmatpush2.bf16.xpose.msra.mxu0 0
        %2456 = vmatprep.subr.bf16.mxu0 0
        %2457 = vmatpush2.bf16.xpose.msra.mxu0 0
        %2458 = vmatprep.subr.bf16.mxu0 0
        %2459 = vmatpush2.bf16.xpose.msra.mxu0 0
        %2460 = vmatprep.subr.bf16.mxu0 0
        %2461 = vmatpush2.bf16.xpose.msra.mxu0 0
        %2462 = vmatprep.mubr.bf16.mxu0 0
        %2463 = vmatmul.mubr.bf16.gmra.mxu0 %v2425
        %v2464 = vpop.f32.mrf.mxu0
        %v2465 = vadd.f32 0.0, %v2464
        %v2466 = vpop.f32.mrf.mxu0
        %v2467 = vpop.f32.mrf.mxu0
        %v2468 = vpop.f32.mrf.mxu0
        %2469 = vdwg.mxu0
        %v2471 = vsel %vm2055, %v2032, 0
        %v2474 = vsel %vm2055, %v2048, 0
        %2476 = vmatprep.subr.bf16.mxu0 0
        %2477 = vmatpush1.bf16.xpose.msra.mxu0 0
        %2478 = vmatprep.subr.bf16.mxu0 0
        %2479 = vmatpush1.bf16.xpose.msra.mxu0 0
        %2480 = vmatprep.subr.bf16.mxu0 0
        %2481 = vmatpush1.bf16.xpose.msra.mxu0 0
        %2482 = vmatprep.subr.bf16.mxu0 0
        %2483 = vmatpush1.bf16.xpose.msra.mxu0 0
        %2484 = vmatprep.subr.bf16.mxu0 0
        %2485 = vmatpush1.bf16.xpose.msra.mxu0 0
        %2486 = vmatprep.subr.bf16.mxu0 0
        %2487 = vmatpush1.bf16.xpose.msra.mxu0 0
        %2488 = vmatprep.subr.bf16.mxu0 0
        %2489 = vmatpush1.bf16.xpose.msra.mxu0 0
        %2490 = vmatprep.subr.bf16.mxu0 0
        %2491 = vmatpush1.bf16.xpose.msra.mxu0 %v2474
        %2492 = vmatprep.subr.bf16.mxu0 0
        %2493 = vmatpush2.bf16.xpose.msra.mxu0 0
        %2494 = vmatprep.subr.bf16.mxu0 0
        %2495 = vmatpush2.bf16.xpose.msra.mxu0 0
        %2496 = vmatprep.subr.bf16.mxu0 0
        %2497 = vmatpush2.bf16.xpose.msra.mxu0 0
        %2498 = vmatprep.subr.bf16.mxu0 0
        %2499 = vmatpush2.bf16.xpose.msra.mxu0 0
        %2500 = vmatprep.subr.bf16.mxu0 0
        %2501 = vmatpush2.bf16.xpose.msra.mxu0 0
        %2502 = vmatprep.subr.bf16.mxu0 0
        %2503 = vmatpush2.bf16.xpose.msra.mxu0 0
        %2504 = vmatprep.subr.bf16.mxu0 0
        %2505 = vmatpush2.bf16.xpose.msra.mxu0 0
        %2506 = vmatprep.subr.bf16.mxu0 0
        %2507 = vmatpush2.bf16.xpose.msra.mxu0 0
        %2508 = vmatprep.mubr.bf16.mxu0 0
        %2509 = vmatmul.mubr.bf16.gmra.mxu0 %v2471
        %v2510 = vpop.f32.mrf.mxu0
        %v2511 = vadd.f32 0.0, %v2510
        %v2512 = vpop.f32.mrf.mxu0
        %v2513 = vpop.f32.mrf.mxu0
        %v2514 = vpop.f32.mrf.mxu0
        %2515 = vdwg.mxu0
        %v2517 = vsel %vm2055, %v2033, 0
        %v2520 = vsel %vm2055, %v2049, 0
        %2522 = vmatprep.subr.bf16.mxu0 0
        %2523 = vmatpush1.bf16.xpose.msra.mxu0 0
        %2524 = vmatprep.subr.bf16.mxu0 0
        %2525 = vmatpush1.bf16.xpose.msra.mxu0 0
        %2526 = vmatprep.subr.bf16.mxu0 0
        %2527 = vmatpush1.bf16.xpose.msra.mxu0 0
        %2528 = vmatprep.subr.bf16.mxu0 0
        %2529 = vmatpush1.bf16.xpose.msra.mxu0 0
        %2530 = vmatprep.subr.bf16.mxu0 0
        %2531 = vmatpush1.bf16.xpose.msra.mxu0 0
        %2532 = vmatprep.subr.bf16.mxu0 0
        %2533 = vmatpush1.bf16.xpose.msra.mxu0 0
        %2534 = vmatprep.subr.bf16.mxu0 0
        %2535 = vmatpush1.bf16.xpose.msra.mxu0 0
        %2536 = vmatprep.subr.bf16.mxu0 0
        %2537 = vmatpush1.bf16.xpose.msra.mxu0 %v2520
        %2538 = vmatprep.subr.bf16.mxu0 0
        %2539 = vmatpush2.bf16.xpose.msra.mxu0 0
        %2540 = vmatprep.subr.bf16.mxu0 0
        %2541 = vmatpush2.bf16.xpose.msra.mxu0 0
        %2542 = vmatprep.subr.bf16.mxu0 0
        %2543 = vmatpush2.bf16.xpose.msra.mxu0 0
        %2544 = vmatprep.subr.bf16.mxu0 0
        %2545 = vmatpush2.bf16.xpose.msra.mxu0 0
        %2546 = vmatprep.subr.bf16.mxu0 0
        %2547 = vmatpush2.bf16.xpose.msra.mxu0 0
        %2548 = vmatprep.subr.bf16.mxu0 0
        %2549 = vmatpush2.bf16.xpose.msra.mxu0 0
        %2550 = vmatprep.subr.bf16.mxu0 0
        %2551 = vmatpush2.bf16.xpose.msra.mxu0 0
        %2552 = vmatprep.subr.bf16.mxu0 0
        %2553 = vmatpush2.bf16.xpose.msra.mxu0 0
        %2554 = vmatprep.mubr.bf16.mxu0 0
        %2555 = vmatmul.mubr.bf16.gmra.mxu0 %v2517
        %v2556 = vpop.f32.mrf.mxu0
        %v2557 = vadd.f32 0.0, %v2556
        %v2558 = vpop.f32.mrf.mxu0
        %v2559 = vpop.f32.mrf.mxu0
        %v2560 = vpop.f32.mrf.mxu0
        %2561 = vdwg.mxu0
        %v2563 = vsel %vm2055, %v2034, 0
        %v2566 = vsel %vm2055, %v2050, 0
        %2568 = vmatprep.subr.bf16.mxu0 0
        %2569 = vmatpush1.bf16.xpose.msra.mxu0 0
        %2570 = vmatprep.subr.bf16.mxu0 0
        %2571 = vmatpush1.bf16.xpose.msra.mxu0 0
        %2572 = vmatprep.subr.bf16.mxu0 0
        %2573 = vmatpush1.bf16.xpose.msra.mxu0 0
        %2574 = vmatprep.subr.bf16.mxu0 0
        %2575 = vmatpush1.bf16.xpose.msra.mxu0 0
        %2576 = vmatprep.subr.bf16.mxu0 0
        %2577 = vmatpush1.bf16.xpose.msra.mxu0 0
        %2578 = vmatprep.subr.bf16.mxu0 0
        %2579 = vmatpush1.bf16.xpose.msra.mxu0 0
        %2580 = vmatprep.subr.bf16.mxu0 0
        %2581 = vmatpush1.bf16.xpose.msra.mxu0 0
        %2582 = vmatprep.subr.bf16.mxu0 0
        %2583 = vmatpush1.bf16.xpose.msra.mxu0 %v2566
        %2584 = vmatprep.subr.bf16.mxu0 0
        %2585 = vmatpush2.bf16.xpose.msra.mxu0 0
        %2586 = vmatprep.subr.bf16.mxu0 0
        %2587 = vmatpush2.bf16.xpose.msra.mxu0 0
        %2588 = vmatprep.subr.bf16.mxu0 0
        %2589 = vmatpush2.bf16.xpose.msra.mxu0 0
        %2590 = vmatprep.subr.bf16.mxu0 0
        %2591 = vmatpush2.bf16.xpose.msra.mxu0 0
        %2592 = vmatprep.subr.bf16.mxu0 0
        %2593 = vmatpush2.bf16.xpose.msra.mxu0 0
        %2594 = vmatprep.subr.bf16.mxu0 0
        %2595 = vmatpush2.bf16.xpose.msra.mxu0 0
        %2596 = vmatprep.subr.bf16.mxu0 0
        %2597 = vmatpush2.bf16.xpose.msra.mxu0 0
        %2598 = vmatprep.subr.bf16.mxu0 0
        %2599 = vmatpush2.bf16.xpose.msra.mxu0 0
        %2600 = vmatprep.mubr.bf16.mxu0 0
        %2601 = vmatmul.mubr.bf16.gmra.mxu0 %v2563
        %v2602 = vpop.f32.mrf.mxu0
        %v2603 = vadd.f32 0.0, %v2602
        %v2604 = vpop.f32.mrf.mxu0
        %v2605 = vpop.f32.mrf.mxu0
        %v2606 = vpop.f32.mrf.mxu0
        %2607 = vdwg.mxu0
        %v2609 = vsel %vm2055, %v2035, 0
        %v2612 = vsel %vm2055, %v2051, 0
        %2614 = vmatprep.subr.bf16.mxu0 0
        %2615 = vmatpush1.bf16.xpose.msra.mxu0 0
        %2616 = vmatprep.subr.bf16.mxu0 0
        %2617 = vmatpush1.bf16.xpose.msra.mxu0 0
        %2618 = vmatprep.subr.bf16.mxu0 0
        %2619 = vmatpush1.bf16.xpose.msra.mxu0 0
        %2620 = vmatprep.subr.bf16.mxu0 0
        %2621 = vmatpush1.bf16.xpose.msra.mxu0 0
        %2622 = vmatprep.subr.bf16.mxu0 0
        %2623 = vmatpush1.bf16.xpose.msra.mxu0 0
        %2624 = vmatprep.subr.bf16.mxu0 0
        %2625 = vmatpush1.bf16.xpose.msra.mxu0 0
        %2626 = vmatprep.subr.bf16.mxu0 0
        %2627 = vmatpush1.bf16.xpose.msra.mxu0 0
        %2628 = vmatprep.subr.bf16.mxu0 0
        %2629 = vmatpush1.bf16.xpose.msra.mxu0 %v2612
        %2630 = vmatprep.subr.bf16.mxu0 0
        %2631 = vmatpush2.bf16.xpose.msra.mxu0 0
        %2632 = vmatprep.subr.bf16.mxu0 0
        %2633 = vmatpush2.bf16.xpose.msra.mxu0 0
        %2634 = vmatprep.subr.bf16.mxu0 0
        %2635 = vmatpush2.bf16.xpose.msra.mxu0 0
        %2636 = vmatprep.subr.bf16.mxu0 0
        %2637 = vmatpush2.bf16.xpose.msra.mxu0 0
        %2638 = vmatprep.subr.bf16.mxu0 0
        %2639 = vmatpush2.bf16.xpose.msra.mxu0 0
        %2640 = vmatprep.subr.bf16.mxu0 0
        %2641 = vmatpush2.bf16.xpose.msra.mxu0 0
        %2642 = vmatprep.subr.bf16.mxu0 0
        %2643 = vmatpush2.bf16.xpose.msra.mxu0 0
        %2644 = vmatprep.subr.bf16.mxu0 0
        %2645 = vmatpush2.bf16.xpose.msra.mxu0 0
        %2646 = vmatprep.mubr.bf16.mxu0 0
        %2647 = vmatmul.mubr.bf16.gmra.mxu0 %v2609
        %v2648 = vpop.f32.mrf.mxu0
        %v2649 = vadd.f32 0.0, %v2648
        %v2650 = vpop.f32.mrf.mxu0
        %v2651 = vpop.f32.mrf.mxu0
        %v2652 = vpop.f32.mrf.mxu0
        %2653 = vdwg.mxu0
        %v2655 = vsel %vm2055, %v2036, 0
        %v2658 = vsel %vm2055, %v2052, 0
        %2660 = vmatprep.subr.bf16.mxu0 0
        %2661 = vmatpush1.bf16.xpose.msra.mxu0 0
        %2662 = vmatprep.subr.bf16.mxu0 0
        %2663 = vmatpush1.bf16.xpose.msra.mxu0 0
        %2664 = vmatprep.subr.bf16.mxu0 0
        %2665 = vmatpush1.bf16.xpose.msra.mxu0 0
        %2666 = vmatprep.subr.bf16.mxu0 0
        %2667 = vmatpush1.bf16.xpose.msra.mxu0 0
        %2668 = vmatprep.subr.bf16.mxu0 0
        %2669 = vmatpush1.bf16.xpose.msra.mxu0 0
        %2670 = vmatprep.subr.bf16.mxu0 0
        %2671 = vmatpush1.bf16.xpose.msra.mxu0 0
        %2672 = vmatprep.subr.bf16.mxu0 0
        %2673 = vmatpush1.bf16.xpose.msra.mxu0 0
        %2674 = vmatprep.subr.bf16.mxu0 0
        %2675 = vmatpush1.bf16.xpose.msra.mxu0 %v2658
        %2676 = vmatprep.subr.bf16.mxu0 0
        %2677 = vmatpush2.bf16.xpose.msra.mxu0 0
        %2678 = vmatprep.subr.bf16.mxu0 0
        %2679 = vmatpush2.bf16.xpose.msra.mxu0 0
        %2680 = vmatprep.subr.bf16.mxu0 0
        %2681 = vmatpush2.bf16.xpose.msra.mxu0 0
        %2682 = vmatprep.subr.bf16.mxu0 0
        %2683 = vmatpush2.bf16.xpose.msra.mxu0 0
        %2684 = vmatprep.subr.bf16.mxu0 0
        %2685 = vmatpush2.bf16.xpose.msra.mxu0 0
        %2686 = vmatprep.subr.bf16.mxu0 0
        %2687 = vmatpush2.bf16.xpose.msra.mxu0 0
        %2688 = vmatprep.subr.bf16.mxu0 0
        %2689 = vmatpush2.bf16.xpose.msra.mxu0 0
        %2690 = vmatprep.subr.bf16.mxu0 0
        %2691 = vmatpush2.bf16.xpose.msra.mxu0 0
        %2692 = vmatprep.mubr.bf16.mxu0 0
        %2693 = vmatmul.mubr.bf16.gmra.mxu0 %v2655
        %v2694 = vpop.f32.mrf.mxu0
        %v2695 = vadd.f32 0.0, %v2694
        %v2696 = vpop.f32.mrf.mxu0
        %v2697 = vpop.f32.mrf.mxu0
        %v2698 = vpop.f32.mrf.mxu0
        %2699 = vdwg.mxu0
        %v2701 = vsel %vm2055, %v2037, 0
        %v2704 = vsel %vm2055, %v2053, 0
        %2706 = vmatprep.subr.bf16.mxu0 0
        %2707 = vmatpush1.bf16.xpose.msra.mxu0 0
        %2708 = vmatprep.subr.bf16.mxu0 0
        %2709 = vmatpush1.bf16.xpose.msra.mxu0 0
        %2710 = vmatprep.subr.bf16.mxu0 0
        %2711 = vmatpush1.bf16.xpose.msra.mxu0 0
        %2712 = vmatprep.subr.bf16.mxu0 0
        %2713 = vmatpush1.bf16.xpose.msra.mxu0 0
        %2714 = vmatprep.subr.bf16.mxu0 0
        %2715 = vmatpush1.bf16.xpose.msra.mxu0 0
        %2716 = vmatprep.subr.bf16.mxu0 0
        %2717 = vmatpush1.bf16.xpose.msra.mxu0 0
        %2718 = vmatprep.subr.bf16.mxu0 0
        %2719 = vmatpush1.bf16.xpose.msra.mxu0 0
        %2720 = vmatprep.subr.bf16.mxu0 0
        %2721 = vmatpush1.bf16.xpose.msra.mxu0 %v2704
        %2722 = vmatprep.subr.bf16.mxu0 0
        %2723 = vmatpush2.bf16.xpose.msra.mxu0 0
        %2724 = vmatprep.subr.bf16.mxu0 0
        %2725 = vmatpush2.bf16.xpose.msra.mxu0 0
        %2726 = vmatprep.subr.bf16.mxu0 0
        %2727 = vmatpush2.bf16.xpose.msra.mxu0 0
        %2728 = vmatprep.subr.bf16.mxu0 0
        %2729 = vmatpush2.bf16.xpose.msra.mxu0 0
        %2730 = vmatprep.subr.bf16.mxu0 0
        %2731 = vmatpush2.bf16.xpose.msra.mxu0 0
        %2732 = vmatprep.subr.bf16.mxu0 0
        %2733 = vmatpush2.bf16.xpose.msra.mxu0 0
        %2734 = vmatprep.subr.bf16.mxu0 0
        %2735 = vmatpush2.bf16.xpose.msra.mxu0 0
        %2736 = vmatprep.subr.bf16.mxu0 0
        %2737 = vmatpush2.bf16.xpose.msra.mxu0 0
        %2738 = vmatprep.mubr.bf16.mxu0 0
        %2739 = vmatmul.mubr.bf16.gmra.mxu0 %v2701
        %v2740 = vpop.f32.mrf.mxu0
        %v2741 = vadd.f32 0.0, %v2740
        %v2742 = vpop.f32.mrf.mxu0
        %v2743 = vpop.f32.mrf.mxu0
        %v2744 = vpop.f32.mrf.mxu0
        %2745 = vdwg.mxu0
        %v2747 = vsel %vm2055, %v2038, 0
        %v2750 = vsel %vm2055, %v2054, 0
        %2752 = vmatprep.subr.bf16.mxu0 0
        %2753 = vmatpush1.bf16.xpose.msra.mxu0 0
        %2754 = vmatprep.subr.bf16.mxu0 0
        %2755 = vmatpush1.bf16.xpose.msra.mxu0 0
        %2756 = vmatprep.subr.bf16.mxu0 0
        %2757 = vmatpush1.bf16.xpose.msra.mxu0 0
        %2758 = vmatprep.subr.bf16.mxu0 0
        %2759 = vmatpush1.bf16.xpose.msra.mxu0 0
        %2760 = vmatprep.subr.bf16.mxu0 0
        %2761 = vmatpush1.bf16.xpose.msra.mxu0 0
        %2762 = vmatprep.subr.bf16.mxu0 0
        %2763 = vmatpush1.bf16.xpose.msra.mxu0 0
        %2764 = vmatprep.subr.bf16.mxu0 0
        %2765 = vmatpush1.bf16.xpose.msra.mxu0 0
        %2766 = vmatprep.subr.bf16.mxu0 0
        %2767 = vmatpush1.bf16.xpose.msra.mxu0 %v2750
        %2768 = vmatprep.subr.bf16.mxu0 0
        %2769 = vmatpush2.bf16.xpose.msra.mxu0 0
        %2770 = vmatprep.subr.bf16.mxu0 0
        %2771 = vmatpush2.bf16.xpose.msra.mxu0 0
        %2772 = vmatprep.subr.bf16.mxu0 0
        %2773 = vmatpush2.bf16.xpose.msra.mxu0 0
        %2774 = vmatprep.subr.bf16.mxu0 0
        %2775 = vmatpush2.bf16.xpose.msra.mxu0 0
        %2776 = vmatprep.subr.bf16.mxu0 0
        %2777 = vmatpush2.bf16.xpose.msra.mxu0 0
        %2778 = vmatprep.subr.bf16.mxu0 0
        %2779 = vmatpush2.bf16.xpose.msra.mxu0 0
        %2780 = vmatprep.subr.bf16.mxu0 0
        %2781 = vmatpush2.bf16.xpose.msra.mxu0 0
        %2782 = vmatprep.subr.bf16.mxu0 0
        %2783 = vmatpush2.bf16.xpose.msra.mxu0 0
        %2784 = vmatprep.mubr.bf16.mxu0 0
        %2785 = vmatmul.mubr.bf16.gmra.mxu0 %v2747
        %v2786 = vpop.f32.mrf.mxu0
        %v2787 = vadd.f32 0.0, %v2786
        %v2788 = vpop.f32.mrf.mxu0
        %v2789 = vpop.f32.mrf.mxu0
        %v2790 = vpop.f32.mrf.mxu0
        %2791 = vdwg.mxu0
        %v2792 = vsel %vm2055, %v2097, -inf
        %2793 = vmax.xlane.f32.xlu0 %v2792
        %v2794 = vpop.xlane.xlu0 %2793
        %v2795 = vsel %vm2055, %v2143, -inf
        %2796 = vmax.xlane.f32.xlu0 %v2795
        %v2797 = vpop.xlane.xlu0 %2796
        %v2798 = vsel %vm2055, %v2189, -inf
        %2799 = vmax.xlane.f32.xlu0 %v2798
        %v2800 = vpop.xlane.xlu0 %2799
        %v2801 = vsel %vm2055, %v2235, -inf
        %2802 = vmax.xlane.f32.xlu0 %v2801
        %v2803 = vpop.xlane.xlu0 %2802
        %v2804 = vsel %vm2055, %v2281, -inf
        %2805 = vmax.xlane.f32.xlu0 %v2804
        %v2806 = vpop.xlane.xlu0 %2805
        %v2807 = vsel %vm2055, %v2327, -inf
        %2808 = vmax.xlane.f32.xlu0 %v2807
        %v2809 = vpop.xlane.xlu0 %2808
        %v2810 = vsel %vm2055, %v2373, -inf
        %2811 = vmax.xlane.f32.xlu0 %v2810
        %v2812 = vpop.xlane.xlu0 %2811
        %v2813 = vsel %vm2055, %v2419, -inf
        %2814 = vmax.xlane.f32.xlu0 %v2813
        %v2815 = vpop.xlane.xlu0 %2814
        %v2816 = vsel %vm2055, %v2465, -inf
        %2817 = vmax.xlane.f32.xlu0 %v2816
        %v2818 = vpop.xlane.xlu0 %2817
        %v2819 = vsel %vm2055, %v2511, -inf
        %2820 = vmax.xlane.f32.xlu0 %v2819
        %v2821 = vpop.xlane.xlu0 %2820
        %v2822 = vsel %vm2055, %v2557, -inf
        %2823 = vmax.xlane.f32.xlu0 %v2822
        %v2824 = vpop.xlane.xlu0 %2823
        %v2825 = vsel %vm2055, %v2603, -inf
        %2826 = vmax.xlane.f32.xlu0 %v2825
        %v2827 = vpop.xlane.xlu0 %2826
        %v2828 = vsel %vm2055, %v2649, -inf
        %2829 = vmax.xlane.f32.xlu0 %v2828
        %v2830 = vpop.xlane.xlu0 %2829
        %v2831 = vsel %vm2055, %v2695, -inf
        %2832 = vmax.xlane.f32.xlu0 %v2831
        %v2833 = vpop.xlane.xlu0 %2832
        %v2834 = vsel %vm2055, %v2741, -inf
        %2835 = vmax.xlane.f32.xlu0 %v2834
        %v2836 = vpop.xlane.xlu0 %2835
        %v2837 = vsel %vm2055, %v2787, -inf
        %2838 = vmax.xlane.f32.xlu0 %v2837
        %v2839 = vpop.xlane.xlu0 %2838
        %v2840 = vsub.f32 %v2097, %v2794
        %v2841 = vsub.f32 %v2143, %v2797
        %v2842 = vsub.f32 %v2189, %v2800
        %v2843 = vsub.f32 %v2235, %v2803
        %v2844 = vsub.f32 %v2281, %v2806
        %v2845 = vsub.f32 %v2327, %v2809
        %v2846 = vsub.f32 %v2373, %v2812
        %v2847 = vsub.f32 %v2419, %v2815
        %v2848 = vsub.f32 %v2465, %v2818
        %v2849 = vsub.f32 %v2511, %v2821
        %v2850 = vsub.f32 %v2557, %v2824
        %v2851 = vsub.f32 %v2603, %v2827
        %v2852 = vsub.f32 %v2649, %v2830
        %v2853 = vsub.f32 %v2695, %v2833
        %v2854 = vsub.f32 %v2741, %v2836
        %v2855 = vsub.f32 %v2787, %v2839
        %v2856 = vmul.f32 %v2840, 1.442695
        %v2857 = vpow.pop %v2856
        %v2858 = vmul.f32 %v2841, 1.442695
        %v2859 = vpow.pop %v2858
        %v2860 = vmul.f32 %v2842, 1.442695
        %v2861 = vpow.pop %v2860
        %v2862 = vmul.f32 %v2843, 1.442695
        %v2863 = vpow.pop %v2862
        %v2864 = vmul.f32 %v2844, 1.442695
        %v2865 = vpow.pop %v2864
        %v2866 = vmul.f32 %v2845, 1.442695
        %v2867 = vpow.pop %v2866
        %v2868 = vmul.f32 %v2846, 1.442695
        %v2869 = vpow.pop %v2868
        %v2870 = vmul.f32 %v2847, 1.442695
        %v2871 = vpow.pop %v2870
        %v2872 = vmul.f32 %v2848, 1.442695
        %v2873 = vpow.pop %v2872
        %v2874 = vmul.f32 %v2849, 1.442695
        %v2875 = vpow.pop %v2874
        %v2876 = vmul.f32 %v2850, 1.442695
        %v2877 = vpow.pop %v2876
        %v2878 = vmul.f32 %v2851, 1.442695
        %v2879 = vpow.pop %v2878
        %v2880 = vmul.f32 %v2852, 1.442695
        %v2881 = vpow.pop %v2880
        %v2882 = vmul.f32 %v2853, 1.442695
        %v2883 = vpow.pop %v2882
        %v2884 = vmul.f32 %v2854, 1.442695
        %v2885 = vpow.pop %v2884
        %v2886 = vmul.f32 %v2855, 1.442695
        %v2887 = vpow.pop %v2886
        %v2888 = vsel %vm2055, %v2857, 0.0
        %2889 = vadd.xlane.f32.xlu0 %v2888
        %v2890 = vpop.xlane.xlu0 %2889
        %v2891 = vsel %vm2055, %v2859, 0.0
        %2892 = vadd.xlane.f32.xlu0 %v2891
        %v2893 = vpop.xlane.xlu0 %2892
        %v2894 = vsel %vm2055, %v2861, 0.0
        %2895 = vadd.xlane.f32.xlu0 %v2894
        %v2896 = vpop.xlane.xlu0 %2895
        %v2897 = vsel %vm2055, %v2863, 0.0
        %2898 = vadd.xlane.f32.xlu0 %v2897
        %v2899 = vpop.xlane.xlu0 %2898
        %v2900 = vsel %vm2055, %v2865, 0.0
        %2901 = vadd.xlane.f32.xlu0 %v2900
        %v2902 = vpop.xlane.xlu0 %2901
        %v2903 = vsel %vm2055, %v2867, 0.0
        %2904 = vadd.xlane.f32.xlu0 %v2903
        %v2905 = vpop.xlane.xlu0 %2904
        %v2906 = vsel %vm2055, %v2869, 0.0
        %2907 = vadd.xlane.f32.xlu0 %v2906
        %v2908 = vpop.xlane.xlu0 %2907
        %v2909 = vsel %vm2055, %v2871, 0.0
        %2910 = vadd.xlane.f32.xlu0 %v2909
        %v2911 = vpop.xlane.xlu0 %2910
        %v2912 = vsel %vm2055, %v2873, 0.0
        %2913 = vadd.xlane.f32.xlu0 %v2912
        %v2914 = vpop.xlane.xlu0 %2913
        %v2915 = vsel %vm2055, %v2875, 0.0
        %2916 = vadd.xlane.f32.xlu0 %v2915
        %v2917 = vpop.xlane.xlu0 %2916
        %v2918 = vsel %vm2055, %v2877, 0.0
        %2919 = vadd.xlane.f32.xlu0 %v2918
        %v2920 = vpop.xlane.xlu0 %2919
        %v2921 = vsel %vm2055, %v2879, 0.0
        %2922 = vadd.xlane.f32.xlu0 %v2921
        %v2923 = vpop.xlane.xlu0 %2922
        %v2924 = vsel %vm2055, %v2881, 0.0
        %2925 = vadd.xlane.f32.xlu0 %v2924
        %v2926 = vpop.xlane.xlu0 %2925
        %v2927 = vsel %vm2055, %v2883, 0.0
        %2928 = vadd.xlane.f32.xlu0 %v2927
        %v2929 = vpop.xlane.xlu0 %2928
        %v2930 = vsel %vm2055, %v2885, 0.0
        %2931 = vadd.xlane.f32.xlu0 %v2930
        %v2932 = vpop.xlane.xlu0 %2931
        %v2933 = vsel %vm2055, %v2887, 0.0
        %2934 = vadd.xlane.f32.xlu0 %v2933
        %v2935 = vpop.xlane.xlu0 %2934
        %v2936 = vrcp.pop %v2890
        %v2937 = vrcp.pop %v2893
        %v2938 = vrcp.pop %v2896
        %v2939 = vrcp.pop %v2899
        %v2940 = vrcp.pop %v2902
        %v2941 = vrcp.pop %v2905
        %v2942 = vrcp.pop %v2908
        %v2943 = vrcp.pop %v2911
        %v2944 = vrcp.pop %v2914
        %v2945 = vrcp.pop %v2917
        %v2946 = vrcp.pop %v2920
        %v2947 = vrcp.pop %v2923
        %v2948 = vrcp.pop %v2926
        %v2949 = vrcp.pop %v2929
        %v2950 = vrcp.pop %v2932
        %v2951 = vrcp.pop %v2935
        %v2952 = vmul.f32 %v2857, %v2936
        %v2953 = vmul.f32 %v2859, %v2937
        %v2954 = vmul.f32 %v2861, %v2938
        %v2955 = vmul.f32 %v2863, %v2939
        %v2956 = vmul.f32 %v2865, %v2940
        %v2957 = vmul.f32 %v2867, %v2941
        %v2958 = vmul.f32 %v2869, %v2942
        %v2959 = vmul.f32 %v2871, %v2943
        %v2960 = vmul.f32 %v2873, %v2944
        %v2961 = vmul.f32 %v2875, %v2945
        %v2962 = vmul.f32 %v2877, %v2946
        %v2963 = vmul.f32 %v2879, %v2947
        %v2964 = vmul.f32 %v2881, %v2948
        %v2965 = vmul.f32 %v2883, %v2949
        %v2966 = vmul.f32 %v2885, %v2950
        %v2967 = vmul.f32 %v2887, %v2951
        %v2968 = vpack.c.bf16 %v937, %v937
        %v2969 = vpack.c.bf16 %v940, %v940
        %v2970 = vpack.c.bf16 %v945, %v945
        %v2971 = vpack.c.bf16 %v948, %v948
        %v2972 = vpack.c.bf16 %v953, %v953
        %v2973 = vpack.c.bf16 %v956, %v956
        %v2974 = vpack.c.bf16 %v961, %v961
        %v2975 = vpack.c.bf16 %v964, %v964
        %v2976 = vpack.c.bf16 %v969, %v969
        %v2977 = vpack.c.bf16 %v972, %v972
        %v2978 = vpack.c.bf16 %v977, %v977
        %v2979 = vpack.c.bf16 %v980, %v980
        %v2980 = vpack.c.bf16 %v985, %v985
        %v2981 = vpack.c.bf16 %v988, %v988
        %v2982 = vpack.c.bf16 %v993, %v993
        %v2983 = vpack.c.bf16 %v996, %v996
        %v2984 = vpack.c.bf16 %v2952, %v2952
        %v2985 = vpack.c.bf16 %v2953, %v2953
        %v2986 = vpack.c.bf16 %v2954, %v2954
        %v2987 = vpack.c.bf16 %v2955, %v2955
        %v2988 = vpack.c.bf16 %v2956, %v2956
        %v2989 = vpack.c.bf16 %v2957, %v2957
        %v2990 = vpack.c.bf16 %v2958, %v2958
        %v2991 = vpack.c.bf16 %v2959, %v2959
        %v2992 = vpack.c.bf16 %v2960, %v2960
        %v2993 = vpack.c.bf16 %v2961, %v2961
        %v2994 = vpack.c.bf16 %v2962, %v2962
        %v2995 = vpack.c.bf16 %v2963, %v2963
        %v2996 = vpack.c.bf16 %v2964, %v2964
        %v2997 = vpack.c.bf16 %v2965, %v2965
        %v2998 = vpack.c.bf16 %v2966, %v2966
        %v2999 = vpack.c.bf16 %v2967, %v2967
        %v3001 = vsel %vm2055, %v2968, 0
        %v3004 = vsel %vm2055, %v2984, 0
        %3006 = vmatprep.subr.bf16.mxu0 0
        %3007 = vmatpush1.bf16.xpose.msra.mxu0 0
        %3008 = vmatprep.subr.bf16.mxu0 0
        %3009 = vmatpush1.bf16.xpose.msra.mxu0 0
        %3010 = vmatprep.subr.bf16.mxu0 0
        %3011 = vmatpush1.bf16.xpose.msra.mxu0 0
        %3012 = vmatprep.subr.bf16.mxu0 0
        %3013 = vmatpush1.bf16.xpose.msra.mxu0 0
        %3014 = vmatprep.subr.bf16.mxu0 0
        %3015 = vmatpush1.bf16.xpose.msra.mxu0 0
        %3016 = vmatprep.subr.bf16.mxu0 0
        %3017 = vmatpush1.bf16.xpose.msra.mxu0 0
        %3018 = vmatprep.subr.bf16.mxu0 0
        %3019 = vmatpush1.bf16.xpose.msra.mxu0 0
        %3020 = vmatprep.subr.bf16.mxu0 0
        %3021 = vmatpush1.bf16.xpose.msra.mxu0 %v3004
        %3022 = vmatprep.subr.bf16.mxu0 0
        %3023 = vmatpush2.bf16.xpose.msra.mxu0 0
        %3024 = vmatprep.subr.bf16.mxu0 0
        %3025 = vmatpush2.bf16.xpose.msra.mxu0 0
        %3026 = vmatprep.subr.bf16.mxu0 0
        %3027 = vmatpush2.bf16.xpose.msra.mxu0 0
        %3028 = vmatprep.subr.bf16.mxu0 0
        %3029 = vmatpush2.bf16.xpose.msra.mxu0 0
        %3030 = vmatprep.subr.bf16.mxu0 0
        %3031 = vmatpush2.bf16.xpose.msra.mxu0 0
        %3032 = vmatprep.subr.bf16.mxu0 0
        %3033 = vmatpush2.bf16.xpose.msra.mxu0 0
        %3034 = vmatprep.subr.bf16.mxu0 0
        %3035 = vmatpush2.bf16.xpose.msra.mxu0 0
        %3036 = vmatprep.subr.bf16.mxu0 0
        %3037 = vmatpush2.bf16.xpose.msra.mxu0 0
        %3038 = vmatprep.mubr.bf16.mxu0 0
        %3039 = vmatmul.mubr.bf16.gmra.mxu0 %v3001
        %v3040 = vpop.f32.mrf.mxu0
        %v3041 = vadd.f32 0.0, %v3040
        %v3042 = vpop.f32.mrf.mxu0
        %v3043 = vpop.f32.mrf.mxu0
        %v3044 = vpop.f32.mrf.mxu0
        %3045 = vdwg.mxu0
        %v3047 = vsel %vm2055, %v2969, 0
        %v3050 = vsel %vm2055, %v2985, 0
        %3052 = vmatprep.subr.bf16.mxu0 0
        %3053 = vmatpush1.bf16.xpose.msra.mxu0 0
        %3054 = vmatprep.subr.bf16.mxu0 0
        %3055 = vmatpush1.bf16.xpose.msra.mxu0 0
        %3056 = vmatprep.subr.bf16.mxu0 0
        %3057 = vmatpush1.bf16.xpose.msra.mxu0 0
        %3058 = vmatprep.subr.bf16.mxu0 0
        %3059 = vmatpush1.bf16.xpose.msra.mxu0 0
        %3060 = vmatprep.subr.bf16.mxu0 0
        %3061 = vmatpush1.bf16.xpose.msra.mxu0 0
        %3062 = vmatprep.subr.bf16.mxu0 0
        %3063 = vmatpush1.bf16.xpose.msra.mxu0 0
        %3064 = vmatprep.subr.bf16.mxu0 0
        %3065 = vmatpush1.bf16.xpose.msra.mxu0 0
        %3066 = vmatprep.subr.bf16.mxu0 0
        %3067 = vmatpush1.bf16.xpose.msra.mxu0 %v3050
        %3068 = vmatprep.subr.bf16.mxu0 0
        %3069 = vmatpush2.bf16.xpose.msra.mxu0 0
        %3070 = vmatprep.subr.bf16.mxu0 0
        %3071 = vmatpush2.bf16.xpose.msra.mxu0 0
        %3072 = vmatprep.subr.bf16.mxu0 0
        %3073 = vmatpush2.bf16.xpose.msra.mxu0 0
        %3074 = vmatprep.subr.bf16.mxu0 0
        %3075 = vmatpush2.bf16.xpose.msra.mxu0 0
        %3076 = vmatprep.subr.bf16.mxu0 0
        %3077 = vmatpush2.bf16.xpose.msra.mxu0 0
        %3078 = vmatprep.subr.bf16.mxu0 0
        %3079 = vmatpush2.bf16.xpose.msra.mxu0 0
        %3080 = vmatprep.subr.bf16.mxu0 0
        %3081 = vmatpush2.bf16.xpose.msra.mxu0 0
        %3082 = vmatprep.subr.bf16.mxu0 0
        %3083 = vmatpush2.bf16.xpose.msra.mxu0 0
        %3084 = vmatprep.mubr.bf16.mxu0 0
        %3085 = vmatmul.mubr.bf16.gmra.mxu0 %v3047
        %v3086 = vpop.f32.mrf.mxu0
        %v3087 = vadd.f32 0.0, %v3086
        %v3088 = vpop.f32.mrf.mxu0
        %v3089 = vpop.f32.mrf.mxu0
        %v3090 = vpop.f32.mrf.mxu0
        %3091 = vdwg.mxu0
        %v3093 = vsel %vm2055, %v2970, 0
        %v3096 = vsel %vm2055, %v2986, 0
        %3098 = vmatprep.subr.bf16.mxu0 0
        %3099 = vmatpush1.bf16.xpose.msra.mxu0 0
        %3100 = vmatprep.subr.bf16.mxu0 0
        %3101 = vmatpush1.bf16.xpose.msra.mxu0 0
        %3102 = vmatprep.subr.bf16.mxu0 0
        %3103 = vmatpush1.bf16.xpose.msra.mxu0 0
        %3104 = vmatprep.subr.bf16.mxu0 0
        %3105 = vmatpush1.bf16.xpose.msra.mxu0 0
        %3106 = vmatprep.subr.bf16.mxu0 0
        %3107 = vmatpush1.bf16.xpose.msra.mxu0 0
        %3108 = vmatprep.subr.bf16.mxu0 0
        %3109 = vmatpush1.bf16.xpose.msra.mxu0 0
        %3110 = vmatprep.subr.bf16.mxu0 0
        %3111 = vmatpush1.bf16.xpose.msra.mxu0 0
        %3112 = vmatprep.subr.bf16.mxu0 0
        %3113 = vmatpush1.bf16.xpose.msra.mxu0 %v3096
        %3114 = vmatprep.subr.bf16.mxu0 0
        %3115 = vmatpush2.bf16.xpose.msra.mxu0 0
        %3116 = vmatprep.subr.bf16.mxu0 0
        %3117 = vmatpush2.bf16.xpose.msra.mxu0 0
        %3118 = vmatprep.subr.bf16.mxu0 0
        %3119 = vmatpush2.bf16.xpose.msra.mxu0 0
        %3120 = vmatprep.subr.bf16.mxu0 0
        %3121 = vmatpush2.bf16.xpose.msra.mxu0 0
        %3122 = vmatprep.subr.bf16.mxu0 0
        %3123 = vmatpush2.bf16.xpose.msra.mxu0 0
        %3124 = vmatprep.subr.bf16.mxu0 0
        %3125 = vmatpush2.bf16.xpose.msra.mxu0 0
        %3126 = vmatprep.subr.bf16.mxu0 0
        %3127 = vmatpush2.bf16.xpose.msra.mxu0 0
        %3128 = vmatprep.subr.bf16.mxu0 0
        %3129 = vmatpush2.bf16.xpose.msra.mxu0 0
        %3130 = vmatprep.mubr.bf16.mxu0 0
        %3131 = vmatmul.mubr.bf16.gmra.mxu0 %v3093
        %v3132 = vpop.f32.mrf.mxu0
        %v3133 = vadd.f32 0.0, %v3132
        %v3134 = vpop.f32.mrf.mxu0
        %v3135 = vpop.f32.mrf.mxu0
        %v3136 = vpop.f32.mrf.mxu0
        %3137 = vdwg.mxu0
        %v3139 = vsel %vm2055, %v2971, 0
        %v3142 = vsel %vm2055, %v2987, 0
        %3144 = vmatprep.subr.bf16.mxu0 0
        %3145 = vmatpush1.bf16.xpose.msra.mxu0 0
        %3146 = vmatprep.subr.bf16.mxu0 0
        %3147 = vmatpush1.bf16.xpose.msra.mxu0 0
        %3148 = vmatprep.subr.bf16.mxu0 0
        %3149 = vmatpush1.bf16.xpose.msra.mxu0 0
        %3150 = vmatprep.subr.bf16.mxu0 0
        %3151 = vmatpush1.bf16.xpose.msra.mxu0 0
        %3152 = vmatprep.subr.bf16.mxu0 0
        %3153 = vmatpush1.bf16.xpose.msra.mxu0 0
        %3154 = vmatprep.subr.bf16.mxu0 0
        %3155 = vmatpush1.bf16.xpose.msra.mxu0 0
        %3156 = vmatprep.subr.bf16.mxu0 0
        %3157 = vmatpush1.bf16.xpose.msra.mxu0 0
        %3158 = vmatprep.subr.bf16.mxu0 0
        %3159 = vmatpush1.bf16.xpose.msra.mxu0 %v3142
        %3160 = vmatprep.subr.bf16.mxu0 0
        %3161 = vmatpush2.bf16.xpose.msra.mxu0 0
        %3162 = vmatprep.subr.bf16.mxu0 0
        %3163 = vmatpush2.bf16.xpose.msra.mxu0 0
        %3164 = vmatprep.subr.bf16.mxu0 0
        %3165 = vmatpush2.bf16.xpose.msra.mxu0 0
        %3166 = vmatprep.subr.bf16.mxu0 0
        %3167 = vmatpush2.bf16.xpose.msra.mxu0 0
        %3168 = vmatprep.subr.bf16.mxu0 0
        %3169 = vmatpush2.bf16.xpose.msra.mxu0 0
        %3170 = vmatprep.subr.bf16.mxu0 0
        %3171 = vmatpush2.bf16.xpose.msra.mxu0 0
        %3172 = vmatprep.subr.bf16.mxu0 0
        %3173 = vmatpush2.bf16.xpose.msra.mxu0 0
        %3174 = vmatprep.subr.bf16.mxu0 0
        %3175 = vmatpush2.bf16.xpose.msra.mxu0 0
        %3176 = vmatprep.mubr.bf16.mxu0 0
        %3177 = vmatmul.mubr.bf16.gmra.mxu0 %v3139
        %v3178 = vpop.f32.mrf.mxu0
        %v3179 = vadd.f32 0.0, %v3178
        %v3180 = vpop.f32.mrf.mxu0
        %v3181 = vpop.f32.mrf.mxu0
        %v3182 = vpop.f32.mrf.mxu0
        %3183 = vdwg.mxu0
        %v3185 = vsel %vm2055, %v2972, 0
        %v3188 = vsel %vm2055, %v2988, 0
        %3190 = vmatprep.subr.bf16.mxu0 0
        %3191 = vmatpush1.bf16.xpose.msra.mxu0 0
        %3192 = vmatprep.subr.bf16.mxu0 0
        %3193 = vmatpush1.bf16.xpose.msra.mxu0 0
        %3194 = vmatprep.subr.bf16.mxu0 0
        %3195 = vmatpush1.bf16.xpose.msra.mxu0 0
        %3196 = vmatprep.subr.bf16.mxu0 0
        %3197 = vmatpush1.bf16.xpose.msra.mxu0 0
        %3198 = vmatprep.subr.bf16.mxu0 0
        %3199 = vmatpush1.bf16.xpose.msra.mxu0 0
        %3200 = vmatprep.subr.bf16.mxu0 0
        %3201 = vmatpush1.bf16.xpose.msra.mxu0 0
        %3202 = vmatprep.subr.bf16.mxu0 0
        %3203 = vmatpush1.bf16.xpose.msra.mxu0 0
        %3204 = vmatprep.subr.bf16.mxu0 0
        %3205 = vmatpush1.bf16.xpose.msra.mxu0 %v3188
        %3206 = vmatprep.subr.bf16.mxu0 0
        %3207 = vmatpush2.bf16.xpose.msra.mxu0 0
        %3208 = vmatprep.subr.bf16.mxu0 0
        %3209 = vmatpush2.bf16.xpose.msra.mxu0 0
        %3210 = vmatprep.subr.bf16.mxu0 0
        %3211 = vmatpush2.bf16.xpose.msra.mxu0 0
        %3212 = vmatprep.subr.bf16.mxu0 0
        %3213 = vmatpush2.bf16.xpose.msra.mxu0 0
        %3214 = vmatprep.subr.bf16.mxu0 0
        %3215 = vmatpush2.bf16.xpose.msra.mxu0 0
        %3216 = vmatprep.subr.bf16.mxu0 0
        %3217 = vmatpush2.bf16.xpose.msra.mxu0 0
        %3218 = vmatprep.subr.bf16.mxu0 0
        %3219 = vmatpush2.bf16.xpose.msra.mxu0 0
        %3220 = vmatprep.subr.bf16.mxu0 0
        %3221 = vmatpush2.bf16.xpose.msra.mxu0 0
        %3222 = vmatprep.mubr.bf16.mxu0 0
        %3223 = vmatmul.mubr.bf16.gmra.mxu0 %v3185
        %v3224 = vpop.f32.mrf.mxu0
        %v3225 = vadd.f32 0.0, %v3224
        %v3226 = vpop.f32.mrf.mxu0
        %v3227 = vpop.f32.mrf.mxu0
        %v3228 = vpop.f32.mrf.mxu0
        %3229 = vdwg.mxu0
        %v3231 = vsel %vm2055, %v2973, 0
        %v3234 = vsel %vm2055, %v2989, 0
        %3236 = vmatprep.subr.bf16.mxu0 0
        %3237 = vmatpush1.bf16.xpose.msra.mxu0 0
        %3238 = vmatprep.subr.bf16.mxu0 0
        %3239 = vmatpush1.bf16.xpose.msra.mxu0 0
        %3240 = vmatprep.subr.bf16.mxu0 0
        %3241 = vmatpush1.bf16.xpose.msra.mxu0 0
        %3242 = vmatprep.subr.bf16.mxu0 0
        %3243 = vmatpush1.bf16.xpose.msra.mxu0 0
        %3244 = vmatprep.subr.bf16.mxu0 0
        %3245 = vmatpush1.bf16.xpose.msra.mxu0 0
        %3246 = vmatprep.subr.bf16.mxu0 0
        %3247 = vmatpush1.bf16.xpose.msra.mxu0 0
        %3248 = vmatprep.subr.bf16.mxu0 0
        %3249 = vmatpush1.bf16.xpose.msra.mxu0 0
        %3250 = vmatprep.subr.bf16.mxu0 0
        %3251 = vmatpush1.bf16.xpose.msra.mxu0 %v3234
        %3252 = vmatprep.subr.bf16.mxu0 0
        %3253 = vmatpush2.bf16.xpose.msra.mxu0 0
        %3254 = vmatprep.subr.bf16.mxu0 0
        %3255 = vmatpush2.bf16.xpose.msra.mxu0 0
        %3256 = vmatprep.subr.bf16.mxu0 0
        %3257 = vmatpush2.bf16.xpose.msra.mxu0 0
        %3258 = vmatprep.subr.bf16.mxu0 0
        %3259 = vmatpush2.bf16.xpose.msra.mxu0 0
        %3260 = vmatprep.subr.bf16.mxu0 0
        %3261 = vmatpush2.bf16.xpose.msra.mxu0 0
        %3262 = vmatprep.subr.bf16.mxu0 0
        %3263 = vmatpush2.bf16.xpose.msra.mxu0 0
        %3264 = vmatprep.subr.bf16.mxu0 0
        %3265 = vmatpush2.bf16.xpose.msra.mxu0 0
        %3266 = vmatprep.subr.bf16.mxu0 0
        %3267 = vmatpush2.bf16.xpose.msra.mxu0 0
        %3268 = vmatprep.mubr.bf16.mxu0 0
        %3269 = vmatmul.mubr.bf16.gmra.mxu0 %v3231
        %v3270 = vpop.f32.mrf.mxu0
        %v3271 = vadd.f32 0.0, %v3270
        %v3272 = vpop.f32.mrf.mxu0
        %v3273 = vpop.f32.mrf.mxu0
        %v3274 = vpop.f32.mrf.mxu0
        %3275 = vdwg.mxu0
        %v3277 = vsel %vm2055, %v2974, 0
        %v3280 = vsel %vm2055, %v2990, 0
        %3282 = vmatprep.subr.bf16.mxu0 0
        %3283 = vmatpush1.bf16.xpose.msra.mxu0 0
        %3284 = vmatprep.subr.bf16.mxu0 0
        %3285 = vmatpush1.bf16.xpose.msra.mxu0 0
        %3286 = vmatprep.subr.bf16.mxu0 0
        %3287 = vmatpush1.bf16.xpose.msra.mxu0 0
        %3288 = vmatprep.subr.bf16.mxu0 0
        %3289 = vmatpush1.bf16.xpose.msra.mxu0 0
        %3290 = vmatprep.subr.bf16.mxu0 0
        %3291 = vmatpush1.bf16.xpose.msra.mxu0 0
        %3292 = vmatprep.subr.bf16.mxu0 0
        %3293 = vmatpush1.bf16.xpose.msra.mxu0 0
        %3294 = vmatprep.subr.bf16.mxu0 0
        %3295 = vmatpush1.bf16.xpose.msra.mxu0 0
        %3296 = vmatprep.subr.bf16.mxu0 0
        %3297 = vmatpush1.bf16.xpose.msra.mxu0 %v3280
        %3298 = vmatprep.subr.bf16.mxu0 0
        %3299 = vmatpush2.bf16.xpose.msra.mxu0 0
        %3300 = vmatprep.subr.bf16.mxu0 0
        %3301 = vmatpush2.bf16.xpose.msra.mxu0 0
        %3302 = vmatprep.subr.bf16.mxu0 0
        %3303 = vmatpush2.bf16.xpose.msra.mxu0 0
        %3304 = vmatprep.subr.bf16.mxu0 0
        %3305 = vmatpush2.bf16.xpose.msra.mxu0 0
        %3306 = vmatprep.subr.bf16.mxu0 0
        %3307 = vmatpush2.bf16.xpose.msra.mxu0 0
        %3308 = vmatprep.subr.bf16.mxu0 0
        %3309 = vmatpush2.bf16.xpose.msra.mxu0 0
        %3310 = vmatprep.subr.bf16.mxu0 0
        %3311 = vmatpush2.bf16.xpose.msra.mxu0 0
        %3312 = vmatprep.subr.bf16.mxu0 0
        %3313 = vmatpush2.bf16.xpose.msra.mxu0 0
        %3314 = vmatprep.mubr.bf16.mxu0 0
        %3315 = vmatmul.mubr.bf16.gmra.mxu0 %v3277
        %v3316 = vpop.f32.mrf.mxu0
        %v3317 = vadd.f32 0.0, %v3316
        %v3318 = vpop.f32.mrf.mxu0
        %v3319 = vpop.f32.mrf.mxu0
        %v3320 = vpop.f32.mrf.mxu0
        %3321 = vdwg.mxu0
        %v3323 = vsel %vm2055, %v2975, 0
        %v3326 = vsel %vm2055, %v2991, 0
        %3328 = vmatprep.subr.bf16.mxu0 0
        %3329 = vmatpush1.bf16.xpose.msra.mxu0 0
        %3330 = vmatprep.subr.bf16.mxu0 0
        %3331 = vmatpush1.bf16.xpose.msra.mxu0 0
        %3332 = vmatprep.subr.bf16.mxu0 0
        %3333 = vmatpush1.bf16.xpose.msra.mxu0 0
        %3334 = vmatprep.subr.bf16.mxu0 0
        %3335 = vmatpush1.bf16.xpose.msra.mxu0 0
        %3336 = vmatprep.subr.bf16.mxu0 0
        %3337 = vmatpush1.bf16.xpose.msra.mxu0 0
        %3338 = vmatprep.subr.bf16.mxu0 0
        %3339 = vmatpush1.bf16.xpose.msra.mxu0 0
        %3340 = vmatprep.subr.bf16.mxu0 0
        %3341 = vmatpush1.bf16.xpose.msra.mxu0 0
        %3342 = vmatprep.subr.bf16.mxu0 0
        %3343 = vmatpush1.bf16.xpose.msra.mxu0 %v3326
        %3344 = vmatprep.subr.bf16.mxu0 0
        %3345 = vmatpush2.bf16.xpose.msra.mxu0 0
        %3346 = vmatprep.subr.bf16.mxu0 0
        %3347 = vmatpush2.bf16.xpose.msra.mxu0 0
        %3348 = vmatprep.subr.bf16.mxu0 0
        %3349 = vmatpush2.bf16.xpose.msra.mxu0 0
        %3350 = vmatprep.subr.bf16.mxu0 0
        %3351 = vmatpush2.bf16.xpose.msra.mxu0 0
        %3352 = vmatprep.subr.bf16.mxu0 0
        %3353 = vmatpush2.bf16.xpose.msra.mxu0 0
        %3354 = vmatprep.subr.bf16.mxu0 0
        %3355 = vmatpush2.bf16.xpose.msra.mxu0 0
        %3356 = vmatprep.subr.bf16.mxu0 0
        %3357 = vmatpush2.bf16.xpose.msra.mxu0 0
        %3358 = vmatprep.subr.bf16.mxu0 0
        %3359 = vmatpush2.bf16.xpose.msra.mxu0 0
        %3360 = vmatprep.mubr.bf16.mxu0 0
        %3361 = vmatmul.mubr.bf16.gmra.mxu0 %v3323
        %v3362 = vpop.f32.mrf.mxu0
        %v3363 = vadd.f32 0.0, %v3362
        %v3364 = vpop.f32.mrf.mxu0
        %v3365 = vpop.f32.mrf.mxu0
        %v3366 = vpop.f32.mrf.mxu0
        %3367 = vdwg.mxu0
        %v3369 = vsel %vm2055, %v2976, 0
        %v3372 = vsel %vm2055, %v2992, 0
        %3374 = vmatprep.subr.bf16.mxu0 0
        %3375 = vmatpush1.bf16.xpose.msra.mxu0 0
        %3376 = vmatprep.subr.bf16.mxu0 0
        %3377 = vmatpush1.bf16.xpose.msra.mxu0 0
        %3378 = vmatprep.subr.bf16.mxu0 0
        %3379 = vmatpush1.bf16.xpose.msra.mxu0 0
        %3380 = vmatprep.subr.bf16.mxu0 0
        %3381 = vmatpush1.bf16.xpose.msra.mxu0 0
        %3382 = vmatprep.subr.bf16.mxu0 0
        %3383 = vmatpush1.bf16.xpose.msra.mxu0 0
        %3384 = vmatprep.subr.bf16.mxu0 0
        %3385 = vmatpush1.bf16.xpose.msra.mxu0 0
        %3386 = vmatprep.subr.bf16.mxu0 0
        %3387 = vmatpush1.bf16.xpose.msra.mxu0 0
        %3388 = vmatprep.subr.bf16.mxu0 0
        %3389 = vmatpush1.bf16.xpose.msra.mxu0 %v3372
        %3390 = vmatprep.subr.bf16.mxu0 0
        %3391 = vmatpush2.bf16.xpose.msra.mxu0 0
        %3392 = vmatprep.subr.bf16.mxu0 0
        %3393 = vmatpush2.bf16.xpose.msra.mxu0 0
        %3394 = vmatprep.subr.bf16.mxu0 0
        %3395 = vmatpush2.bf16.xpose.msra.mxu0 0
        %3396 = vmatprep.subr.bf16.mxu0 0
        %3397 = vmatpush2.bf16.xpose.msra.mxu0 0
        %3398 = vmatprep.subr.bf16.mxu0 0
        %3399 = vmatpush2.bf16.xpose.msra.mxu0 0
        %3400 = vmatprep.subr.bf16.mxu0 0
        %3401 = vmatpush2.bf16.xpose.msra.mxu0 0
        %3402 = vmatprep.subr.bf16.mxu0 0
        %3403 = vmatpush2.bf16.xpose.msra.mxu0 0
        %3404 = vmatprep.subr.bf16.mxu0 0
        %3405 = vmatpush2.bf16.xpose.msra.mxu0 0
        %3406 = vmatprep.mubr.bf16.mxu0 0
        %3407 = vmatmul.mubr.bf16.gmra.mxu0 %v3369
        %v3408 = vpop.f32.mrf.mxu0
        %v3409 = vadd.f32 0.0, %v3408
        %v3410 = vpop.f32.mrf.mxu0
        %v3411 = vpop.f32.mrf.mxu0
        %v3412 = vpop.f32.mrf.mxu0
        %3413 = vdwg.mxu0
        %v3415 = vsel %vm2055, %v2977, 0
        %v3418 = vsel %vm2055, %v2993, 0
        %3420 = vmatprep.subr.bf16.mxu0 0
        %3421 = vmatpush1.bf16.xpose.msra.mxu0 0
        %3422 = vmatprep.subr.bf16.mxu0 0
        %3423 = vmatpush1.bf16.xpose.msra.mxu0 0
        %3424 = vmatprep.subr.bf16.mxu0 0
        %3425 = vmatpush1.bf16.xpose.msra.mxu0 0
        %3426 = vmatprep.subr.bf16.mxu0 0
        %3427 = vmatpush1.bf16.xpose.msra.mxu0 0
        %3428 = vmatprep.subr.bf16.mxu0 0
        %3429 = vmatpush1.bf16.xpose.msra.mxu0 0
        %3430 = vmatprep.subr.bf16.mxu0 0
        %3431 = vmatpush1.bf16.xpose.msra.mxu0 0
        %3432 = vmatprep.subr.bf16.mxu0 0
        %3433 = vmatpush1.bf16.xpose.msra.mxu0 0
        %3434 = vmatprep.subr.bf16.mxu0 0
        %3435 = vmatpush1.bf16.xpose.msra.mxu0 %v3418
        %3436 = vmatprep.subr.bf16.mxu0 0
        %3437 = vmatpush2.bf16.xpose.msra.mxu0 0
        %3438 = vmatprep.subr.bf16.mxu0 0
        %3439 = vmatpush2.bf16.xpose.msra.mxu0 0
        %3440 = vmatprep.subr.bf16.mxu0 0
        %3441 = vmatpush2.bf16.xpose.msra.mxu0 0
        %3442 = vmatprep.subr.bf16.mxu0 0
        %3443 = vmatpush2.bf16.xpose.msra.mxu0 0
        %3444 = vmatprep.subr.bf16.mxu0 0
        %3445 = vmatpush2.bf16.xpose.msra.mxu0 0
        %3446 = vmatprep.subr.bf16.mxu0 0
        %3447 = vmatpush2.bf16.xpose.msra.mxu0 0
        %3448 = vmatprep.subr.bf16.mxu0 0
        %3449 = vmatpush2.bf16.xpose.msra.mxu0 0
        %3450 = vmatprep.subr.bf16.mxu0 0
        %3451 = vmatpush2.bf16.xpose.msra.mxu0 0
        %3452 = vmatprep.mubr.bf16.mxu0 0
        %3453 = vmatmul.mubr.bf16.gmra.mxu0 %v3415
        %v3454 = vpop.f32.mrf.mxu0
        %v3455 = vadd.f32 0.0, %v3454
        %v3456 = vpop.f32.mrf.mxu0
        %v3457 = vpop.f32.mrf.mxu0
        %v3458 = vpop.f32.mrf.mxu0
        %3459 = vdwg.mxu0
        %v3461 = vsel %vm2055, %v2978, 0
        %v3464 = vsel %vm2055, %v2994, 0
        %3466 = vmatprep.subr.bf16.mxu0 0
        %3467 = vmatpush1.bf16.xpose.msra.mxu0 0
        %3468 = vmatprep.subr.bf16.mxu0 0
        %3469 = vmatpush1.bf16.xpose.msra.mxu0 0
        %3470 = vmatprep.subr.bf16.mxu0 0
        %3471 = vmatpush1.bf16.xpose.msra.mxu0 0
        %3472 = vmatprep.subr.bf16.mxu0 0
        %3473 = vmatpush1.bf16.xpose.msra.mxu0 0
        %3474 = vmatprep.subr.bf16.mxu0 0
        %3475 = vmatpush1.bf16.xpose.msra.mxu0 0
        %3476 = vmatprep.subr.bf16.mxu0 0
        %3477 = vmatpush1.bf16.xpose.msra.mxu0 0
        %3478 = vmatprep.subr.bf16.mxu0 0
        %3479 = vmatpush1.bf16.xpose.msra.mxu0 0
        %3480 = vmatprep.subr.bf16.mxu0 0
        %3481 = vmatpush1.bf16.xpose.msra.mxu0 %v3464
        %3482 = vmatprep.subr.bf16.mxu0 0
        %3483 = vmatpush2.bf16.xpose.msra.mxu0 0
        %3484 = vmatprep.subr.bf16.mxu0 0
        %3485 = vmatpush2.bf16.xpose.msra.mxu0 0
        %3486 = vmatprep.subr.bf16.mxu0 0
        %3487 = vmatpush2.bf16.xpose.msra.mxu0 0
        %3488 = vmatprep.subr.bf16.mxu0 0
        %3489 = vmatpush2.bf16.xpose.msra.mxu0 0
        %3490 = vmatprep.subr.bf16.mxu0 0
        %3491 = vmatpush2.bf16.xpose.msra.mxu0 0
        %3492 = vmatprep.subr.bf16.mxu0 0
        %3493 = vmatpush2.bf16.xpose.msra.mxu0 0
        %3494 = vmatprep.subr.bf16.mxu0 0
        %3495 = vmatpush2.bf16.xpose.msra.mxu0 0
        %3496 = vmatprep.subr.bf16.mxu0 0
        %3497 = vmatpush2.bf16.xpose.msra.mxu0 0
        %3498 = vmatprep.mubr.bf16.mxu0 0
        %3499 = vmatmul.mubr.bf16.gmra.mxu0 %v3461
        %v3500 = vpop.f32.mrf.mxu0
        %v3501 = vadd.f32 0.0, %v3500
        %v3502 = vpop.f32.mrf.mxu0
        %v3503 = vpop.f32.mrf.mxu0
        %v3504 = vpop.f32.mrf.mxu0
        %3505 = vdwg.mxu0
        %v3507 = vsel %vm2055, %v2979, 0
        %v3510 = vsel %vm2055, %v2995, 0
        %3512 = vmatprep.subr.bf16.mxu0 0
        %3513 = vmatpush1.bf16.xpose.msra.mxu0 0
        %3514 = vmatprep.subr.bf16.mxu0 0
        %3515 = vmatpush1.bf16.xpose.msra.mxu0 0
        %3516 = vmatprep.subr.bf16.mxu0 0
        %3517 = vmatpush1.bf16.xpose.msra.mxu0 0
        %3518 = vmatprep.subr.bf16.mxu0 0
        %3519 = vmatpush1.bf16.xpose.msra.mxu0 0
        %3520 = vmatprep.subr.bf16.mxu0 0
        %3521 = vmatpush1.bf16.xpose.msra.mxu0 0
        %3522 = vmatprep.subr.bf16.mxu0 0
        %3523 = vmatpush1.bf16.xpose.msra.mxu0 0
        %3524 = vmatprep.subr.bf16.mxu0 0
        %3525 = vmatpush1.bf16.xpose.msra.mxu0 0
        %3526 = vmatprep.subr.bf16.mxu0 0
        %3527 = vmatpush1.bf16.xpose.msra.mxu0 %v3510
        %3528 = vmatprep.subr.bf16.mxu0 0
        %3529 = vmatpush2.bf16.xpose.msra.mxu0 0
        %3530 = vmatprep.subr.bf16.mxu0 0
        %3531 = vmatpush2.bf16.xpose.msra.mxu0 0
        %3532 = vmatprep.subr.bf16.mxu0 0
        %3533 = vmatpush2.bf16.xpose.msra.mxu0 0
        %3534 = vmatprep.subr.bf16.mxu0 0
        %3535 = vmatpush2.bf16.xpose.msra.mxu0 0
        %3536 = vmatprep.subr.bf16.mxu0 0
        %3537 = vmatpush2.bf16.xpose.msra.mxu0 0
        %3538 = vmatprep.subr.bf16.mxu0 0
        %3539 = vmatpush2.bf16.xpose.msra.mxu0 0
        %3540 = vmatprep.subr.bf16.mxu0 0
        %3541 = vmatpush2.bf16.xpose.msra.mxu0 0
        %3542 = vmatprep.subr.bf16.mxu0 0
        %3543 = vmatpush2.bf16.xpose.msra.mxu0 0
        %3544 = vmatprep.mubr.bf16.mxu0 0
        %3545 = vmatmul.mubr.bf16.gmra.mxu0 %v3507
        %v3546 = vpop.f32.mrf.mxu0
        %v3547 = vadd.f32 0.0, %v3546
        %v3548 = vpop.f32.mrf.mxu0
        %v3549 = vpop.f32.mrf.mxu0
        %v3550 = vpop.f32.mrf.mxu0
        %3551 = vdwg.mxu0
        %v3553 = vsel %vm2055, %v2980, 0
        %v3556 = vsel %vm2055, %v2996, 0
        %3558 = vmatprep.subr.bf16.mxu0 0
        %3559 = vmatpush1.bf16.xpose.msra.mxu0 0
        %3560 = vmatprep.subr.bf16.mxu0 0
        %3561 = vmatpush1.bf16.xpose.msra.mxu0 0
        %3562 = vmatprep.subr.bf16.mxu0 0
        %3563 = vmatpush1.bf16.xpose.msra.mxu0 0
        %3564 = vmatprep.subr.bf16.mxu0 0
        %3565 = vmatpush1.bf16.xpose.msra.mxu0 0
        %3566 = vmatprep.subr.bf16.mxu0 0
        %3567 = vmatpush1.bf16.xpose.msra.mxu0 0
        %3568 = vmatprep.subr.bf16.mxu0 0
        %3569 = vmatpush1.bf16.xpose.msra.mxu0 0
        %3570 = vmatprep.subr.bf16.mxu0 0
        %3571 = vmatpush1.bf16.xpose.msra.mxu0 0
        %3572 = vmatprep.subr.bf16.mxu0 0
        %3573 = vmatpush1.bf16.xpose.msra.mxu0 %v3556
        %3574 = vmatprep.subr.bf16.mxu0 0
        %3575 = vmatpush2.bf16.xpose.msra.mxu0 0
        %3576 = vmatprep.subr.bf16.mxu0 0
        %3577 = vmatpush2.bf16.xpose.msra.mxu0 0
        %3578 = vmatprep.subr.bf16.mxu0 0
        %3579 = vmatpush2.bf16.xpose.msra.mxu0 0
        %3580 = vmatprep.subr.bf16.mxu0 0
        %3581 = vmatpush2.bf16.xpose.msra.mxu0 0
        %3582 = vmatprep.subr.bf16.mxu0 0
        %3583 = vmatpush2.bf16.xpose.msra.mxu0 0
        %3584 = vmatprep.subr.bf16.mxu0 0
        %3585 = vmatpush2.bf16.xpose.msra.mxu0 0
        %3586 = vmatprep.subr.bf16.mxu0 0
        %3587 = vmatpush2.bf16.xpose.msra.mxu0 0
        %3588 = vmatprep.subr.bf16.mxu0 0
        %3589 = vmatpush2.bf16.xpose.msra.mxu0 0
        %3590 = vmatprep.mubr.bf16.mxu0 0
        %3591 = vmatmul.mubr.bf16.gmra.mxu0 %v3553
        %v3592 = vpop.f32.mrf.mxu0
        %v3593 = vadd.f32 0.0, %v3592
        %v3594 = vpop.f32.mrf.mxu0
        %v3595 = vpop.f32.mrf.mxu0
        %v3596 = vpop.f32.mrf.mxu0
        %3597 = vdwg.mxu0
        %v3599 = vsel %vm2055, %v2981, 0
        %v3602 = vsel %vm2055, %v2997, 0
        %3604 = vmatprep.subr.bf16.mxu0 0
        %3605 = vmatpush1.bf16.xpose.msra.mxu0 0
        %3606 = vmatprep.subr.bf16.mxu0 0
        %3607 = vmatpush1.bf16.xpose.msra.mxu0 0
        %3608 = vmatprep.subr.bf16.mxu0 0
        %3609 = vmatpush1.bf16.xpose.msra.mxu0 0
        %3610 = vmatprep.subr.bf16.mxu0 0
        %3611 = vmatpush1.bf16.xpose.msra.mxu0 0
        %3612 = vmatprep.subr.bf16.mxu0 0
        %3613 = vmatpush1.bf16.xpose.msra.mxu0 0
        %3614 = vmatprep.subr.bf16.mxu0 0
        %3615 = vmatpush1.bf16.xpose.msra.mxu0 0
        %3616 = vmatprep.subr.bf16.mxu0 0
        %3617 = vmatpush1.bf16.xpose.msra.mxu0 0
        %3618 = vmatprep.subr.bf16.mxu0 0
        %3619 = vmatpush1.bf16.xpose.msra.mxu0 %v3602
        %3620 = vmatprep.subr.bf16.mxu0 0
        %3621 = vmatpush2.bf16.xpose.msra.mxu0 0
        %3622 = vmatprep.subr.bf16.mxu0 0
        %3623 = vmatpush2.bf16.xpose.msra.mxu0 0
        %3624 = vmatprep.subr.bf16.mxu0 0
        %3625 = vmatpush2.bf16.xpose.msra.mxu0 0
        %3626 = vmatprep.subr.bf16.mxu0 0
        %3627 = vmatpush2.bf16.xpose.msra.mxu0 0
        %3628 = vmatprep.subr.bf16.mxu0 0
        %3629 = vmatpush2.bf16.xpose.msra.mxu0 0
        %3630 = vmatprep.subr.bf16.mxu0 0
        %3631 = vmatpush2.bf16.xpose.msra.mxu0 0
        %3632 = vmatprep.subr.bf16.mxu0 0
        %3633 = vmatpush2.bf16.xpose.msra.mxu0 0
        %3634 = vmatprep.subr.bf16.mxu0 0
        %3635 = vmatpush2.bf16.xpose.msra.mxu0 0
        %3636 = vmatprep.mubr.bf16.mxu0 0
        %3637 = vmatmul.mubr.bf16.gmra.mxu0 %v3599
        %v3638 = vpop.f32.mrf.mxu0
        %v3639 = vadd.f32 0.0, %v3638
        %v3640 = vpop.f32.mrf.mxu0
        %v3641 = vpop.f32.mrf.mxu0
        %v3642 = vpop.f32.mrf.mxu0
        %3643 = vdwg.mxu0
        %v3645 = vsel %vm2055, %v2982, 0
        %v3648 = vsel %vm2055, %v2998, 0
        %3650 = vmatprep.subr.bf16.mxu0 0
        %3651 = vmatpush1.bf16.xpose.msra.mxu0 0
        %3652 = vmatprep.subr.bf16.mxu0 0
        %3653 = vmatpush1.bf16.xpose.msra.mxu0 0
        %3654 = vmatprep.subr.bf16.mxu0 0
        %3655 = vmatpush1.bf16.xpose.msra.mxu0 0
        %3656 = vmatprep.subr.bf16.mxu0 0
        %3657 = vmatpush1.bf16.xpose.msra.mxu0 0
        %3658 = vmatprep.subr.bf16.mxu0 0
        %3659 = vmatpush1.bf16.xpose.msra.mxu0 0
        %3660 = vmatprep.subr.bf16.mxu0 0
        %3661 = vmatpush1.bf16.xpose.msra.mxu0 0
        %3662 = vmatprep.subr.bf16.mxu0 0
        %3663 = vmatpush1.bf16.xpose.msra.mxu0 0
        %3664 = vmatprep.subr.bf16.mxu0 0
        %3665 = vmatpush1.bf16.xpose.msra.mxu0 %v3648
        %3666 = vmatprep.subr.bf16.mxu0 0
        %3667 = vmatpush2.bf16.xpose.msra.mxu0 0
        %3668 = vmatprep.subr.bf16.mxu0 0
        %3669 = vmatpush2.bf16.xpose.msra.mxu0 0
        %3670 = vmatprep.subr.bf16.mxu0 0
        %3671 = vmatpush2.bf16.xpose.msra.mxu0 0
        %3672 = vmatprep.subr.bf16.mxu0 0
        %3673 = vmatpush2.bf16.xpose.msra.mxu0 0
        %3674 = vmatprep.subr.bf16.mxu0 0
        %3675 = vmatpush2.bf16.xpose.msra.mxu0 0
        %3676 = vmatprep.subr.bf16.mxu0 0
        %3677 = vmatpush2.bf16.xpose.msra.mxu0 0
        %3678 = vmatprep.subr.bf16.mxu0 0
        %3679 = vmatpush2.bf16.xpose.msra.mxu0 0
        %3680 = vmatprep.subr.bf16.mxu0 0
        %3681 = vmatpush2.bf16.xpose.msra.mxu0 0
        %3682 = vmatprep.mubr.bf16.mxu0 0
        %3683 = vmatmul.mubr.bf16.gmra.mxu0 %v3645
        %v3684 = vpop.f32.mrf.mxu0
        %v3685 = vadd.f32 0.0, %v3684
        %v3686 = vpop.f32.mrf.mxu0
        %v3687 = vpop.f32.mrf.mxu0
        %v3688 = vpop.f32.mrf.mxu0
        %3689 = vdwg.mxu0
        %v3691 = vsel %vm2055, %v2983, 0
        %v3694 = vsel %vm2055, %v2999, 0
        %3696 = vmatprep.subr.bf16.mxu0 0
        %3697 = vmatpush1.bf16.xpose.msra.mxu0 0
        %3698 = vmatprep.subr.bf16.mxu0 0
        %3699 = vmatpush1.bf16.xpose.msra.mxu0 0
        %3700 = vmatprep.subr.bf16.mxu0 0
        %3701 = vmatpush1.bf16.xpose.msra.mxu0 0
        %3702 = vmatprep.subr.bf16.mxu0 0
        %3703 = vmatpush1.bf16.xpose.msra.mxu0 0
        %3704 = vmatprep.subr.bf16.mxu0 0
        %3705 = vmatpush1.bf16.xpose.msra.mxu0 0
        %3706 = vmatprep.subr.bf16.mxu0 0
        %3707 = vmatpush1.bf16.xpose.msra.mxu0 0
        %3708 = vmatprep.subr.bf16.mxu0 0
        %3709 = vmatpush1.bf16.xpose.msra.mxu0 0
        %3710 = vmatprep.subr.bf16.mxu0 0
        %3711 = vmatpush1.bf16.xpose.msra.mxu0 %v3694
        %3712 = vmatprep.subr.bf16.mxu0 0
        %3713 = vmatpush2.bf16.xpose.msra.mxu0 0
        %3714 = vmatprep.subr.bf16.mxu0 0
        %3715 = vmatpush2.bf16.xpose.msra.mxu0 0
        %3716 = vmatprep.subr.bf16.mxu0 0
        %3717 = vmatpush2.bf16.xpose.msra.mxu0 0
        %3718 = vmatprep.subr.bf16.mxu0 0
        %3719 = vmatpush2.bf16.xpose.msra.mxu0 0
        %3720 = vmatprep.subr.bf16.mxu0 0
        %3721 = vmatpush2.bf16.xpose.msra.mxu0 0
        %3722 = vmatprep.subr.bf16.mxu0 0
        %3723 = vmatpush2.bf16.xpose.msra.mxu0 0
        %3724 = vmatprep.subr.bf16.mxu0 0
        %3725 = vmatpush2.bf16.xpose.msra.mxu0 0
        %3726 = vmatprep.subr.bf16.mxu0 0
        %3727 = vmatpush2.bf16.xpose.msra.mxu0 0
        %3728 = vmatprep.mubr.bf16.mxu0 0
        %3729 = vmatmul.mubr.bf16.gmra.mxu0 %v3691
        %v3730 = vpop.f32.mrf.mxu0
        %v3731 = vadd.f32 0.0, %v3730
        %v3732 = vpop.f32.mrf.mxu0
        %v3733 = vpop.f32.mrf.mxu0
        %v3734 = vpop.f32.mrf.mxu0
        %3735 = vdwg.mxu0
        %v3736 = vpack.c.bf16 %v3087, %v3041
        %v3737 = vpack.c.bf16 %v3179, %v3133
        %v3738 = vpack.c.bf16 %v3271, %v3225
        %v3739 = vpack.c.bf16 %v3363, %v3317
        %v3740 = vpack.c.bf16 %v3455, %v3409
        %v3741 = vpack.c.bf16 %v3547, %v3501
        %v3742 = vpack.c.bf16 %v3639, %v3593
        %v3743 = vpack.c.bf16 %v3731, %v3685
        %3745 = vset.pattern.permute.xlu0 0
        %3746 = vperm.xlu0 %3745, %v333
        %v3747 = vpop.permute.xlu0 %3746
        %3750 = vset.pattern.permute.xlu0 0
        %3751 = vperm.xlu0 %3750, %v334
        %v3752 = vpop.permute.xlu0 %3751
        %3755 = vset.pattern.permute.xlu0 0
        %3756 = vperm.xlu0 %3755, %v335
        %v3757 = vpop.permute.xlu0 %3756
        %3760 = vset.pattern.permute.xlu0 0
        %3761 = vperm.xlu0 %3760, %v336
        %v3762 = vpop.permute.xlu0 %3761
        %3765 = vset.pattern.permute.xlu0 0
        %3766 = vperm.xlu0 %3765, %v337
        %v3767 = vpop.permute.xlu0 %3766
        %3770 = vset.pattern.permute.xlu0 0
        %3771 = vperm.xlu0 %3770, %v338
        %v3772 = vpop.permute.xlu0 %3771
        %3775 = vset.pattern.permute.xlu0 0
        %3776 = vperm.xlu0 %3775, %v339
        %v3777 = vpop.permute.xlu0 %3776
        %3780 = vset.pattern.permute.xlu0 0
        %3781 = vperm.xlu0 %3780, %v340
        %v3782 = vpop.permute.xlu0 %3781
        %3785 = vset.pattern.permute.xlu0 0
        %3786 = vperm.xlu0 %3785, %v341
        %v3787 = vpop.permute.xlu0 %3786
        %3790 = vset.pattern.permute.xlu0 0
        %3791 = vperm.xlu0 %3790, %v342
        %v3792 = vpop.permute.xlu0 %3791
        %3795 = vset.pattern.permute.xlu0 0
        %3796 = vperm.xlu0 %3795, %v343
        %v3797 = vpop.permute.xlu0 %3796
        %3800 = vset.pattern.permute.xlu0 0
        %3801 = vperm.xlu0 %3800, %v344
        %v3802 = vpop.permute.xlu0 %3801
        %3805 = vset.pattern.permute.xlu0 0
        %3806 = vperm.xlu0 %3805, %v345
        %v3807 = vpop.permute.xlu0 %3806
        %3810 = vset.pattern.permute.xlu0 0
        %3811 = vperm.xlu0 %3810, %v346
        %v3812 = vpop.permute.xlu0 %3811
        %3815 = vset.pattern.permute.xlu0 0
        %3816 = vperm.xlu0 %3815, %v347
        %v3817 = vpop.permute.xlu0 %3816
        %3820 = vset.pattern.permute.xlu0 0
        %3821 = vperm.xlu0 %3820, %v348
        %v3822 = vpop.permute.xlu0 %3821
        %v3840 = vunpack.c.l.b16 %v269
        %v3841 = vunpack.c.l.b16 %v270
        %v3842 = vunpack.c.l.b16 %v271
        %v3843 = vunpack.c.l.b16 %v272
        %v3844 = vunpack.c.l.b16 %v273
        %v3845 = vunpack.c.l.b16 %v274
        %v3846 = vunpack.c.l.b16 %v275
        %v3847 = vunpack.c.l.b16 %v276
        %v3848 = vunpack.c.l.b16 %v277
        %v3849 = vunpack.c.l.b16 %v278
        %v3850 = vunpack.c.l.b16 %v279
        %v3851 = vunpack.c.l.b16 %v280
        %v3852 = vunpack.c.l.b16 %v281
        %v3853 = vunpack.c.l.b16 %v282
        %v3854 = vunpack.c.l.b16 %v283
        %v3855 = vunpack.c.l.b16 %v284
        %v3856 = vpack.c.b16 %v3841, %v3840
        %v3857 = vpack.c.b16 %v3843, %v3842
        %v3858 = vpack.c.b16 %v3845, %v3844
        %v3859 = vpack.c.b16 %v3847, %v3846
        %v3860 = vpack.c.b16 %v3849, %v3848
        %v3861 = vpack.c.b16 %v3851, %v3850
        %v3862 = vpack.c.b16 %v3853, %v3852
        %v3863 = vpack.c.b16 %v3855, %v3854
        %3872 = vmatprep.subr.bf16.mxu0 0
        %3873 = vmatpush1.bf16.msra.mxu0 %v3743
        %3874 = vmatprep.subr.bf16.mxu0 0
        %3875 = vmatpush1.bf16.msra.mxu0 %v3742
        %3876 = vmatprep.subr.bf16.mxu0 0
        %3877 = vmatpush1.bf16.msra.mxu0 %v3741
        %3878 = vmatprep.subr.bf16.mxu0 0
        %3879 = vmatpush1.bf16.msra.mxu0 %v3740
        %3880 = vmatprep.subr.bf16.mxu0 0
        %3881 = vmatpush1.bf16.msra.mxu0 %v3739
        %3882 = vmatprep.subr.bf16.mxu0 0
        %3883 = vmatpush1.bf16.msra.mxu0 %v3738
        %3884 = vmatprep.subr.bf16.mxu0 0
        %3885 = vmatpush1.bf16.msra.mxu0 %v3737
        %3886 = vmatprep.subr.bf16.mxu0 0
        %3887 = vmatpush1.bf16.msra.mxu0 %v3736
        %3888 = vmatprep.subr.bf16.mxu0 0
        %3889 = vmatpush2.bf16.msra.mxu0 0
        %3890 = vmatprep.subr.bf16.mxu0 0
        %3891 = vmatpush2.bf16.msra.mxu0 0
        %3892 = vmatprep.subr.bf16.mxu0 0
        %3893 = vmatpush2.bf16.msra.mxu0 0
        %3894 = vmatprep.subr.bf16.mxu0 0
        %3895 = vmatpush2.bf16.msra.mxu0 0
        %3896 = vmatprep.subr.bf16.mxu0 0
        %3897 = vmatpush2.bf16.msra.mxu0 0
        %3898 = vmatprep.subr.bf16.mxu0 0
        %3899 = vmatpush2.bf16.msra.mxu0 0
        %3900 = vmatprep.subr.bf16.mxu0 0
        %3901 = vmatpush2.bf16.msra.mxu0 0
        %3902 = vmatprep.subr.bf16.mxu0 0
        %3903 = vmatpush2.bf16.msra.mxu0 0
        %3904 = vmatprep.mubr.bf16.mxu0 0
        %3905 = vmatmul.mubr.bf16.gmra.mxu0 %v3856
        %v3906 = vpop.f32.mrf.mxu0
        %v3907 = vadd.f32 %v3747, %v3906
        %v3908 = vpop.f32.mrf.mxu0
        %v3909 = vpop.f32.mrf.mxu0
        %v3910 = vadd.f32 %v3752, %v3909
        %v3911 = vpop.f32.mrf.mxu0
        %3912 = vmatprep.mubr.bf16.mxu0 0
        %3913 = vmatmul.mubr.bf16.gmra.mxu0 %v3857
        %v3914 = vpop.f32.mrf.mxu0
        %v3915 = vadd.f32 %v3757, %v3914
        %v3916 = vpop.f32.mrf.mxu0
        %v3917 = vpop.f32.mrf.mxu0
        %v3918 = vadd.f32 %v3762, %v3917
        %v3919 = vpop.f32.mrf.mxu0
        %3920 = vmatprep.mubr.bf16.mxu0 0
        %3921 = vmatmul.mubr.bf16.gmra.mxu0 %v3858
        %v3922 = vpop.f32.mrf.mxu0
        %v3923 = vadd.f32 %v3767, %v3922
        %v3924 = vpop.f32.mrf.mxu0
        %v3925 = vpop.f32.mrf.mxu0
        %v3926 = vadd.f32 %v3772, %v3925
        %v3927 = vpop.f32.mrf.mxu0
        %3928 = vmatprep.mubr.bf16.mxu0 0
        %3929 = vmatmul.mubr.bf16.gmra.mxu0 %v3859
        %v3930 = vpop.f32.mrf.mxu0
        %v3931 = vadd.f32 %v3777, %v3930
        %v3932 = vpop.f32.mrf.mxu0
        %v3933 = vpop.f32.mrf.mxu0
        %v3934 = vadd.f32 %v3782, %v3933
        %v3935 = vpop.f32.mrf.mxu0
        %3936 = vmatprep.mubr.bf16.mxu0 0
        %3937 = vmatmul.mubr.bf16.gmra.mxu0 %v3860
        %v3938 = vpop.f32.mrf.mxu0
        %v3939 = vadd.f32 %v3787, %v3938
        %v3940 = vpop.f32.mrf.mxu0
        %v3941 = vpop.f32.mrf.mxu0
        %v3942 = vadd.f32 %v3792, %v3941
        %v3943 = vpop.f32.mrf.mxu0
        %3944 = vmatprep.mubr.bf16.mxu0 0
        %3945 = vmatmul.mubr.bf16.gmra.mxu0 %v3861
        %v3946 = vpop.f32.mrf.mxu0
        %v3947 = vadd.f32 %v3797, %v3946
        %v3948 = vpop.f32.mrf.mxu0
        %v3949 = vpop.f32.mrf.mxu0
        %v3950 = vadd.f32 %v3802, %v3949
        %v3951 = vpop.f32.mrf.mxu0
        %3952 = vmatprep.mubr.bf16.mxu0 0
        %3953 = vmatmul.mubr.bf16.gmra.mxu0 %v3862
        %v3954 = vpop.f32.mrf.mxu0
        %v3955 = vadd.f32 %v3807, %v3954
        %v3956 = vpop.f32.mrf.mxu0
        %v3957 = vpop.f32.mrf.mxu0
        %v3958 = vadd.f32 %v3812, %v3957
        %v3959 = vpop.f32.mrf.mxu0
        %3960 = vmatprep.mubr.bf16.mxu0 0
        %3961 = vmatmul.mubr.bf16.gmra.mxu0 %v3863
        %v3962 = vpop.f32.mrf.mxu0
        %v3963 = vadd.f32 %v3817, %v3962
        %v3964 = vpop.f32.mrf.mxu0
        %v3965 = vpop.f32.mrf.mxu0
        %v3966 = vadd.f32 %v3822, %v3965
        %v3967 = vpop.f32.mrf.mxu0
        %3968 = vdwg.mxu0
        %3969 = vxpose.xlu0.b32.start [1/16] %v3907, 128
        %3970 = vxpose.xlu0.b32.cont [2/16] %v3910, 128
        %3971 = vxpose.xlu0.b32.cont [3/16] %v3915, 128
        %3972 = vxpose.xlu0.b32.cont [4/16] %v3918, 128
        %3973 = vxpose.xlu0.b32.cont [5/16] %v3923, 128
        %3974 = vxpose.xlu0.b32.cont [6/16] %v3926, 128
        %3975 = vxpose.xlu0.b32.cont [7/16] %v3931, 128
        %3976 = vxpose.xlu0.b32.cont [8/16] %v3934, 128
        %3977 = vxpose.xlu0.b32.cont [9/16] %v3939, 128
        %3978 = vxpose.xlu0.b32.cont [10/16] %v3942, 128
        %3979 = vxpose.xlu0.b32.cont [11/16] %v3947, 128
        %3980 = vxpose.xlu0.b32.cont [12/16] %v3950, 128
        %3981 = vxpose.xlu0.b32.cont [13/16] %v3955, 128
        %3982 = vxpose.xlu0.b32.cont [14/16] %v3958, 128
        %3983 = vxpose.xlu0.b32.cont [15/16] %v3963, 128
        %3984 = vxpose.xlu0.b32.end [16/16] %v3966, 128
        %v3985 = vpop.trf.xlu0
        %v3986 = vpop.trf.xlu0
        %v3987 = vpop.trf.xlu0
        %v3988 = vpop.trf.xlu0
        %v3989 = vpop.trf.xlu0
        %v3990 = vpop.trf.xlu0
        %v3991 = vpop.trf.xlu0
        %v3992 = vpop.trf.xlu0
        %v3993 = vpop.trf.xlu0
        %v3994 = vpop.trf.xlu0
        %v3995 = vpop.trf.xlu0
        %v3996 = vpop.trf.xlu0
        %v3997 = vpop.trf.xlu0
        %v3998 = vpop.trf.xlu0
        %v3999 = vpop.trf.xlu0
        %v4000 = vpop.trf.xlu0
        %4001 = vst [vmem:[%s215] sm:$0xff] %v3985
        %s4002 = sand.u32 %s137, 1
        %s4003 = scalar_lea.sflag [#allocation3], %s4002
        %s4004 = sand.u32 %s137, 1
        %s4005 = smul.addr %s4004, 8
        %s4006 = scalar_lea.vmem [#allocation2], %s4005
        // Predicated region
        $region41: #{tpu_custom_call.1} parent=39 // pred_check
          %p4007 = pneg %p147
        $region42: #{tpu_custom_call.1} parent=39 // pred_check_branch
          %4009 = sbr.rel (%p4007) target = $region44
        $region43: #{tpu_custom_call.1} parent=39 // pred_region
          %s4011 = ssub.s32 128, 128
          %4012 = vsyncadd %s4003, %s4011
          %s4013 = smul.addr %s19, 128
          %s4014 = scalar_lea.hbm %s5, %s4013
          %s4016 = sshll.u32 %s4006, 4
          %s4017 = int_to_ptr.vmem [resolvable:$true] %s4016
          %4019 = dma.vmem_to_hbm [thread:$0]  %s4017, 128, %s4014, %s4003
        $region44: #{tpu_custom_call.1} parent=39 // pred_fallthru
          _
      $region40: #{tpu_custom_call.1} parent=5 // pred_fallthru
        _
      %p4020 = scmp.le.s32.totalorder 2, %s14
      // Predicated region
      $region45: #{tpu_custom_call.1} parent=5 // pred_check
        %p4021 = pneg %p4020
      $region46: #{tpu_custom_call.1} parent=5 // pred_check_branch
        %4023 = sbr.rel (%p4021) target = $region48
      $region47: #{tpu_custom_call.1} parent=5 // pred_region
        %s4024 = ssub.s32 %s14, 2
        // Predicated region
        $region49: #{tpu_custom_call.1} parent=47 // pred_check
          %p4025 = pneg %p153
        $region50: #{tpu_custom_call.1} parent=47 // pred_check_branch
          %4027 = sbr.rel (%p4025) target = $region52
        $region51: #{tpu_custom_call.1} parent=47 // pred_region
          %s4028 = sand.u32 %s138, 1
          %s4029 = scalar_lea.sflag [#allocation3], %s4028
          %s4030 = sand.u32 %s138, 1
          %s4031 = smul.addr %s4030, 8
          %s4032 = scalar_lea.vmem [#allocation2], %s4031
          %4033 = dma.done %s4029, 128
        $region52: #{tpu_custom_call.1} parent=47 // pred_fallthru
          _
      $region48: #{tpu_custom_call.1} parent=5 // pred_fallthru
        _
    $region6: #{tpu_custom_call.1} parent=1 // loop_footer
      %s18 = sadd.s32 1, %s14
    $region7: #{tpu_custom_call.1} parent=1 // loop_footer_branch
      %13 = sbr.rel target = $region3
    $region8: #{tpu_custom_call.1} parent=1 // loop_exit
      _
    %4034 = vsyncpa [#allocation3], 1
    %s4035 = scalar_lea.sflag [#allocation3], 1
    %4036 = vsyncpa %s4035, 1

</llo_original>
